<compile_context>
chip_gen: v7x
topology: tpu7x:2x2x1
jax: 0.10.0
libtpu: 0.0.40
codegen_flags: <defaults>
</compile_context>

<pallas_src>
import functools

import jax
import jax.numpy as jnp
from jax.experimental import pallas as pl
from jax.experimental.pallas import tpu as pltpu


_LEFT = 8  # sublane-aligned column offset of the image interior in the halo buffer


# ----------------------------------------------------------------------------
# helpers
# ----------------------------------------------------------------------------
def _vmem_cap_bytes():
    # Cap the scoped-VMEM limit by the actual chip (64 MiB v7x, 128 MiB v5e/v6e),
    # leaving headroom; fall back to a conservative 48 MiB if the query fails.
    try:
        phys = int(pltpu.get_tpu_info().vmem_capacity_bytes)
        return max(32 << 20, min(phys - (16 << 20), 110 << 20))
    except Exception:
        return 48 << 20


def _compiler_params(need_bytes):
    limit = int(min(max(int(need_bytes) + (4 << 20), 16 << 20), _vmem_cap_bytes()))
    return pltpu.CompilerParams(
        dimension_semantics=("parallel",),      # shard grid across TCs on v7x
        vmem_limit_bytes=limit,
    )


def _pick_block_batch(n, per_item_bytes, budget_bytes=8 << 20):
    # Largest divisor of n that fits the budget while keeping >= 2 grid steps
    # (so both v7x TensorCores get work) whenever n > 1.
    best = 1
    for b in range(1, n + 1):
        if n % b or b * per_item_bytes > budget_bytes:
            continue
        if n > 1 and n // b < 2:
            continue
        best = b
    return best


def _combine_bn_stats(stats, n_pix):
    # stats: (N, 2, C); row 0 = per-image channel sum, row 1 = per-image CENTERED
    # sum of squares. Chan's parallel combine -> numerically stable batch var
    # (biased), avoiding the E[y^2] - E[y]^2 cancellation.
    n_img = stats.shape[0]
    s = stats[:, 0, :]
    ssc = stats[:, 1, :]
    mean_i = s / float(n_pix)
    mean = jnp.mean(mean_i, axis=0)
    var = (jnp.sum(ssc, axis=0)
           + float(n_pix) * jnp.sum((mean_i - mean) ** 2, axis=0)) / float(n_img * n_pix)
    return mean, var


# ----------------------------------------------------------------------------
# Kernel A: fused [affine+ReLU on input] -> 3x3 conv -> channel-minor output
#           + per-image BN partial statistics (sum, centered sum of squares).
# ----------------------------------------------------------------------------
def _conv_bn_in_kernel(x_ref, scale_ref, shift_ref, w_ref,
                       y_ref, stats_ref, xpad_ref,
                       *, Ho, Wo, stride, apply_affine, per_tap):
    B, H, W, Cin = x_ref.shape
    Wp = xpad_ref.shape[1]
    n_pix = Ho * Wo
    inv_n = 1.0 / float(n_pix)
    compute_dtype = xpad_ref.dtype

    # Hoisted constants (JAX does not CSE broadcast_in_dim inside loops).
    ones_row = jnp.ones((1, n_pix), jnp.float32)
    z_row = jnp.zeros((1, Wp, Cin), compute_dtype)
    z_left = jnp.zeros((H, _LEFT, Cin), compute_dtype)
    z_right = jnp.zeros((H, Wp - _LEFT - W, Cin), compute_dtype)

    def tap_patch(kh, kw):
        c0 = _LEFT - 1 + kw
        if stride == 1:
            p = xpad_ref[kh:kh + Ho, c0:c0 + Wo, :]
        else:
            # stride folded into the read: only surviving rows/cols are loaded.
            p = xpad_ref[pl.ds(kh, Ho, stride), pl.ds(c0, Wo, stride), :]
        return p.reshape(n_pix, Cin)

    for b in range(B):
        # Fused input transform: relu(scale*x + shift); identity affine skipped.
        xb = x_ref[b]
        if apply_affine:
            xb = xb * scale_ref[...] + shift_ref[...]
        xn = jnp.maximum(xb, 0.0)
        if xn.dtype != compute_dtype:
            xn = xn.astype(compute_dtype)

        # Zero only the halo border (interior is fully overwritten below).
        # Do NOT convert this to a one-time pl.when(step==0) init: under
        # "parallel" semantics the second core never executes step 0.
        xpad_ref[0:1, :, :] = z_row
        xpad_ref[H + 1:H + 2, :, :] = z_row
        xpad_ref[1:H + 1, 0:_LEFT, :] = z_left
        xpad_ref[1:H + 1, _LEFT + W:Wp, :] = z_right
        # Sublane-aligned interior store (column offset _LEFT is a multiple of 8).
        xpad_ref[1:H + 1, _LEFT:_LEFT + W, :] = xn

        if per_tap:
            # 9 per-tap MXU matmuls accumulated in f32: no lane-axis concatenate,
            # no ~9x im2col slab; each tap already has K = Cin >= 64.
            acc = None
            for kh in range(3):
                for kw in range(3):
                    c = jnp.dot(tap_patch(kh, kw), w_ref[kh * 3 + kw],
                                preferred_element_type=jnp.float32)
                    acc = c if acc is None else acc + c
            y = acc
        else:
            # Very shallow Cin: one matmul with K = 9*Cin keeps the MXU busy.
            patches = jnp.concatenate(
                [tap_patch(kh, kw) for kh in range(3) for kw in range(3)], axis=-1)
            y = jnp.dot(patches, w_ref[...], preferred_element_type=jnp.float32)

        # Channel-minor store: matmul result written directly, no reshape.
        y_ref[b] = y.astype(y_ref.dtype)

        # Per-image BN partials; row reductions go to the MXU (ones-row dots).
        s = jnp.dot(ones_row, y, preferred_element_type=jnp.float32)        # (1, C)
        d = y - s * inv_n
        ssc = jnp.dot(ones_row, d * d, preferred_element_type=jnp.float32)  # (1, C)
        stats_ref[b] = jnp.concatenate([s, ssc], axis=0)                    # (2, C)


def conv3x3_bn_fused(x, in_scale, in_shift, w_hwio, *, Ho, Wo, stride,
                     apply_affine, block_batch=1, use_bf16=False):
    # x: (N, H, W, Cin) f32; in_scale/in_shift: (1, Cin); w_hwio: (3,3,Cin,Cout).
    # Returns: y (N, Ho*Wo, Cout) channel-minor, stats (N, 2, Cout).
    N, H, W, Cin = x.shape
    Cout = w_hwio.shape[3]
    per_tap = Cin >= 64
    wdt = jnp.bfloat16 if use_bf16 else jnp.float32   # bf16 cast done HBM-side
    if per_tap:
        w = w_hwio.reshape(9, Cin, Cout).astype(wdt)
        w_spec = pl.BlockSpec((9, Cin, Cout), lambda n: (0, 0, 0))
    else:
        w = w_hwio.reshape(9 * Cin, Cout).astype(wdt)
        w_spec = pl.BlockSpec((9 * Cin, Cout), lambda n: (0, 0))

    B = block_batch
    esz = 2 if use_bf16 else 4
    Wp = W + 2 * _LEFT

    # Honest per-step VMEM estimate: double-buffered blocks + weight + scratch
    # + the in-kernel temporaries (xn, acc, tap patch, optional im2col slab).
    in_blk = B * H * W * Cin * 4
    out_blk = B * Ho * Wo * Cout * 4 + B * 2 * Cout * 4
    w_bytes = 9 * Cin * Cout * esz
    xpad_bytes = (H + 2) * Wp * Cin * esz
    temps = (H * W * Cin * 4 + 2 * Ho * Wo * Cout * 4 + Ho * Wo * Cin * esz
             + (0 if per_tap else Ho * Wo * 9 * Cin * esz))
    need = 2 * (in_blk + out_blk + w_bytes) + xpad_bytes + temps

    cost = pl.CostEstimate(
        flops=int(2 * N * Ho * Wo * (9 * Cin + 2) * Cout + 3 * N * H * W * Cin),
        transcendentals=0,
        bytes_accessed=int(4 * (N * H * W * Cin + N * Ho * Wo * Cout + 2 * N * Cout)
                           + 9 * Cin * Cout * esz),
    )

    kernel = functools.partial(_conv_bn_in_kernel, Ho=Ho, Wo=Wo, stride=stride,
                               apply_affine=apply_affine, per_tap=per_tap)
    y, stats = pl.pallas_call(
        kernel,
        grid=(N // B,),
        in_specs=[
            pl.BlockSpec((B, H, W, Cin), lambda n: (n, 0, 0, 0)),
            pl.BlockSpec((1, Cin), lambda n: (0, 0)),
            pl.BlockSpec((1, Cin), lambda n: (0, 0)),
            w_spec,
        ],
        out_specs=(
            pl.BlockSpec((B, Ho * Wo, Cout), lambda n: (n, 0, 0)),
            pl.BlockSpec((B, 2, Cout), lambda n: (n, 0, 0)),
        ),
        out_shape=(
            jax.ShapeDtypeStruct((N, Ho * Wo, Cout), jnp.float32),
            jax.ShapeDtypeStruct((N, 2, Cout), jnp.float32),
        ),
        scratch_shapes=[pltpu.VMEM((H + 2, Wp, Cin), wdt)],
        compiler_params=_compiler_params(need),
        cost_estimate=cost,
    )(x, in_scale, in_shift, w)
    return y, stats


# ----------------------------------------------------------------------------
# Kernel B: fused BN2 affine + SE (gap -> fc1 -> relu -> fc2 -> sigmoid -> scale)
# in one sweep over the channel-minor activation.
# ----------------------------------------------------------------------------
def _bn_se_kernel(y_ref, stats_ref, scale_ref, shift_ref,
                  w1_ref, b1_ref, w2_ref, b2_ref, o_ref, *, inv_hw):
    B = stats_ref.shape[0]
    scale = scale_ref[...]
    shift = shift_ref[...]
    w1 = w1_ref[...]
    b1 = b1_ref[...]
    w2 = w2_ref[...]
    b2 = b2_ref[...]
    for b in range(B):
        st = stats_ref[b]                                           # (2, C)
        # spatial mean of bn2(conv2_out) == scale2 * spatial_mean + shift2
        pooled = st[0:1, :] * inv_hw * scale + shift                # (1, C)
        h = jnp.maximum(
            jnp.dot(pooled, w1, preferred_element_type=jnp.float32) + b1, 0.0)
        g = jax.nn.sigmoid(
            jnp.dot(h, w2, preferred_element_type=jnp.float32) + b2)  # (1, C)
        # (1, C) broadcasts naturally over the lane axis of (Ho*Wo, C): no tiles.
        o_ref[b] = (y_ref[b] * (scale * g) + shift * g).astype(o_ref.dtype)


def bn_se_fused(y, stats, scale, shift, w1, b1, w2, b2, *, n_pix, block_batch=1):
    # y: (N, Ho*Wo, C); stats: (N, 2, C); scale/shift: (1, C);
    # w1: (C, mid), b1: (1, mid), w2: (mid, C), b2: (1, C).
    N, P, C = y.shape
    mid = w1.shape[1]
    B = block_batch
    inv_hw = 1.0 / float(n_pix)

    need = (2 * (2 * B * P * C * 4 + B * 2 * C * 4)
            + 4 * (2 * C + C * mid + mid + mid * C + C)
            + B * P * C * 4)
    cost = pl.CostEstimate(
        flops=int(3 * N * P * C + 4 * N * C * mid + 8 * N * C),
        transcendentals=int(N * C),
        bytes_accessed=int(4 * (2 * N * P * C + 2 * N * C + 2 * C
                                + C * mid + mid + mid * C + C)),
    )

    kernel = functools.partial(_bn_se_kernel, inv_hw=inv_hw)
    return pl.pallas_call(
        kernel,
        grid=(N // B,),
        in_specs=[
            pl.BlockSpec((B, P, C), lambda n: (n, 0, 0)),
            pl.BlockSpec((B, 2, C), lambda n: (n, 0, 0)),
            pl.BlockSpec((1, C), lambda n: (0, 0)),
            pl.BlockSpec((1, C), lambda n: (0, 0)),
            pl.BlockSpec((C, mid), lambda n: (0, 0)),
            pl.BlockSpec((1, mid), lambda n: (0, 0)),
            pl.BlockSpec((mid, C), lambda n: (0, 0)),
            pl.BlockSpec((1, C), lambda n: (0, 0)),
        ],
        out_specs=pl.BlockSpec((B, P, C), lambda n: (n, 0, 0)),
        out_shape=jax.ShapeDtypeStruct((N, P, C), jnp.float32),
        compiler_params=_compiler_params(need),
        cost_estimate=cost,
    )(y, stats, scale, shift, w1, b1, w2, b2)


# ----------------------------------------------------------------------------
# ResidualPath forward.
# ----------------------------------------------------------------------------
def residual_path_forward_nhwc(x, params, *, stride=1, eps=1e-5, use_bf16=False):
    # NHWC end-to-end compute path (no layout round-trips).
    x = x.astype(jnp.float32)
    N, H, W, Cin = x.shape
    C = params["conv1_w"].shape[3]
    mid = params["fc1_w"].shape[1]
    Ho = (H - 1) // stride + 1          # 3x3, pad 1
    Wo = (W - 1) // stride + 1
    n_pix = Ho * Wo

    # --- conv1 (input ReLU fused; identity affine skipped in-kernel) ----------
    ones_c = jnp.ones((1, Cin), jnp.float32)
    zeros_c = jnp.zeros((1, Cin), jnp.float32)
    B1 = _pick_block_batch(N, 4 * (H * W * Cin + n_pix * C))
    y1, st1 = conv3x3_bn_fused(x, ones_c, zeros_c, params["conv1_w"],
                               Ho=Ho, Wo=Wo, stride=stride, apply_affine=False,
                               block_batch=B1, use_bf16=use_bf16)

    # BN1 affine (training-mode batch stats, biased variance): tiny (C,) math.
    mean1, var1 = _combine_bn_stats(st1, n_pix)
    inv1 = jax.lax.rsqrt(var1 + eps)
    scale1 = (params["bn1_g"] * inv1).reshape(1, C)
    shift1 = (params["bn1_b"] - params["bn1_g"] * inv1 * mean1).reshape(1, C)

    # --- conv2 with BN1 affine + ReLU fused into its input read ---------------
    # TODO(synk): optionally exchange y1/y2 in bf16 between kernels (stats stay f32).
    y1_nhwc = y1.reshape(N, Ho, Wo, C)          # metadata-only reshape
    B2 = _pick_block_batch(N, 4 * (2 * n_pix * C))
    y2, st2 = conv3x3_bn_fused(y1_nhwc, scale1, shift1, params["conv2_w"],
                               Ho=Ho, Wo=Wo, stride=1, apply_affine=True,
                               block_batch=B2, use_bf16=use_bf16)

    mean2, var2 = _combine_bn_stats(st2, n_pix)
    inv2 = jax.lax.rsqrt(var2 + eps)
    scale2 = (params["bn2_g"] * inv2).reshape(1, C)
    shift2 = (params["bn2_b"] - params["bn2_g"] * inv2 * mean2).reshape(1, C)

    # --- fused BN2 + SE rescale pass ------------------------------------------
    out = bn_se_fused(y2, st2, scale2, shift2,
                      params["fc1_w"], params["fc1_b"].reshape(1, mid),
                      params["fc2_w"], params["fc2_b"].reshape(1, C),
                      n_pix=n_pix, block_batch=B2)
    return out.reshape(N, Ho, Wo, C)


def residual_path_forward(x_nchw, params, *, stride=1, eps=1e-5, use_bf16=False):
    # NCHW compatibility shim (matches the PyTorch module's layout). In an
    # NHWC pipeline, call residual_path_forward_nhwc directly and these two
    # transposes (extra HBM passes) disappear.
    x = jnp.transpose(x_nchw, (0, 2, 3, 1))
    out = residual_path_forward_nhwc(x, params, stride=stride, eps=eps,
                                     use_bf16=use_bf16)
    return jnp.transpose(out, (0, 3, 1, 2))


# ----------------------------------------------------------------------------
# Pure-JAX reference (mirrors PyTorch training-mode forward) + params.
# ----------------------------------------------------------------------------
def residual_path_reference(x_nchw, params, *, stride=1, eps=1e-5):
    x = jnp.transpose(x_nchw, (0, 2, 3, 1)).astype(jnp.float32)

    def conv(inp, w, s):
        return jax.lax.conv_general_dilated(
            inp, w, window_strides=(s, s), padding=((1, 1), (1, 1)),
            dimension_numbers=("NHWC", "HWIO", "NHWC"))

    def bn(inp, g, b, relu):
        mean = jnp.mean(inp, axis=(0, 1, 2))
        var = jnp.mean((inp - mean) ** 2, axis=(0, 1, 2))
        out = (inp - mean) * jax.lax.rsqrt(var + eps) * g + b
        return jnp.maximum(out, 0.0) if relu else out

    y = conv(jnp.maximum(x, 0.0), params["conv1_w"], stride)
    y = bn(y, params["bn1_g"], params["bn1_b"], True)
    y = conv(y, params["conv2_w"], 1)
    y = bn(y, params["bn2_g"], params["bn2_b"], False)
    pooled = jnp.mean(y, axis=(1, 2))
    h = jnp.maximum(pooled @ params["fc1_w"] + params["fc1_b"], 0.0)
    s = jax.nn.sigmoid(h @ params["fc2_w"] + params["fc2_b"])
    y = y * s[:, None, None, :]
    return jnp.transpose(y, (0, 3, 1, 2))


def make_params(key, in_channels, out_channels):
    mid = out_channels // 4  # se_reduction = 4
    ks = jax.random.split(key, 8)
    return {
        # conv weights stored HWIO (kh, kw, cin, cout)
        "conv1_w": 0.1 * jax.random.normal(ks[0], (3, 3, in_channels, out_channels), jnp.float32),
        "conv2_w": 0.1 * jax.random.normal(ks[1], (3, 3, out_channels, out_channels), jnp.float32),
        "bn1_g": 1.0 + 0.1 * jax.random.normal(ks[2], (out_channels,), jnp.float32),
        "bn1_b": 0.1 * jax.random.normal(ks[3], (out_channels,), jnp.float32),
        "bn2_g": 1.0 + 0.1 * jax.random.normal(ks[4], (out_channels,), jnp.float32),
        "bn2_b": 0.1 * jax.random.normal(ks[5], (out_channels,), jnp.float32),
        # Linear weights stored (in, out) == PyTorch weight.T
        "fc1_w": 0.2 * jax.random.normal(ks[6], (out_channels, mid), jnp.float32),
        "fc1_b": jnp.zeros((mid,), jnp.float32),
        "fc2_w": 0.2 * jax.random.normal(ks[7], (mid, out_channels), jnp.float32),
        "fc2_b": jnp.zeros((out_channels,), jnp.float32),
    }


if __name__ == "__main__":
    key = jax.random.PRNGKey(0)
    k_x, k_p = jax.random.split(key)

    batch, in_channels, out_channels, hw, stride = 2, 4, 8, 16, 1
    x = jax.random.normal(k_x, (batch, in_channels, hw, hw), jnp.float32)   # NCHW
    params = make_params(k_p, in_channels, out_channels)

    fwd = jax.jit(lambda xx, pp: residual_path_forward(xx, pp, stride=stride))
    out = jax.block_until_ready(fwd(x, params))

    ref = jax.block_until_ready(residual_path_reference(x, params, stride=stride))
    assert out.shape == (batch, out_channels, hw // stride, hw // stride), out.shape
    err = float(jnp.max(jnp.abs(out - ref)))
    assert err < 2e-4, f"max abs err {err}"
    print("KERNEL_OK")
</pallas_src>

<mosaic_0001>
module attributes {stable_mosaic.version = 11 : i64} {
  func.func @_conv_bn_in_kernel(%arg0: i32, %arg1: memref<1x16x16x4xf32, #tpu.memory_space<vmem>>, %arg2: memref<1x4xf32, #tpu.memory_space<vmem>>, %arg3: memref<1x4xf32, #tpu.memory_space<vmem>>, %arg4: memref<36x8xf32, #tpu.memory_space<vmem>>, %arg5: memref<1x256x8xf32, #tpu.memory_space<vmem>>, %arg6: memref<1x2x8xf32, #tpu.memory_space<vmem>>, %arg7: memref<18x32x4xf32, #tpu.memory_space<vmem>>) attributes {dimension_semantics = [#tpu.dimension_semantics<parallel>], iteration_bounds = array<i64: 2>, scalar_prefetch = 0 : i64, scratch_operands = 1 : i64, tpu.core_type = #tpu.core_type<tc>, window_params = [{transform_indices = @transform_0, window_bounds = array<i64: 1, 16, 16, 4>}, {pipeline_mode = #tpu.pipeline_mode<synchronous>, transform_indices = @transform_1, window_bounds = array<i64: 1, 4>}, {pipeline_mode = #tpu.pipeline_mode<synchronous>, transform_indices = @transform_2, window_bounds = array<i64: 1, 4>}, {pipeline_mode = #tpu.pipeline_mode<synchronous>, transform_indices = @transform_3, window_bounds = array<i64: 36, 8>}, {transform_indices = @transform_4, window_bounds = array<i64: 1, 256, 8>}, {transform_indices = @transform_5, window_bounds = array<i64: 1, 2, 8>}]} {
    %cst = arith.constant 1.000000e+00 : f32
    %0 = vector.broadcast %cst : f32 to vector<1x256xf32>
    %cst_0 = arith.constant 0.000000e+00 : f32
    %1 = vector.broadcast %cst_0 : f32 to vector<1x32x4xf32>
    %cst_1 = arith.constant 0.000000e+00 : f32
    %2 = vector.broadcast %cst_1 : f32 to vector<16x8x4xf32>
    %cst_2 = arith.constant 0.000000e+00 : f32
    %3 = vector.broadcast %cst_2 : f32 to vector<16x8x4xf32>
    %c0 = arith.constant 0 : index
    %c0_3 = arith.constant 0 : index
    %c0_4 = arith.constant 0 : index
    %c0_5 = arith.constant 0 : index
    %4 = vector.load %arg1[%c0, %c0_3, %c0_4, %c0_5] : memref<1x16x16x4xf32, #tpu.memory_space<vmem>>, vector<1x16x16x4xf32>
    %5 = vector.shape_cast %4 : vector<1x16x16x4xf32> to vector<16x16x4xf32>
    %cst_6 = arith.constant 0.000000e+00 : f32
    %6 = vector.broadcast %cst_6 : f32 to vector<16x16x4xf32>
    %7 = arith.maximumf %5, %6 : vector<16x16x4xf32>
    %c0_7 = arith.constant 0 : index
    %c0_8 = arith.constant 0 : index
    %c0_9 = arith.constant 0 : index
    %8 = vector.load %arg7[%c0_7, %c0_8, %c0_9] : memref<18x32x4xf32, #tpu.memory_space<vmem>>, vector<1x32x4xf32>
    tpu.vector_store %arg7[%c0_7, %c0_8, %c0_9], %1 {strides = array<i32>} : memref<18x32x4xf32, #tpu.memory_space<vmem>>, vector<1x32x4xf32>,
    %c17 = arith.constant 17 : index
    %c0_10 = arith.constant 0 : index
    %c0_11 = arith.constant 0 : index
    %9 = vector.load %arg7[%c17, %c0_10, %c0_11] : memref<18x32x4xf32, #tpu.memory_space<vmem>>, vector<1x32x4xf32>
    tpu.vector_store %arg7[%c17, %c0_10, %c0_11], %1 {strides = array<i32>} : memref<18x32x4xf32, #tpu.memory_space<vmem>>, vector<1x32x4xf32>,
    %c1 = arith.constant 1 : index
    %c0_12 = arith.constant 0 : index
    %c0_13 = arith.constant 0 : index
    %10 = vector.load %arg7[%c1, %c0_12, %c0_13] : memref<18x32x4xf32, #tpu.memory_space<vmem>>, vector<16x8x4xf32>
    tpu.vector_store %arg7[%c1, %c0_12, %c0_13], %2 {strides = array<i32>} : memref<18x32x4xf32, #tpu.memory_space<vmem>>, vector<16x8x4xf32>,
    %c1_14 = arith.constant 1 : index
    %c24 = arith.constant 24 : index
    %c0_15 = arith.constant 0 : index
    %11 = vector.load %arg7[%c1_14, %c24, %c0_15] : memref<18x32x4xf32, #tpu.memory_space<vmem>>, vector<16x8x4xf32>
    tpu.vector_store %arg7[%c1_14, %c24, %c0_15], %3 {strides = array<i32>} : memref<18x32x4xf32, #tpu.memory_space<vmem>>, vector<16x8x4xf32>,
    %c1_16 = arith.constant 1 : index
    %c8 = arith.constant 8 : index
    %c0_17 = arith.constant 0 : index
    %12 = vector.load %arg7[%c1_16, %c8, %c0_17] : memref<18x32x4xf32, #tpu.memory_space<vmem>>, vector<16x16x4xf32>
    tpu.vector_store %arg7[%c1_16, %c8, %c0_17], %7 {strides = array<i32>} : memref<18x32x4xf32, #tpu.memory_space<vmem>>, vector<16x16x4xf32>,
    %c0_18 = arith.constant 0 : index
    %c7 = arith.constant 7 : index
    %c0_19 = arith.constant 0 : index
    %13 = vector.load %arg7[%c0_18, %c7, %c0_19] : memref<18x32x4xf32, #tpu.memory_space<vmem>>, vector<16x16x4xf32>
    %14 = vector.shape_cast %13 : vector<16x16x4xf32> to vector<256x4xf32>
    %c0_20 = arith.constant 0 : index
    %c8_21 = arith.constant 8 : index
    %c0_22 = arith.constant 0 : index
    %15 = vector.load %arg7[%c0_20, %c8_21, %c0_22] : memref<18x32x4xf32, #tpu.memory_space<vmem>>, vector<16x16x4xf32>
    %16 = vector.shape_cast %15 : vector<16x16x4xf32> to vector<256x4xf32>
    %c0_23 = arith.constant 0 : index
    %c9 = arith.constant 9 : index
    %c0_24 = arith.constant 0 : index
    %17 = vector.load %arg7[%c0_23, %c9, %c0_24] : memref<18x32x4xf32, #tpu.memory_space<vmem>>, vector<16x16x4xf32>
    %18 = vector.shape_cast %17 : vector<16x16x4xf32> to vector<256x4xf32>
    %c1_25 = arith.constant 1 : index
    %c7_26 = arith.constant 7 : index
    %c0_27 = arith.constant 0 : index
    %19 = vector.load %arg7[%c1_25, %c7_26, %c0_27] : memref<18x32x4xf32, #tpu.memory_space<vmem>>, vector<16x16x4xf32>
    %20 = vector.shape_cast %19 : vector<16x16x4xf32> to vector<256x4xf32>
    %c1_28 = arith.constant 1 : index
    %c8_29 = arith.constant 8 : index
    %c0_30 = arith.constant 0 : index
    %21 = vector.load %arg7[%c1_28, %c8_29, %c0_30] : memref<18x32x4xf32, #tpu.memory_space<vmem>>, vector<16x16x4xf32>
    %22 = vector.shape_cast %21 : vector<16x16x4xf32> to vector<256x4xf32>
    %c1_31 = arith.constant 1 : index
    %c9_32 = arith.constant 9 : index
    %c0_33 = arith.constant 0 : index
    %23 = vector.load %arg7[%c1_31, %c9_32, %c0_33] : memref<18x32x4xf32, #tpu.memory_space<vmem>>, vector<16x16x4xf32>
    %24 = vector.shape_cast %23 : vector<16x16x4xf32> to vector<256x4xf32>
    %c2 = arith.constant 2 : index
    %c7_34 = arith.constant 7 : index
    %c0_35 = arith.constant 0 : index
    %25 = vector.load %arg7[%c2, %c7_34, %c0_35] : memref<18x32x4xf32, #tpu.memory_space<vmem>>, vector<16x16x4xf32>
    %26 = vector.shape_cast %25 : vector<16x16x4xf32> to vector<256x4xf32>
    %c2_36 = arith.constant 2 : index
    %c8_37 = arith.constant 8 : index
    %c0_38 = arith.constant 0 : index
    %27 = vector.load %arg7[%c2_36, %c8_37, %c0_38] : memref<18x32x4xf32, #tpu.memory_space<vmem>>, vector<16x16x4xf32>
    %28 = vector.shape_cast %27 : vector<16x16x4xf32> to vector<256x4xf32>
    %c2_39 = arith.constant 2 : index
    %c9_40 = arith.constant 9 : index
    %c0_41 = arith.constant 0 : index
    %29 = vector.load %arg7[%c2_39, %c9_40, %c0_41] : memref<18x32x4xf32, #tpu.memory_space<vmem>>, vector<16x16x4xf32>
    %30 = vector.shape_cast %29 : vector<16x16x4xf32> to vector<256x4xf32>
    %31 = tpu.concatenate %14, %16, %18, %20, %22, %24, %26, %28, %30 in 1 : vector<256x4xf32>, vector<256x4xf32>, vector<256x4xf32>, vector<256x4xf32>, vector<256x4xf32>, vector<256x4xf32>, vector<256x4xf32>, vector<256x4xf32>, vector<256x4xf32> -> vector<256x36xf32>
    %c0_42 = arith.constant 0 : index
    %c0_43 = arith.constant 0 : index
    %32 = vector.load %arg4[%c0_42, %c0_43] : memref<36x8xf32, #tpu.memory_space<vmem>>, vector<36x8xf32>
    %cst_44 = arith.constant dense<0.000000e+00> : vector<256x8xf32>
    %33 = tpu.matmul %31, %32, %cst_44 {dimension_numbers = #tpu.dot_dimension_numbers<[1], [0], [0], [1], [0, 0, 1, 1], [], []>} : vector<256x36xf32>, vector<36x8xf32>, vector<256x8xf32> -> vector<256x8xf32>
    %c0_45 = arith.constant 0 : index
    %c0_46 = arith.constant 0 : index
    %c0_47 = arith.constant 0 : index
    %34 = vector.load %arg5[%c0_45, %c0_46, %c0_47] : memref<1x256x8xf32, #tpu.memory_space<vmem>>, vector<1x256x8xf32>
    %35 = vector.shape_cast %34 : vector<1x256x8xf32> to vector<256x8xf32>
    %36 = vector.shape_cast %33 : vector<256x8xf32> to vector<1x256x8xf32>
    tpu.vector_store %arg5[%c0_45, %c0_46, %c0_47], %36 {strides = array<i32>} : memref<1x256x8xf32, #tpu.memory_space<vmem>>, vector<1x256x8xf32>,
    %cst_48 = arith.constant dense<0.000000e+00> : vector<1x8xf32>
    %37 = tpu.matmul %0, %33, %cst_48 {dimension_numbers = #tpu.dot_dimension_numbers<[1], [0], [0], [1], [0, 0, 1, 1], [], []>} : vector<1x256xf32>, vector<256x8xf32>, vector<1x8xf32> -> vector<1x8xf32>
    %cst_49 = arith.constant 3.906250e-03 : f32
    %38 = vector.broadcast %cst_49 : f32 to vector<1x8xf32>
    %39 = arith.mulf %37, %38 : vector<1x8xf32>
    %40 = vector.broadcast %39 : vector<1x8xf32> to vector<256x8xf32>
    %41 = arith.subf %33, %40 : vector<256x8xf32>
    %42 = arith.mulf %41, %41 : vector<256x8xf32>
    %cst_50 = arith.constant dense<0.000000e+00> : vector<1x8xf32>
    %43 = tpu.matmul %0, %42, %cst_50 {dimension_numbers = #tpu.dot_dimension_numbers<[1], [0], [0], [1], [0, 0, 1, 1], [], []>} : vector<1x256xf32>, vector<256x8xf32>, vector<1x8xf32> -> vector<1x8xf32>
    %44 = tpu.concatenate %37, %43 in 0 : vector<1x8xf32>, vector<1x8xf32> -> vector<2x8xf32>
    %c0_51 = arith.constant 0 : index
    %c0_52 = arith.constant 0 : index
    %c0_53 = arith.constant 0 : index
    %45 = vector.load %arg6[%c0_51, %c0_52, %c0_53] : memref<1x2x8xf32, #tpu.memory_space<vmem>>, vector<1x2x8xf32>
    %46 = vector.shape_cast %45 : vector<1x2x8xf32> to vector<2x8xf32>
    %47 = vector.shape_cast %44 : vector<2x8xf32> to vector<1x2x8xf32>
    tpu.vector_store %arg6[%c0_51, %c0_52, %c0_53], %47 {strides = array<i32>} : memref<1x2x8xf32, #tpu.memory_space<vmem>>, vector<1x2x8xf32>,
    return
  }
  func.func @transform_0(%arg0: i32) -> (i32, i32, i32, i32) {
    %c0_i32 = arith.constant 0 : i32
    %c0_i32_0 = arith.constant 0 : i32
    %c0_i32_1 = arith.constant 0 : i32
    %c0_i32_2 = arith.constant 0 : i32
    return %arg0, %c0_i32, %c0_i32_0, %c0_i32_1 : i32, i32, i32, i32
  }
  func.func @transform_1(%arg0: i32) -> (i32, i32) {
    %c0_i32 = arith.constant 0 : i32
    %c0_i32_0 = arith.constant 0 : i32
    %c0_i32_1 = arith.constant 0 : i32
    return %c0_i32, %c0_i32_0 : i32, i32
  }
  func.func @transform_2(%arg0: i32) -> (i32, i32) {
    %c0_i32 = arith.constant 0 : i32
    %c0_i32_0 = arith.constant 0 : i32
    %c0_i32_1 = arith.constant 0 : i32
    return %c0_i32, %c0_i32_0 : i32, i32
  }
  func.func @transform_3(%arg0: i32) -> (i32, i32) {
    %c0_i32 = arith.constant 0 : i32
    %c0_i32_0 = arith.constant 0 : i32
    %c0_i32_1 = arith.constant 0 : i32
    return %c0_i32, %c0_i32_0 : i32, i32
  }
  func.func @transform_4(%arg0: i32) -> (i32, i32, i32) {
    %c0_i32 = arith.constant 0 : i32
    %c0_i32_0 = arith.constant 0 : i32
    %c0_i32_1 = arith.constant 0 : i32
    return %arg0, %c0_i32, %c0_i32_0 : i32, i32, i32
  }
  func.func @transform_5(%arg0: i32) -> (i32, i32, i32) {
    %c0_i32 = arith.constant 0 : i32
    %c0_i32_0 = arith.constant 0 : i32
    %c0_i32_1 = arith.constant 0 : i32
    return %arg0, %c0_i32, %c0_i32_0 : i32, i32, i32
  }
}

module attributes {stable_mosaic.version = 11 : i64} {
  func.func @_conv_bn_in_kernel(%arg0: i32, %arg1: memref<1x16x16x8xf32, #tpu.memory_space<vmem>>, %arg2: memref<1x8xf32, #tpu.memory_space<vmem>>, %arg3: memref<1x8xf32, #tpu.memory_space<vmem>>, %arg4: memref<72x8xf32, #tpu.memory_space<vmem>>, %arg5: memref<1x256x8xf32, #tpu.memory_space<vmem>>, %arg6: memref<1x2x8xf32, #tpu.memory_space<vmem>>, %arg7: memref<18x32x8xf32, #tpu.memory_space<vmem>>) attributes {dimension_semantics = [#tpu.dimension_semantics<parallel>], iteration_bounds = array<i64: 2>, scalar_prefetch = 0 : i64, scratch_operands = 1 : i64, tpu.core_type = #tpu.core_type<tc>, window_params = [{transform_indices = @transform_0, window_bounds = array<i64: 1, 16, 16, 8>}, {pipeline_mode = #tpu.pipeline_mode<synchronous>, transform_indices = @transform_1, window_bounds = array<i64: 1, 8>}, {pipeline_mode = #tpu.pipeline_mode<synchronous>, transform_indices = @transform_2, window_bounds = array<i64: 1, 8>}, {pipeline_mode = #tpu.pipeline_mode<synchronous>, transform_indices = @transform_3, window_bounds = array<i64: 72, 8>}, {transform_indices = @transform_4, window_bounds = array<i64: 1, 256, 8>}, {transform_indices = @transform_5, window_bounds = array<i64: 1, 2, 8>}]} {
    %cst = arith.constant 1.000000e+00 : f32
    %0 = vector.broadcast %cst : f32 to vector<1x256xf32>
    %cst_0 = arith.constant 0.000000e+00 : f32
    %1 = vector.broadcast %cst_0 : f32 to vector<1x32x8xf32>
    %cst_1 = arith.constant 0.000000e+00 : f32
    %2 = vector.broadcast %cst_1 : f32 to vector<16x8x8xf32>
    %cst_2 = arith.constant 0.000000e+00 : f32
    %3 = vector.broadcast %cst_2 : f32 to vector<16x8x8xf32>
    %c0 = arith.constant 0 : index
    %c0_3 = arith.constant 0 : index
    %c0_4 = arith.constant 0 : index
    %c0_5 = arith.constant 0 : index
    %4 = vector.load %arg1[%c0, %c0_3, %c0_4, %c0_5] : memref<1x16x16x8xf32, #tpu.memory_space<vmem>>, vector<1x16x16x8xf32>
    %5 = vector.shape_cast %4 : vector<1x16x16x8xf32> to vector<16x16x8xf32>
    %c0_6 = arith.constant 0 : index
    %c0_7 = arith.constant 0 : index
    %6 = vector.load %arg2[%c0_6, %c0_7] : memref<1x8xf32, #tpu.memory_space<vmem>>, vector<1x8xf32>
    %7 = vector.shape_cast %6 : vector<1x8xf32> to vector<1x1x8xf32>
    %8 = vector.broadcast %7 : vector<1x1x8xf32> to vector<16x16x8xf32>
    %9 = arith.mulf %5, %8 : vector<16x16x8xf32>
    %c0_8 = arith.constant 0 : index
    %c0_9 = arith.constant 0 : index
    %10 = vector.load %arg3[%c0_8, %c0_9] : memref<1x8xf32, #tpu.memory_space<vmem>>, vector<1x8xf32>
    %11 = vector.shape_cast %10 : vector<1x8xf32> to vector<1x1x8xf32>
    %12 = vector.broadcast %11 : vector<1x1x8xf32> to vector<16x16x8xf32>
    %13 = arith.addf %9, %12 : vector<16x16x8xf32>
    %cst_10 = arith.constant 0.000000e+00 : f32
    %14 = vector.broadcast %cst_10 : f32 to vector<16x16x8xf32>
    %15 = arith.maximumf %13, %14 : vector<16x16x8xf32>
    %c0_11 = arith.constant 0 : index
    %c0_12 = arith.constant 0 : index
    %c0_13 = arith.constant 0 : index
    %16 = vector.load %arg7[%c0_11, %c0_12, %c0_13] : memref<18x32x8xf32, #tpu.memory_space<vmem>>, vector<1x32x8xf32>
    tpu.vector_store %arg7[%c0_11, %c0_12, %c0_13], %1 {strides = array<i32>} : memref<18x32x8xf32, #tpu.memory_space<vmem>>, vector<1x32x8xf32>,
    %c17 = arith.constant 17 : index
    %c0_14 = arith.constant 0 : index
    %c0_15 = arith.constant 0 : index
    %17 = vector.load %arg7[%c17, %c0_14, %c0_15] : memref<18x32x8xf32, #tpu.memory_space<vmem>>, vector<1x32x8xf32>
    tpu.vector_store %arg7[%c17, %c0_14, %c0_15], %1 {strides = array<i32>} : memref<18x32x8xf32, #tpu.memory_space<vmem>>, vector<1x32x8xf32>,
    %c1 = arith.constant 1 : index
    %c0_16 = arith.constant 0 : index
    %c0_17 = arith.constant 0 : index
    %18 = vector.load %arg7[%c1, %c0_16, %c0_17] : memref<18x32x8xf32, #tpu.memory_space<vmem>>, vector<16x8x8xf32>
    tpu.vector_store %arg7[%c1, %c0_16, %c0_17], %2 {strides = array<i32>} : memref<18x32x8xf32, #tpu.memory_space<vmem>>, vector<16x8x8xf32>,
    %c1_18 = arith.constant 1 : index
    %c24 = arith.constant 24 : index
    %c0_19 = arith.constant 0 : index
    %19 = vector.load %arg7[%c1_18, %c24, %c0_19] : memref<18x32x8xf32, #tpu.memory_space<vmem>>, vector<16x8x8xf32>
    tpu.vector_store %arg7[%c1_18, %c24, %c0_19], %3 {strides = array<i32>} : memref<18x32x8xf32, #tpu.memory_space<vmem>>, vector<16x8x8xf32>,
    %c1_20 = arith.constant 1 : index
    %c8 = arith.constant 8 : index
    %c0_21 = arith.constant 0 : index
    %20 = vector.load %arg7[%c1_20, %c8, %c0_21] : memref<18x32x8xf32, #tpu.memory_space<vmem>>, vector<16x16x8xf32>
    tpu.vector_store %arg7[%c1_20, %c8, %c0_21], %15 {strides = array<i32>} : memref<18x32x8xf32, #tpu.memory_space<vmem>>, vector<16x16x8xf32>,
    %c0_22 = arith.constant 0 : index
    %c7 = arith.constant 7 : index
    %c0_23 = arith.constant 0 : index
    %21 = vector.load %arg7[%c0_22, %c7, %c0_23] : memref<18x32x8xf32, #tpu.memory_space<vmem>>, vector<16x16x8xf32>
    %22 = vector.shape_cast %21 : vector<16x16x8xf32> to vector<256x8xf32>
    %c0_24 = arith.constant 0 : index
    %c8_25 = arith.constant 8 : index
    %c0_26 = arith.constant 0 : index
    %23 = vector.load %arg7[%c0_24, %c8_25, %c0_26] : memref<18x32x8xf32, #tpu.memory_space<vmem>>, vector<16x16x8xf32>
    %24 = vector.shape_cast %23 : vector<16x16x8xf32> to vector<256x8xf32>
    %c0_27 = arith.constant 0 : index
    %c9 = arith.constant 9 : index
    %c0_28 = arith.constant 0 : index
    %25 = vector.load %arg7[%c0_27, %c9, %c0_28] : memref<18x32x8xf32, #tpu.memory_space<vmem>>, vector<16x16x8xf32>
    %26 = vector.shape_cast %25 : vector<16x16x8xf32> to vector<256x8xf32>
    %c1_29 = arith.constant 1 : index
    %c7_30 = arith.constant 7 : index
    %c0_31 = arith.constant 0 : index
    %27 = vector.load %arg7[%c1_29, %c7_30, %c0_31] : memref<18x32x8xf32, #tpu.memory_space<vmem>>, vector<16x16x8xf32>
    %28 = vector.shape_cast %27 : vector<16x16x8xf32> to vector<256x8xf32>
    %c1_32 = arith.constant 1 : index
    %c8_33 = arith.constant 8 : index
    %c0_34 = arith.constant 0 : index
    %29 = vector.load %arg7[%c1_32, %c8_33, %c0_34] : memref<18x32x8xf32, #tpu.memory_space<vmem>>, vector<16x16x8xf32>
    %30 = vector.shape_cast %29 : vector<16x16x8xf32> to vector<256x8xf32>
    %c1_35 = arith.constant 1 : index
    %c9_36 = arith.constant 9 : index
    %c0_37 = arith.constant 0 : index
    %31 = vector.load %arg7[%c1_35, %c9_36, %c0_37] : memref<18x32x8xf32, #tpu.memory_space<vmem>>, vector<16x16x8xf32>
    %32 = vector.shape_cast %31 : vector<16x16x8xf32> to vector<256x8xf32>
    %c2 = arith.constant 2 : index
    %c7_38 = arith.constant 7 : index
    %c0_39 = arith.constant 0 : index
    %33 = vector.load %arg7[%c2, %c7_38, %c0_39] : memref<18x32x8xf32, #tpu.memory_space<vmem>>, vector<16x16x8xf32>
    %34 = vector.shape_cast %33 : vector<16x16x8xf32> to vector<256x8xf32>
    %c2_40 = arith.constant 2 : index
    %c8_41 = arith.constant 8 : index
    %c0_42 = arith.constant 0 : index
    %35 = vector.load %arg7[%c2_40, %c8_41, %c0_42] : memref<18x32x8xf32, #tpu.memory_space<vmem>>, vector<16x16x8xf32>
    %36 = vector.shape_cast %35 : vector<16x16x8xf32> to vector<256x8xf32>
    %c2_43 = arith.constant 2 : index
    %c9_44 = arith.constant 9 : index
    %c0_45 = arith.constant 0 : index
    %37 = vector.load %arg7[%c2_43, %c9_44, %c0_45] : memref<18x32x8xf32, #tpu.memory_space<vmem>>, vector<16x16x8xf32>
    %38 = vector.shape_cast %37 : vector<16x16x8xf32> to vector<256x8xf32>
    %39 = tpu.concatenate %22, %24, %26, %28, %30, %32, %34, %36, %38 in 1 : vector<256x8xf32>, vector<256x8xf32>, vector<256x8xf32>, vector<256x8xf32>, vector<256x8xf32>, vector<256x8xf32>, vector<256x8xf32>, vector<256x8xf32>, vector<256x8xf32> -> vector<256x72xf32>
    %c0_46 = arith.constant 0 : index
    %c0_47 = arith.constant 0 : index
    %40 = vector.load %arg4[%c0_46, %c0_47] : memref<72x8xf32, #tpu.memory_space<vmem>>, vector<72x8xf32>
    %cst_48 = arith.constant dense<0.000000e+00> : vector<256x8xf32>
    %41 = tpu.matmul %39, %40, %cst_48 {dimension_numbers = #tpu.dot_dimension_numbers<[1], [0], [0], [1], [0, 0, 1, 1], [], []>} : vector<256x72xf32>, vector<72x8xf32>, vector<256x8xf32> -> vector<256x8xf32>
    %c0_49 = arith.constant 0 : index
    %c0_50 = arith.constant 0 : index
    %c0_51 = arith.constant 0 : index
    %42 = vector.load %arg5[%c0_49, %c0_50, %c0_51] : memref<1x256x8xf32, #tpu.memory_space<vmem>>, vector<1x256x8xf32>
    %43 = vector.shape_cast %42 : vector<1x256x8xf32> to vector<256x8xf32>
    %44 = vector.shape_cast %41 : vector<256x8xf32> to vector<1x256x8xf32>
    tpu.vector_store %arg5[%c0_49, %c0_50, %c0_51], %44 {strides = array<i32>} : memref<1x256x8xf32, #tpu.memory_space<vmem>>, vector<1x256x8xf32>,
    %cst_52 = arith.constant dense<0.000000e+00> : vector<1x8xf32>
    %45 = tpu.matmul %0, %41, %cst_52 {dimension_numbers = #tpu.dot_dimension_numbers<[1], [0], [0], [1], [0, 0, 1, 1], [], []>} : vector<1x256xf32>, vector<256x8xf32>, vector<1x8xf32> -> vector<1x8xf32>
    %cst_53 = arith.constant 3.906250e-03 : f32
    %46 = vector.broadcast %cst_53 : f32 to vector<1x8xf32>
    %47 = arith.mulf %45, %46 : vector<1x8xf32>
    %48 = vector.broadcast %47 : vector<1x8xf32> to vector<256x8xf32>
    %49 = arith.subf %41, %48 : vector<256x8xf32>
    %50 = arith.mulf %49, %49 : vector<256x8xf32>
    %cst_54 = arith.constant dense<0.000000e+00> : vector<1x8xf32>
    %51 = tpu.matmul %0, %50, %cst_54 {dimension_numbers = #tpu.dot_dimension_numbers<[1], [0], [0], [1], [0, 0, 1, 1], [], []>} : vector<1x256xf32>, vector<256x8xf32>, vector<1x8xf32> -> vector<1x8xf32>
    %52 = tpu.concatenate %45, %51 in 0 : vector<1x8xf32>, vector<1x8xf32> -> vector<2x8xf32>
    %c0_55 = arith.constant 0 : index
    %c0_56 = arith.constant 0 : index
    %c0_57 = arith.constant 0 : index
    %53 = vector.load %arg6[%c0_55, %c0_56, %c0_57] : memref<1x2x8xf32, #tpu.memory_space<vmem>>, vector<1x2x8xf32>
    %54 = vector.shape_cast %53 : vector<1x2x8xf32> to vector<2x8xf32>
    %55 = vector.shape_cast %52 : vector<2x8xf32> to vector<1x2x8xf32>
    tpu.vector_store %arg6[%c0_55, %c0_56, %c0_57], %55 {strides = array<i32>} : memref<1x2x8xf32, #tpu.memory_space<vmem>>, vector<1x2x8xf32>,
    return
  }
  func.func @transform_0(%arg0: i32) -> (i32, i32, i32, i32) {
    %c0_i32 = arith.constant 0 : i32
    %c0_i32_0 = arith.constant 0 : i32
    %c0_i32_1 = arith.constant 0 : i32
    %c0_i32_2 = arith.constant 0 : i32
    return %arg0, %c0_i32, %c0_i32_0, %c0_i32_1 : i32, i32, i32, i32
  }
  func.func @transform_1(%arg0: i32) -> (i32, i32) {
    %c0_i32 = arith.constant 0 : i32
    %c0_i32_0 = arith.constant 0 : i32
    %c0_i32_1 = arith.constant 0 : i32
    return %c0_i32, %c0_i32_0 : i32, i32
  }
  func.func @transform_2(%arg0: i32) -> (i32, i32) {
    %c0_i32 = arith.constant 0 : i32
    %c0_i32_0 = arith.constant 0 : i32
    %c0_i32_1 = arith.constant 0 : i32
    return %c0_i32, %c0_i32_0 : i32, i32
  }
  func.func @transform_3(%arg0: i32) -> (i32, i32) {
    %c0_i32 = arith.constant 0 : i32
    %c0_i32_0 = arith.constant 0 : i32
    %c0_i32_1 = arith.constant 0 : i32
    return %c0_i32, %c0_i32_0 : i32, i32
  }
  func.func @transform_4(%arg0: i32) -> (i32, i32, i32) {
    %c0_i32 = arith.constant 0 : i32
    %c0_i32_0 = arith.constant 0 : i32
    %c0_i32_1 = arith.constant 0 : i32
    return %arg0, %c0_i32, %c0_i32_0 : i32, i32, i32
  }
  func.func @transform_5(%arg0: i32) -> (i32, i32, i32) {
    %c0_i32 = arith.constant 0 : i32
    %c0_i32_0 = arith.constant 0 : i32
    %c0_i32_1 = arith.constant 0 : i32
    return %arg0, %c0_i32, %c0_i32_0 : i32, i32, i32
  }
}

module attributes {stable_mosaic.version = 11 : i64} {
  func.func @_bn_se_kernel(%arg0: i32, %arg1: memref<1x256x8xf32, #tpu.memory_space<vmem>>, %arg2: memref<1x2x8xf32, #tpu.memory_space<vmem>>, %arg3: memref<1x8xf32, #tpu.memory_space<vmem>>, %arg4: memref<1x8xf32, #tpu.memory_space<vmem>>, %arg5: memref<8x2xf32, #tpu.memory_space<vmem>>, %arg6: memref<1x2xf32, #tpu.memory_space<vmem>>, %arg7: memref<2x8xf32, #tpu.memory_space<vmem>>, %arg8: memref<1x8xf32, #tpu.memory_space<vmem>>, %arg9: memref<1x256x8xf32, #tpu.memory_space<vmem>>) attributes {dimension_semantics = [#tpu.dimension_semantics<parallel>], iteration_bounds = array<i64: 2>, scalar_prefetch = 0 : i64, scratch_operands = 0 : i64, tpu.core_type = #tpu.core_type<tc>, window_params = [{transform_indices = @transform_0, window_bounds = array<i64: 1, 256, 8>}, {transform_indices = @transform_1, window_bounds = array<i64: 1, 2, 8>}, {pipeline_mode = #tpu.pipeline_mode<synchronous>, transform_indices = @transform_2, window_bounds = array<i64: 1, 8>}, {pipeline_mode = #tpu.pipeline_mode<synchronous>, transform_indices = @transform_3, window_bounds = array<i64: 1, 8>}, {pipeline_mode = #tpu.pipeline_mode<synchronous>, transform_indices = @transform_4, window_bounds = array<i64: 8, 2>}, {pipeline_mode = #tpu.pipeline_mode<synchronous>, transform_indices = @transform_5, window_bounds = array<i64: 1, 2>}, {pipeline_mode = #tpu.pipeline_mode<synchronous>, transform_indices = @transform_6, window_bounds = array<i64: 2, 8>}, {pipeline_mode = #tpu.pipeline_mode<synchronous>, transform_indices = @transform_7, window_bounds = array<i64: 1, 8>}, {transform_indices = @transform_8, window_bounds = array<i64: 1, 256, 8>}]} {
    %c0 = arith.constant 0 : index
    %c0_0 = arith.constant 0 : index
    %0 = vector.load %arg3[%c0, %c0_0] : memref<1x8xf32, #tpu.memory_space<vmem>>, vector<1x8xf32>
    %c0_1 = arith.constant 0 : index
    %c0_2 = arith.constant 0 : index
    %1 = vector.load %arg4[%c0_1, %c0_2] : memref<1x8xf32, #tpu.memory_space<vmem>>, vector<1x8xf32>
    %c0_3 = arith.constant 0 : index
    %c0_4 = arith.constant 0 : index
    %2 = vector.load %arg5[%c0_3, %c0_4] : memref<8x2xf32, #tpu.memory_space<vmem>>, vector<8x2xf32>
    %c0_5 = arith.constant 0 : index
    %c0_6 = arith.constant 0 : index
    %3 = vector.load %arg6[%c0_5, %c0_6] : memref<1x2xf32, #tpu.memory_space<vmem>>, vector<1x2xf32>
    %c0_7 = arith.constant 0 : index
    %c0_8 = arith.constant 0 : index
    %4 = vector.load %arg7[%c0_7, %c0_8] : memref<2x8xf32, #tpu.memory_space<vmem>>, vector<2x8xf32>
    %c0_9 = arith.constant 0 : index
    %c0_10 = arith.constant 0 : index
    %5 = vector.load %arg8[%c0_9, %c0_10] : memref<1x8xf32, #tpu.memory_space<vmem>>, vector<1x8xf32>
    %c0_11 = arith.constant 0 : index
    %c0_12 = arith.constant 0 : index
    %c0_13 = arith.constant 0 : index
    %6 = vector.load %arg2[%c0_11, %c0_12, %c0_13] : memref<1x2x8xf32, #tpu.memory_space<vmem>>, vector<1x2x8xf32>
    %7 = vector.shape_cast %6 : vector<1x2x8xf32> to vector<2x8xf32>
    %8 = vector.extract_strided_slice %7 {offsets = [0, 0], sizes = [1, 8], strides = [1, 1]} : vector<2x8xf32> to vector<1x8xf32>
    %cst = arith.constant 3.906250e-03 : f32
    %9 = vector.broadcast %cst : f32 to vector<1x8xf32>
    %10 = arith.mulf %8, %9 : vector<1x8xf32>
    %11 = arith.mulf %10, %0 : vector<1x8xf32>
    %12 = arith.addf %11, %1 : vector<1x8xf32>
    %cst_14 = arith.constant dense<0.000000e+00> : vector<1x2xf32>
    %13 = tpu.matmul %12, %2, %cst_14 {dimension_numbers = #tpu.dot_dimension_numbers<[1], [0], [0], [1], [0, 0, 1, 1], [], []>} : vector<1x8xf32>, vector<8x2xf32>, vector<1x2xf32> -> vector<1x2xf32>
    %14 = arith.addf %13, %3 : vector<1x2xf32>
    %cst_15 = arith.constant 0.000000e+00 : f32
    %15 = vector.broadcast %cst_15 : f32 to vector<1x2xf32>
    %16 = arith.maximumf %14, %15 : vector<1x2xf32>
    %cst_16 = arith.constant dense<0.000000e+00> : vector<1x8xf32>
    %17 = tpu.matmul %16, %4, %cst_16 {dimension_numbers = #tpu.dot_dimension_numbers<[1], [0], [0], [1], [0, 0, 1, 1], [], []>} : vector<1x2xf32>, vector<2x8xf32>, vector<1x8xf32> -> vector<1x8xf32>
    %18 = arith.addf %17, %5 : vector<1x8xf32>
    %19 = arith.negf %18 : vector<1x8xf32>
    %20 = math.exp %19 : vector<1x8xf32>
    %cst_17 = arith.constant 1.000000e+00 : f32
    %21 = vector.broadcast %cst_17 : f32 to vector<1x8xf32>
    %22 = arith.addf %21, %20 : vector<1x8xf32>
    %23 = arith.divf %21, %22 : vector<1x8xf32>
    %c0_18 = arith.constant 0 : index
    %c0_19 = arith.constant 0 : index
    %c0_20 = arith.constant 0 : index
    %24 = vector.load %arg1[%c0_18, %c0_19, %c0_20] : memref<1x256x8xf32, #tpu.memory_space<vmem>>, vector<1x256x8xf32>
    %25 = vector.shape_cast %24 : vector<1x256x8xf32> to vector<256x8xf32>
    %26 = arith.mulf %0, %23 : vector<1x8xf32>
    %27 = vector.broadcast %26 : vector<1x8xf32> to vector<256x8xf32>
    %28 = arith.mulf %25, %27 : vector<256x8xf32>
    %29 = arith.mulf %1, %23 : vector<1x8xf32>
    %30 = vector.broadcast %29 : vector<1x8xf32> to vector<256x8xf32>
    %31 = arith.addf %28, %30 : vector<256x8xf32>
    %c0_21 = arith.constant 0 : index
    %c0_22 = arith.constant 0 : index
    %c0_23 = arith.constant 0 : index
    %32 = vector.load %arg9[%c0_21, %c0_22, %c0_23] : memref<1x256x8xf32, #tpu.memory_space<vmem>>, vector<1x256x8xf32>
    %33 = vector.shape_cast %32 : vector<1x256x8xf32> to vector<256x8xf32>
    %34 = vector.shape_cast %31 : vector<256x8xf32> to vector<1x256x8xf32>
    tpu.vector_store %arg9[%c0_21, %c0_22, %c0_23], %34 {strides = array<i32>} : memref<1x256x8xf32, #tpu.memory_space<vmem>>, vector<1x256x8xf32>,
    return
  }
  func.func @transform_0(%arg0: i32) -> (i32, i32, i32) {
    %c0_i32 = arith.constant 0 : i32
    %c0_i32_0 = arith.constant 0 : i32
    %c0_i32_1 = arith.constant 0 : i32
    return %arg0, %c0_i32, %c0_i32_0 : i32, i32, i32
  }
  func.func @transform_1(%arg0: i32) -> (i32, i32, i32) {
    %c0_i32 = arith.constant 0 : i32
    %c0_i32_0 = arith.constant 0 : i32
    %c0_i32_1 = arith.constant 0 : i32
    return %arg0, %c0_i32, %c0_i32_0 : i32, i32, i32
  }
  func.func @transform_2(%arg0: i32) -> (i32, i32) {
    %c0_i32 = arith.constant 0 : i32
    %c0_i32_0 = arith.constant 0 : i32
    %c0_i32_1 = arith.constant 0 : i32
    return %c0_i32, %c0_i32_0 : i32, i32
  }
  func.func @transform_3(%arg0: i32) -> (i32, i32) {
    %c0_i32 = arith.constant 0 : i32
    %c0_i32_0 = arith.constant 0 : i32
    %c0_i32_1 = arith.constant 0 : i32
    return %c0_i32, %c0_i32_0 : i32, i32
  }
  func.func @transform_4(%arg0: i32) -> (i32, i32) {
    %c0_i32 = arith.constant 0 : i32
    %c0_i32_0 = arith.constant 0 : i32
    %c0_i32_1 = arith.constant 0 : i32
    return %c0_i32, %c0_i32_0 : i32, i32
  }
  func.func @transform_5(%arg0: i32) -> (i32, i32) {
    %c0_i32 = arith.constant 0 : i32
    %c0_i32_0 = arith.constant 0 : i32
    %c0_i32_1 = arith.constant 0 : i32
    return %c0_i32, %c0_i32_0 : i32, i32
  }
  func.func @transform_6(%arg0: i32) -> (i32, i32) {
    %c0_i32 = arith.constant 0 : i32
    %c0_i32_0 = arith.constant 0 : i32
    %c0_i32_1 = arith.constant 0 : i32
    return %c0_i32, %c0_i32_0 : i32, i32
  }
  func.func @transform_7(%arg0: i32) -> (i32, i32) {
    %c0_i32 = arith.constant 0 : i32
    %c0_i32_0 = arith.constant 0 : i32
    %c0_i32_1 = arith.constant 0 : i32
    return %c0_i32, %c0_i32_0 : i32, i32
  }
  func.func @transform_8(%arg0: i32) -> (i32, i32, i32) {
    %c0_i32 = arith.constant 0 : i32
    %c0_i32_0 = arith.constant 0 : i32
    %c0_i32_1 = arith.constant 0 : i32
    return %arg0, %c0_i32, %c0_i32_0 : i32, i32, i32
  }
}

</mosaic_0001>

<llo_original>
// kernel: _lambda_.5
$region0: #{_lambda_.5}
  #allocation0 [shape = 'u32[]', space=smem, size = 0x4, offset = 0x4, fixed_abs, tag = 'smem constant byte address 0x4 - core index']
  #allocation1 [shape = 'u32[144,128]{1,0:T(1,128)}', space=vmem, size = 0x12000, scoped, tag = 'internal scratch']
  %s0 = inlined_call_operand.vmem [shape: f32[2,256,8], index: 0, kind: input, shape index: {}]
  %s1 = inlined_call_operand.vmem [shape: f32[2,2,8], index: 1, kind: input, shape index: {}]
  %s2 = inlined_call_operand.vmem [shape: f32[1,8], index: 2, kind: input, shape index: {}]
  %s3 = inlined_call_operand.vmem [shape: f32[1,8], index: 3, kind: input, shape index: {}]
  %s4 = inlined_call_operand.vmem [shape: f32[8,2], index: 4, kind: input, shape index: {}]
  %s5 = inlined_call_operand.vmem [shape: f32[1,2], index: 5, kind: input, shape index: {}]
  %s6 = inlined_call_operand.vmem [shape: f32[2,8], index: 6, kind: input, shape index: {}]
  %s7 = inlined_call_operand.vmem [shape: f32[1,8], index: 7, kind: input, shape index: {}]
  %s8 = inlined_call_operand.vmem [shape: f32[2,256,8], index: 8, kind: output, shape index: {}]
  %s9 = sld [smem:[#allocation0]]
  $region65: #{_lambda_.5} parent=0
    _
  %s11 = ssub.s32 1, %s9
  %s12 = scalar_select 0, %s11, %s9
  loop: start=0, step=1, limit=4
  $region2: #{_lambda_.5} parent=0 // loop_pre_header
    _
  $region3: #{_lambda_.5} parent=0 // loop_header
    %s14 = sphi 0, %s18
    %p15 = scmp.ge.s32.totalorder %s14, 4
    %s24 = sphi 0, %s26
    %s27 = sphi 0, %s24
    %s28 = sphi 0, %s27
    %s44 = sphi 0, %s28
    %s50 = sphi 0, %s52
    %s53 = sphi 0, %s50
    %s54 = sphi 0, %s53
    %s70 = sphi 0, %s54
    %s74 = sphi 0, %s74
    %s76 = sphi 0, %s74
    %s77 = sphi 0, %s76
    %s91 = sphi 0, %s77
    %s95 = sphi 0, %s95
    %s97 = sphi 0, %s95
    %s98 = sphi 0, %s97
    %s112 = sphi 0, %s98
    %s116 = sphi 0, %s116
    %s118 = sphi 0, %s116
    %s119 = sphi 0, %s118
    %s133 = sphi 0, %s119
    %s137 = sphi 0, %s137
    %s139 = sphi 0, %s137
    %s140 = sphi 0, %s139
    %s154 = sphi 0, %s140
    %s158 = sphi 0, %s158
    %s160 = sphi 0, %s158
    %s161 = sphi 0, %s160
    %s175 = sphi 0, %s161
    %s179 = sphi 0, %s179
    %s181 = sphi 0, %s179
    %s182 = sphi 0, %s181
    %s196 = sphi 0, %s182
    %s202 = sphi 0, %s204
    %s205 = sphi 0, %s202
    %s206 = sphi 0, %s205
    %s222 = sphi 0, %s206
  $region4: #{_lambda_.5} parent=0 // loop_header_branch
    %17 = sbr.rel (%p15) target = $region8
  $region5: #{_lambda_.5} parent=0 // loop_body
    %s19 = ssub.s32 %s14, 1
    %s20 = ssub.s32 %s14, 2
    %s21 = sadd.s32 %s14, 1
    %s22 = ssub.s32 %s14, %s21
    %p23 = scmp.eq.s32.totalorder %s22, 0
    %s25 = sadd.s32 %s24, 1
    %s26 = scalar_select %p23, %s24, %s25
    %p29 = pneg %p23
    %p30 = scmp.eq.s32.totalorder %s14, 1
    %p31 = por %p29, %p30
    %p32 = scmp.ne.s32.totalorder %s24, %s27
    %p33 = scmp.eq.s32.totalorder %s14, 0
    %p34 = por %p32, %p33
    %p35 = scmp.ne.s32.totalorder %s24, %s27
    %p36 = scmp.eq.s32.totalorder %s19, 1
    %p37 = por %p35, %p36
    %p38 = scmp.ne.s32.totalorder %s27, %s28
    %p39 = scmp.eq.s32.totalorder %s19, 0
    %p40 = por %p38, %p39
    %p41 = scmp.ne.s32.totalorder %s27, %s28
    %p42 = scmp.eq.s32.totalorder %s20, 1
    %p43 = por %p41, %p42
    %p45 = scmp.ne.s32.totalorder %s28, %s44
    %p46 = scmp.eq.s32.totalorder %s20, 0
    %p47 = por %p45, %p46
    %s48 = ssub.s32 %s14, %s21
    %p49 = scmp.eq.s32.totalorder %s48, 0
    %s51 = sadd.s32 %s50, 1
    %s52 = scalar_select %p49, %s50, %s51
    %p55 = pneg %p49
    %p56 = scmp.eq.s32.totalorder %s14, 1
    %p57 = por %p55, %p56
    %p58 = scmp.ne.s32.totalorder %s50, %s53
    %p59 = scmp.eq.s32.totalorder %s14, 0
    %p60 = por %p58, %p59
    %p61 = scmp.ne.s32.totalorder %s50, %s53
    %p62 = scmp.eq.s32.totalorder %s19, 1
    %p63 = por %p61, %p62
    %p64 = scmp.ne.s32.totalorder %s53, %s54
    %p65 = scmp.eq.s32.totalorder %s19, 0
    %p66 = por %p64, %p65
    %p67 = scmp.ne.s32.totalorder %s53, %s54
    %p68 = scmp.eq.s32.totalorder %s20, 1
    %p69 = por %p67, %p68
    %p71 = scmp.ne.s32.totalorder %s54, %s70
    %p72 = scmp.eq.s32.totalorder %s20, 0
    %p73 = por %p71, %p72
    %s75 = sadd.s32 %s74, 1
    %p78 = scmp.eq.s32.totalorder %s14, 1
    %p79 = scmp.ne.s32.totalorder %s74, %s76
    %p80 = scmp.eq.s32.totalorder %s14, 0
    %p81 = por %p79, %p80
    %p82 = scmp.ne.s32.totalorder %s74, %s76
    %p83 = scmp.eq.s32.totalorder %s19, 1
    %p84 = por %p82, %p83
    %p85 = scmp.ne.s32.totalorder %s76, %s77
    %p86 = scmp.eq.s32.totalorder %s19, 0
    %p87 = por %p85, %p86
    %p88 = scmp.ne.s32.totalorder %s76, %s77
    %p89 = scmp.eq.s32.totalorder %s20, 1
    %p90 = por %p88, %p89
    %p92 = scmp.ne.s32.totalorder %s77, %s91
    %p93 = scmp.eq.s32.totalorder %s20, 0
    %p94 = por %p92, %p93
    %s96 = sadd.s32 %s95, 1
    %p99 = scmp.eq.s32.totalorder %s14, 1
    %p100 = scmp.ne.s32.totalorder %s95, %s97
    %p101 = scmp.eq.s32.totalorder %s14, 0
    %p102 = por %p100, %p101
    %p103 = scmp.ne.s32.totalorder %s95, %s97
    %p104 = scmp.eq.s32.totalorder %s19, 1
    %p105 = por %p103, %p104
    %p106 = scmp.ne.s32.totalorder %s97, %s98
    %p107 = scmp.eq.s32.totalorder %s19, 0
    %p108 = por %p106, %p107
    %p109 = scmp.ne.s32.totalorder %s97, %s98
    %p110 = scmp.eq.s32.totalorder %s20, 1
    %p111 = por %p109, %p110
    %p113 = scmp.ne.s32.totalorder %s98, %s112
    %p114 = scmp.eq.s32.totalorder %s20, 0
    %p115 = por %p113, %p114
    %s117 = sadd.s32 %s116, 1
    %p120 = scmp.eq.s32.totalorder %s14, 1
    %p121 = scmp.ne.s32.totalorder %s116, %s118
    %p122 = scmp.eq.s32.totalorder %s14, 0
    %p123 = por %p121, %p122
    %p124 = scmp.ne.s32.totalorder %s116, %s118
    %p125 = scmp.eq.s32.totalorder %s19, 1
    %p126 = por %p124, %p125
    %p127 = scmp.ne.s32.totalorder %s118, %s119
    %p128 = scmp.eq.s32.totalorder %s19, 0
    %p129 = por %p127, %p128
    %p130 = scmp.ne.s32.totalorder %s118, %s119
    %p131 = scmp.eq.s32.totalorder %s20, 1
    %p132 = por %p130, %p131
    %p134 = scmp.ne.s32.totalorder %s119, %s133
    %p135 = scmp.eq.s32.totalorder %s20, 0
    %p136 = por %p134, %p135
    %s138 = sadd.s32 %s137, 1
    %p141 = scmp.eq.s32.totalorder %s14, 1
    %p142 = scmp.ne.s32.totalorder %s137, %s139
    %p143 = scmp.eq.s32.totalorder %s14, 0
    %p144 = por %p142, %p143
    %p145 = scmp.ne.s32.totalorder %s137, %s139
    %p146 = scmp.eq.s32.totalorder %s19, 1
    %p147 = por %p145, %p146
    %p148 = scmp.ne.s32.totalorder %s139, %s140
    %p149 = scmp.eq.s32.totalorder %s19, 0
    %p150 = por %p148, %p149
    %p151 = scmp.ne.s32.totalorder %s139, %s140
    %p152 = scmp.eq.s32.totalorder %s20, 1
    %p153 = por %p151, %p152
    %p155 = scmp.ne.s32.totalorder %s140, %s154
    %p156 = scmp.eq.s32.totalorder %s20, 0
    %p157 = por %p155, %p156
    %s159 = sadd.s32 %s158, 1
    %p162 = scmp.eq.s32.totalorder %s14, 1
    %p163 = scmp.ne.s32.totalorder %s158, %s160
    %p164 = scmp.eq.s32.totalorder %s14, 0
    %p165 = por %p163, %p164
    %p166 = scmp.ne.s32.totalorder %s158, %s160
    %p167 = scmp.eq.s32.totalorder %s19, 1
    %p168 = por %p166, %p167
    %p169 = scmp.ne.s32.totalorder %s160, %s161
    %p170 = scmp.eq.s32.totalorder %s19, 0
    %p171 = por %p169, %p170
    %p172 = scmp.ne.s32.totalorder %s160, %s161
    %p173 = scmp.eq.s32.totalorder %s20, 1
    %p174 = por %p172, %p173
    %p176 = scmp.ne.s32.totalorder %s161, %s175
    %p177 = scmp.eq.s32.totalorder %s20, 0
    %p178 = por %p176, %p177
    %s180 = sadd.s32 %s179, 1
    %p183 = scmp.eq.s32.totalorder %s14, 1
    %p184 = scmp.ne.s32.totalorder %s179, %s181
    %p185 = scmp.eq.s32.totalorder %s14, 0
    %p186 = por %p184, %p185
    %p187 = scmp.ne.s32.totalorder %s179, %s181
    %p188 = scmp.eq.s32.totalorder %s19, 1
    %p189 = por %p187, %p188
    %p190 = scmp.ne.s32.totalorder %s181, %s182
    %p191 = scmp.eq.s32.totalorder %s19, 0
    %p192 = por %p190, %p191
    %p193 = scmp.ne.s32.totalorder %s181, %s182
    %p194 = scmp.eq.s32.totalorder %s20, 1
    %p195 = por %p193, %p194
    %p197 = scmp.ne.s32.totalorder %s182, %s196
    %p198 = scmp.eq.s32.totalorder %s20, 0
    %p199 = por %p197, %p198
    %s200 = ssub.s32 %s14, %s21
    %p201 = scmp.eq.s32.totalorder %s200, 0
    %s203 = sadd.s32 %s202, 1
    %s204 = scalar_select %p201, %s202, %s203
    %p207 = pneg %p201
    %p208 = scmp.eq.s32.totalorder %s14, 1
    %p209 = por %p207, %p208
    %p210 = scmp.ne.s32.totalorder %s202, %s205
    %p211 = scmp.eq.s32.totalorder %s14, 0
    %p212 = por %p210, %p211
    %p213 = scmp.ne.s32.totalorder %s202, %s205
    %p214 = scmp.eq.s32.totalorder %s19, 1
    %p215 = por %p213, %p214
    %p216 = scmp.ne.s32.totalorder %s205, %s206
    %p217 = scmp.eq.s32.totalorder %s19, 0
    %p218 = por %p216, %p217
    %p219 = scmp.ne.s32.totalorder %s205, %s206
    %p220 = scmp.eq.s32.totalorder %s20, 1
    %p221 = por %p219, %p220
    %p223 = scmp.ne.s32.totalorder %s206, %s222
    %p224 = scmp.eq.s32.totalorder %s20, 0
    %p225 = por %p223, %p224
    %p226 = scmp.le.s32.totalorder 1, %s14
    %p227 = scmp.lt.s32.totalorder %s14, 3
    %p228 = pnand %p226, %p227
    %p229 = pneg %p228
    // Predicated region
    $region9: #{_lambda_.5} parent=5 // pred_check
      _
    $region10: #{_lambda_.5} parent=5 // pred_check_branch
      %231 = sbr.rel (%p228) target = $region12
    $region11: #{_lambda_.5} parent=5 // pred_region
      %s232 = ssub.s32 %s14, 1
      // Predicated region
      $region13: #{_lambda_.5} parent=11 // pred_check
        %p233 = pneg %p87
      $region14: #{_lambda_.5} parent=11 // pred_check_branch
        %235 = sbr.rel (%p233) target = $region16
      $region15: #{_lambda_.5} parent=11 // pred_region
        _
      $region16: #{_lambda_.5} parent=11 // pred_fallthru
        _
      // Predicated region
      $region17: #{_lambda_.5} parent=11 // pred_check
        %p236 = pneg %p108
      $region18: #{_lambda_.5} parent=11 // pred_check_branch
        %238 = sbr.rel (%p236) target = $region20
      $region19: #{_lambda_.5} parent=11 // pred_region
        _
      $region20: #{_lambda_.5} parent=11 // pred_fallthru
        _
      // Predicated region
      $region21: #{_lambda_.5} parent=11 // pred_check
        %p239 = pneg %p129
      $region22: #{_lambda_.5} parent=11 // pred_check_branch
        %241 = sbr.rel (%p239) target = $region24
      $region23: #{_lambda_.5} parent=11 // pred_region
        _
      $region24: #{_lambda_.5} parent=11 // pred_fallthru
        _
      // Predicated region
      $region25: #{_lambda_.5} parent=11 // pred_check
        %p242 = pneg %p150
      $region26: #{_lambda_.5} parent=11 // pred_check_branch
        %244 = sbr.rel (%p242) target = $region28
      $region27: #{_lambda_.5} parent=11 // pred_region
        _
      $region28: #{_lambda_.5} parent=11 // pred_fallthru
        _
      // Predicated region
      $region29: #{_lambda_.5} parent=11 // pred_check
        %p245 = pneg %p171
      $region30: #{_lambda_.5} parent=11 // pred_check_branch
        %247 = sbr.rel (%p245) target = $region32
      $region31: #{_lambda_.5} parent=11 // pred_region
        _
      $region32: #{_lambda_.5} parent=11 // pred_fallthru
        _
      // Predicated region
      $region33: #{_lambda_.5} parent=11 // pred_check
        %p248 = pneg %p192
      $region34: #{_lambda_.5} parent=11 // pred_check_branch
        %250 = sbr.rel (%p248) target = $region36
      $region35: #{_lambda_.5} parent=11 // pred_region
        _
      $region36: #{_lambda_.5} parent=11 // pred_fallthru
        _
    $region12: #{_lambda_.5} parent=5 // pred_fallthru
      _
    %p251 = scmp.lt.s32.totalorder %s14, 2
    // Predicated region
    $region37: #{_lambda_.5} parent=5 // pred_check
      %p252 = pneg %p251
    $region38: #{_lambda_.5} parent=5 // pred_check_branch
      %254 = sbr.rel (%p252) target = $region40
    $region39: #{_lambda_.5} parent=5 // pred_region
      // Predicated region
      $region41: #{_lambda_.5} parent=39 // pred_check
        %p255 = pneg %p34
      $region42: #{_lambda_.5} parent=39 // pred_check_branch
        %257 = sbr.rel (%p255) target = $region44
      $region43: #{_lambda_.5} parent=39 // pred_region
        %p258 = scmp.lt.s32.totalorder %s14, 1
        %s259 = scalar_select %p258, %s14, 1
        %s260 = smul.addr %s259, 32
        %s261 = smul.addr %s260, 8
        %s262 = scalar_lea.vmem %s0, %s261
      $region44: #{_lambda_.5} parent=39 // pred_fallthru
        _
      // Predicated region
      $region45: #{_lambda_.5} parent=39 // pred_check
        %p263 = pneg %p60
      $region46: #{_lambda_.5} parent=39 // pred_check_branch
        %265 = sbr.rel (%p263) target = $region48
      $region47: #{_lambda_.5} parent=39 // pred_region
        %p266 = scmp.lt.s32.totalorder %s14, 1
        %s267 = scalar_select %p266, %s14, 1
        %s268 = smul.addr %s267, 2
        %s269 = scalar_lea.vmem %s1, %s268
      $region48: #{_lambda_.5} parent=39 // pred_fallthru
        _
    $region40: #{_lambda_.5} parent=5 // pred_fallthru
      _
    %p270 = scmp.le.s32.totalorder 1, %s14
    %p271 = scmp.lt.s32.totalorder %s14, 3
    %p272 = pnand %p270, %p271
    %p273 = pneg %p272
    // Predicated region
    $region49: #{_lambda_.5} parent=5 // pred_check
      _
    $region50: #{_lambda_.5} parent=5 // pred_check_branch
      %275 = sbr.rel (%p272) target = $region52
    $region51: #{_lambda_.5} parent=5 // pred_region
      %s276 = ssub.s32 %s14, 1
      %p277 = scmp.lt.s32.totalorder %s19, 1
      %s278 = scalar_select %p277, %s19, 1
      %s279 = smul.addr %s278, 32
      %s280 = smul.addr %s279, 8
      %s281 = scalar_lea.vmem %s0, %s280
      %p282 = pneg %p40
      %p283 = pneg %p37
      %p284 = scmp.lt.s32.totalorder %s19, 1
      %s285 = scalar_select %p284, %s19, 1
      %s286 = smul.addr %s285, 2
      %s287 = scalar_lea.vmem %s1, %s286
      %p288 = pneg %p66
      %p289 = pneg %p63
      %p290 = pneg %p87
      %p291 = pneg %p84
      %p292 = pneg %p108
      %p293 = pneg %p105
      %p294 = pneg %p129
      %p295 = pneg %p126
      %p296 = pneg %p150
      %p297 = pneg %p147
      %p298 = pneg %p171
      %p299 = pneg %p168
      %p300 = pneg %p192
      %p301 = pneg %p189
      %p302 = pneg %p218
      %p303 = pneg %p215
      %p304 = scmp.lt.s32.totalorder %s19, 1
      %s305 = scalar_select %p304, %s19, 1
      %s306 = smul.addr %s305, 32
      %s307 = smul.addr %s306, 8
      %s308 = scalar_lea.vmem %s8, %s307
      %p309 = scmp.lt.s32.totalorder %s19, 1
      %s310 = scalar_select %p309, %s19, 1
      %s311 = smul.addr %s310, 32
      %s312 = smul.addr %s311, 8
      %s313 = scalar_lea.vmem %s0, %s312
      %p314 = scmp.lt.s32.totalorder %s19, 1
      %s315 = scalar_select %p314, %s19, 1
      %s316 = smul.addr %s315, 2
      %s317 = scalar_lea.vmem %s1, %s316
      %p318 = scmp.lt.s32.totalorder %s19, 1
      %s319 = scalar_select %p318, %s19, 1
      %s320 = smul.addr %s319, 32
      %s321 = smul.addr %s320, 8
      %s322 = scalar_lea.vmem %s8, %s321
      %v323 = vld [vmem:[%s2] sm:$0x1]
      %v324 = vld [vmem:[%s3] sm:$0x1]
      %v325 = vld [vmem:[%s4] sm:$0xff]
      %v326 = vld [vmem:[%s5] sm:$0x1]
      %v327 = vld [vmem:[%s6] sm:$0x3]
      %v328 = vld [vmem:[%s7] sm:$0x1]
      %v329 = vld [vmem:[%s317] sm:$0x3]
      %v330 = vmul.f32 %v329, 0.00390625
      %v331 = vmul.f32 %v330, %v323
      %v332 = vadd.f32 %v331, %v324
      %vm333 = vcmask 64512
      %v335 = vsel %vm333, %v332, 0
      %337 = vmatprep.subr.mxu0 0.0
      %338 = vmatpush1.msra.mxu0 %v325
      %339 = vmatprep.subr.mxu0 0.0
      %340 = vmatpush1.msra.mxu0 0.0
      %341 = vmatprep.subr.mxu0 0.0
      %342 = vmatpush1.msra.mxu0 0.0
      %343 = vmatprep.subr.mxu0 0.0
      %344 = vmatpush1.msra.mxu0 0.0
      %345 = vmatprep.subr.mxu0 0.0
      %346 = vmatpush1.msra.mxu0 0.0
      %347 = vmatprep.subr.mxu0 0.0
      %348 = vmatpush1.msra.mxu0 0.0
      %349 = vmatprep.subr.mxu0 0.0
      %350 = vmatpush1.msra.mxu0 0.0
      %351 = vmatprep.subr.mxu0 0.0
      %352 = vmatpush1.msra.mxu0 0.0
      %353 = vmatprep.subr.mxu0 0.0
      %354 = vmatpush1.msra.mxu0 0.0
      %355 = vmatprep.subr.mxu0 0.0
      %356 = vmatpush1.msra.mxu0 0.0
      %357 = vmatprep.subr.mxu0 0.0
      %358 = vmatpush1.msra.mxu0 0.0
      %359 = vmatprep.subr.mxu0 0.0
      %360 = vmatpush1.msra.mxu0 0.0
      %361 = vmatprep.subr.mxu0 0.0
      %362 = vmatpush1.msra.mxu0 0.0
      %363 = vmatprep.subr.mxu0 0.0
      %364 = vmatpush1.msra.mxu0 0.0
      %365 = vmatprep.subr.mxu0 0.0
      %366 = vmatpush1.msra.mxu0 0.0
      %367 = vmatprep.subr.mxu0 0.0
      %368 = vmatpush1.msra.mxu0 0.0
      %369 = vmatprep.subr.mxu0 0.0
      %370 = vmatpush1.msra.mxu0 0.0
      %371 = vmatprep.subr.mxu0 0.0
      %372 = vmatpush1.msra.mxu0 0.0
      %373 = vmatprep.subr.mxu0 0.0
      %374 = vmatpush1.msra.mxu0 0.0
      %375 = vmatprep.subr.mxu0 0.0
      %376 = vmatpush1.msra.mxu0 0.0
      %377 = vmatprep.subr.mxu0 0.0
      %378 = vmatpush1.msra.mxu0 0.0
      %379 = vmatprep.subr.mxu0 0.0
      %380 = vmatpush1.msra.mxu0 0.0
      %381 = vmatprep.subr.mxu0 0.0
      %382 = vmatpush1.msra.mxu0 0.0
      %383 = vmatprep.subr.mxu0 0.0
      %384 = vmatpush1.msra.mxu0 0.0
      %385 = vmatprep.subr.mxu0 0.0
      %386 = vmatpush1.msra.mxu0 0.0
      %387 = vmatprep.subr.mxu0 0.0
      %388 = vmatpush1.msra.mxu0 0.0
      %389 = vmatprep.subr.mxu0 0.0
      %390 = vmatpush1.msra.mxu0 0.0
      %391 = vmatprep.subr.mxu0 0.0
      %392 = vmatpush1.msra.mxu0 0.0
      %393 = vmatprep.subr.mxu0 0.0
      %394 = vmatpush1.msra.mxu0 0.0
      %395 = vmatprep.subr.mxu0 0.0
      %396 = vmatpush1.msra.mxu0 0.0
      %397 = vmatprep.subr.mxu0 0.0
      %398 = vmatpush1.msra.mxu0 0.0
      %399 = vmatprep.subr.mxu0 0.0
      %400 = vmatpush1.msra.mxu0 0.0
      %401 = vmatprep.mubr.f32.mxu0 0.0
      %402 = vmatmul.mubr.f32.gmra.mrb[0].mxu0 %v335
      %v403 = vpop.f32.mrb[0].mxu0
      %v404 = vadd.f32 %v326, %v403
      %v405 = vpop.f32.mrb[0].mxu0
      %406 = vdwg.mxu0
      %v407 = vmax.f32 %v404, 0.0
      %vm408 = vcmask 15360
      %v410 = vsel %vm408, %v407, 0
      %vm412 = vcmask 1041408
      %v414 = vsel %vm412, %v327, 0
      %416 = vmatprep.subr.mxu0 0.0
      %417 = vmatpush1.msra.mxu0 %v414
      %418 = vmatprep.subr.mxu0 0.0
      %419 = vmatpush1.msra.mxu0 0.0
      %420 = vmatprep.subr.mxu0 0.0
      %421 = vmatpush1.msra.mxu0 0.0
      %422 = vmatprep.subr.mxu0 0.0
      %423 = vmatpush1.msra.mxu0 0.0
      %424 = vmatprep.subr.mxu0 0.0
      %425 = vmatpush1.msra.mxu0 0.0
      %426 = vmatprep.subr.mxu0 0.0
      %427 = vmatpush1.msra.mxu0 0.0
      %428 = vmatprep.subr.mxu0 0.0
      %429 = vmatpush1.msra.mxu0 0.0
      %430 = vmatprep.subr.mxu0 0.0
      %431 = vmatpush1.msra.mxu0 0.0
      %432 = vmatprep.subr.mxu0 0.0
      %433 = vmatpush1.msra.mxu0 0.0
      %434 = vmatprep.subr.mxu0 0.0
      %435 = vmatpush1.msra.mxu0 0.0
      %436 = vmatprep.subr.mxu0 0.0
      %437 = vmatpush1.msra.mxu0 0.0
      %438 = vmatprep.subr.mxu0 0.0
      %439 = vmatpush1.msra.mxu0 0.0
      %440 = vmatprep.subr.mxu0 0.0
      %441 = vmatpush1.msra.mxu0 0.0
      %442 = vmatprep.subr.mxu0 0.0
      %443 = vmatpush1.msra.mxu0 0.0
      %444 = vmatprep.subr.mxu0 0.0
      %445 = vmatpush1.msra.mxu0 0.0
      %446 = vmatprep.subr.mxu0 0.0
      %447 = vmatpush1.msra.mxu0 0.0
      %448 = vmatprep.subr.mxu0 0.0
      %449 = vmatpush1.msra.mxu0 0.0
      %450 = vmatprep.subr.mxu0 0.0
      %451 = vmatpush1.msra.mxu0 0.0
      %452 = vmatprep.subr.mxu0 0.0
      %453 = vmatpush1.msra.mxu0 0.0
      %454 = vmatprep.subr.mxu0 0.0
      %455 = vmatpush1.msra.mxu0 0.0
      %456 = vmatprep.subr.mxu0 0.0
      %457 = vmatpush1.msra.mxu0 0.0
      %458 = vmatprep.subr.mxu0 0.0
      %459 = vmatpush1.msra.mxu0 0.0
      %460 = vmatprep.subr.mxu0 0.0
      %461 = vmatpush1.msra.mxu0 0.0
      %462 = vmatprep.subr.mxu0 0.0
      %463 = vmatpush1.msra.mxu0 0.0
      %464 = vmatprep.subr.mxu0 0.0
      %465 = vmatpush1.msra.mxu0 0.0
      %466 = vmatprep.subr.mxu0 0.0
      %467 = vmatpush1.msra.mxu0 0.0
      %468 = vmatprep.subr.mxu0 0.0
      %469 = vmatpush1.msra.mxu0 0.0
      %470 = vmatprep.subr.mxu0 0.0
      %471 = vmatpush1.msra.mxu0 0.0
      %472 = vmatprep.subr.mxu0 0.0
      %473 = vmatpush1.msra.mxu0 0.0
      %474 = vmatprep.subr.mxu0 0.0
      %475 = vmatpush1.msra.mxu0 0.0
      %476 = vmatprep.subr.mxu0 0.0
      %477 = vmatpush1.msra.mxu0 0.0
      %478 = vmatprep.subr.mxu0 0.0
      %479 = vmatpush1.msra.mxu0 0.0
      %480 = vmatprep.mubr.f32.mxu0 0.0
      %481 = vmatmul.mubr.f32.gmra.mrb[0].mxu0 %v410
      %v482 = vpop.f32.mrb[0].mxu0
      %v483 = vadd.f32 %v328, %v482
      %v484 = vpop.f32.mrb[0].mxu0
      %485 = vdwg.mxu0
      %v486 = vxor.u32 %v483, 2147483648
      %v487 = vmul.f32 %v486, 1.442695
      %v488 = vpow.pop %v487
      %v489 = vadd.f32 %v488, 1.0
      %v490 = vrcp.pop %v489
      %v491 = vmul.f32 1.0, %v490
      %v492 = vld [vmem:[%s313] sm:$0xff]
      %v493 = vld [vmem:[%s313 + $0x8] sm:$0xff]
      %v494 = vld [vmem:[%s313 + $0x10] sm:$0xff]
      %v495 = vld [vmem:[%s313 + $0x18] sm:$0xff]
      %v496 = vld [vmem:[%s313 + $0x20] sm:$0xff]
      %v497 = vld [vmem:[%s313 + $0x28] sm:$0xff]
      %v498 = vld [vmem:[%s313 + $0x30] sm:$0xff]
      %v499 = vld [vmem:[%s313 + $0x38] sm:$0xff]
      %v500 = vld [vmem:[%s313 + $0x40] sm:$0xff]
      %v501 = vld [vmem:[%s313 + $0x48] sm:$0xff]
      %v502 = vld [vmem:[%s313 + $0x50] sm:$0xff]
      %v503 = vld [vmem:[%s313 + $0x58] sm:$0xff]
      %v504 = vld [vmem:[%s313 + $0x60] sm:$0xff]
      %v505 = vld [vmem:[%s313 + $0x68] sm:$0xff]
      %v506 = vld [vmem:[%s313 + $0x70] sm:$0xff]
      %v507 = vld [vmem:[%s313 + $0x78] sm:$0xff]
      %v508 = vld [vmem:[%s313 + $0x80] sm:$0xff]
      %v509 = vld [vmem:[%s313 + $0x88] sm:$0xff]
      %v510 = vld [vmem:[%s313 + $0x90] sm:$0xff]
      %v511 = vld [vmem:[%s313 + $0x98] sm:$0xff]
      %v512 = vld [vmem:[%s313 + $0xa0] sm:$0xff]
      %v513 = vld [vmem:[%s313 + $0xa8] sm:$0xff]
      %v514 = vld [vmem:[%s313 + $0xb0] sm:$0xff]
      %v515 = vld [vmem:[%s313 + $0xb8] sm:$0xff]
      %v516 = vld [vmem:[%s313 + $0xc0] sm:$0xff]
      %v517 = vld [vmem:[%s313 + $0xc8] sm:$0xff]
      %v518 = vld [vmem:[%s313 + $0xd0] sm:$0xff]
      %v519 = vld [vmem:[%s313 + $0xd8] sm:$0xff]
      %v520 = vld [vmem:[%s313 + $0xe0] sm:$0xff]
      %v521 = vld [vmem:[%s313 + $0xe8] sm:$0xff]
      %v522 = vld [vmem:[%s313 + $0xf0] sm:$0xff]
      %v523 = vld [vmem:[%s313 + $0xf8] sm:$0xff]
      %v524 = vmul.f32 %v323, %v491
      %v526 = vlaneseq
      %v527 = vshrl.u32 %v526, 7
      %v528 = vsub.s32 0, %v527
      %v529 = vrot.slane %v524, %v528
      %v531 = vmul.f32 %v492, %v529
      %v532 = vmul.f32 %v493, %v529
      %v533 = vmul.f32 %v494, %v529
      %v534 = vmul.f32 %v495, %v529
      %v535 = vmul.f32 %v496, %v529
      %v536 = vmul.f32 %v497, %v529
      %v537 = vmul.f32 %v498, %v529
      %v538 = vmul.f32 %v499, %v529
      %v539 = vmul.f32 %v500, %v529
      %v540 = vmul.f32 %v501, %v529
      %v541 = vmul.f32 %v502, %v529
      %v542 = vmul.f32 %v503, %v529
      %v543 = vmul.f32 %v504, %v529
      %v544 = vmul.f32 %v505, %v529
      %v545 = vmul.f32 %v506, %v529
      %v546 = vmul.f32 %v507, %v529
      %v547 = vmul.f32 %v508, %v529
      %v548 = vmul.f32 %v509, %v529
      %v549 = vmul.f32 %v510, %v529
      %v550 = vmul.f32 %v511, %v529
      %v551 = vmul.f32 %v512, %v529
      %v552 = vmul.f32 %v513, %v529
      %v553 = vmul.f32 %v514, %v529
      %v554 = vmul.f32 %v515, %v529
      %v555 = vmul.f32 %v516, %v529
      %v556 = vmul.f32 %v517, %v529
      %v557 = vmul.f32 %v518, %v529
      %v558 = vmul.f32 %v519, %v529
      %v559 = vmul.f32 %v520, %v529
      %v560 = vmul.f32 %v521, %v529
      %v561 = vmul.f32 %v522, %v529
      %v562 = vmul.f32 %v523, %v529
      %v563 = vmul.f32 %v324, %v491
      %v565 = vlaneseq
      %v566 = vshrl.u32 %v565, 7
      %v567 = vsub.s32 0, %v566
      %v568 = vrot.slane %v563, %v567
      %v570 = vadd.f32 %v531, %v568
      %v571 = vadd.f32 %v532, %v568
      %v572 = vadd.f32 %v533, %v568
      %v573 = vadd.f32 %v534, %v568
      %v574 = vadd.f32 %v535, %v568
      %v575 = vadd.f32 %v536, %v568
      %v576 = vadd.f32 %v537, %v568
      %v577 = vadd.f32 %v538, %v568
      %v578 = vadd.f32 %v539, %v568
      %v579 = vadd.f32 %v540, %v568
      %v580 = vadd.f32 %v541, %v568
      %v581 = vadd.f32 %v542, %v568
      %v582 = vadd.f32 %v543, %v568
      %v583 = vadd.f32 %v544, %v568
      %v584 = vadd.f32 %v545, %v568
      %v585 = vadd.f32 %v546, %v568
      %v586 = vadd.f32 %v547, %v568
      %v587 = vadd.f32 %v548, %v568
      %v588 = vadd.f32 %v549, %v568
      %v589 = vadd.f32 %v550, %v568
      %v590 = vadd.f32 %v551, %v568
      %v591 = vadd.f32 %v552, %v568
      %v592 = vadd.f32 %v553, %v568
      %v593 = vadd.f32 %v554, %v568
      %v594 = vadd.f32 %v555, %v568
      %v595 = vadd.f32 %v556, %v568
      %v596 = vadd.f32 %v557, %v568
      %v597 = vadd.f32 %v558, %v568
      %v598 = vadd.f32 %v559, %v568
      %v599 = vadd.f32 %v560, %v568
      %v600 = vadd.f32 %v561, %v568
      %v601 = vadd.f32 %v562, %v568
      %602 = vst.msk [vmem:[%s322] sm:$0xff] %vm333, %v570
      %603 = vst.msk [vmem:[%s322 + $0x8] sm:$0xff] %vm333, %v571
      %604 = vst.msk [vmem:[%s322 + $0x10] sm:$0xff] %vm333, %v572
      %605 = vst.msk [vmem:[%s322 + $0x18] sm:$0xff] %vm333, %v573
      %606 = vst.msk [vmem:[%s322 + $0x20] sm:$0xff] %vm333, %v574
      %607 = vst.msk [vmem:[%s322 + $0x28] sm:$0xff] %vm333, %v575
      %608 = vst.msk [vmem:[%s322 + $0x30] sm:$0xff] %vm333, %v576
      %609 = vst.msk [vmem:[%s322 + $0x38] sm:$0xff] %vm333, %v577
      %610 = vst.msk [vmem:[%s322 + $0x40] sm:$0xff] %vm333, %v578
      %611 = vst.msk [vmem:[%s322 + $0x48] sm:$0xff] %vm333, %v579
      %612 = vst.msk [vmem:[%s322 + $0x50] sm:$0xff] %vm333, %v580
      %613 = vst.msk [vmem:[%s322 + $0x58] sm:$0xff] %vm333, %v581
      %614 = vst.msk [vmem:[%s322 + $0x60] sm:$0xff] %vm333, %v582
      %615 = vst.msk [vmem:[%s322 + $0x68] sm:$0xff] %vm333, %v583
      %616 = vst.msk [vmem:[%s322 + $0x70] sm:$0xff] %vm333, %v584
      %617 = vst.msk [vmem:[%s322 + $0x78] sm:$0xff] %vm333, %v585
      %618 = vst.msk [vmem:[%s322 + $0x80] sm:$0xff] %vm333, %v586
      %619 = vst.msk [vmem:[%s322 + $0x88] sm:$0xff] %vm333, %v587
      %620 = vst.msk [vmem:[%s322 + $0x90] sm:$0xff] %vm333, %v588
      %621 = vst.msk [vmem:[%s322 + $0x98] sm:$0xff] %vm333, %v589
      %622 = vst.msk [vmem:[%s322 + $0xa0] sm:$0xff] %vm333, %v590
      %623 = vst.msk [vmem:[%s322 + $0xa8] sm:$0xff] %vm333, %v591
      %624 = vst.msk [vmem:[%s322 + $0xb0] sm:$0xff] %vm333, %v592
      %625 = vst.msk [vmem:[%s322 + $0xb8] sm:$0xff] %vm333, %v593
      %626 = vst.msk [vmem:[%s322 + $0xc0] sm:$0xff] %vm333, %v594
      %627 = vst.msk [vmem:[%s322 + $0xc8] sm:$0xff] %vm333, %v595
      %628 = vst.msk [vmem:[%s322 + $0xd0] sm:$0xff] %vm333, %v596
      %629 = vst.msk [vmem:[%s322 + $0xd8] sm:$0xff] %vm333, %v597
      %630 = vst.msk [vmem:[%s322 + $0xe0] sm:$0xff] %vm333, %v598
      %631 = vst.msk [vmem:[%s322 + $0xe8] sm:$0xff] %vm333, %v599
      %632 = vst.msk [vmem:[%s322 + $0xf0] sm:$0xff] %vm333, %v600
      %633 = vst.msk [vmem:[%s322 + $0xf8] sm:$0xff] %vm333, %v601
      %p634 = scmp.lt.s32.totalorder %s19, 1
      %s635 = scalar_select %p634, %s19, 1
      %s636 = smul.addr %s635, 32
      %s637 = smul.addr %s636, 8
      %s638 = scalar_lea.vmem %s8, %s637
      // Predicated region
      $region53: #{_lambda_.5} parent=51 // pred_check
        %p639 = pneg %p215
      $region54: #{_lambda_.5} parent=51 // pred_check_branch
        %641 = sbr.rel (%p639) target = $region56
      $region55: #{_lambda_.5} parent=51 // pred_region
        _
      $region56: #{_lambda_.5} parent=51 // pred_fallthru
        _
    $region52: #{_lambda_.5} parent=5 // pred_fallthru
      _
    %p642 = scmp.le.s32.totalorder 2, %s14
    // Predicated region
    $region57: #{_lambda_.5} parent=5 // pred_check
      %p643 = pneg %p642
    $region58: #{_lambda_.5} parent=5 // pred_check_branch
      %645 = sbr.rel (%p643) target = $region60
    $region59: #{_lambda_.5} parent=5 // pred_region
      %s646 = ssub.s32 %s14, 2
      // Predicated region
      $region61: #{_lambda_.5} parent=59 // pred_check
        %p647 = pneg %p221
      $region62: #{_lambda_.5} parent=59 // pred_check_branch
        %649 = sbr.rel (%p647) target = $region64
      $region63: #{_lambda_.5} parent=59 // pred_region
        %p650 = scmp.lt.s32.totalorder %s20, 1
        %s651 = scalar_select %p650, %s20, 1
        %s652 = smul.addr %s651, 32
        %s653 = smul.addr %s652, 8
        %s654 = scalar_lea.vmem %s8, %s653
      $region64: #{_lambda_.5} parent=59 // pred_fallthru
        _
    $region60: #{_lambda_.5} parent=5 // pred_fallthru
      _
  $region6: #{_lambda_.5} parent=0 // loop_footer
    %s18 = sadd.s32 1, %s14
  $region7: #{_lambda_.5} parent=0 // loop_footer_branch
    %13 = sbr.rel target = $region3
  $region8: #{_lambda_.5} parent=0 // loop_exit
    _

// kernel: _lambda_.3
$region0: #{_lambda_.3}
  #allocation0 [shape = 'u32[]', space=smem, size = 0x4, offset = 0x4, fixed_abs, tag = 'smem constant byte address 0x4 - core index']
  #allocation1 [shape = 'u32[144,128]{1,0:T(1,128)}', space=vmem, size = 0x12000, scoped, tag = 'internal scratch']
  #allocation2 [shape = 'f32[18,32,4]{2,1,0:T(8,128)}', space=vmem, size = 0x48000, scoped, tag = 'scratch operand']
  %s0 = inlined_call_operand.vmem [shape: f32[2,16,16,4], index: 0, kind: input, shape index: {}]
  %s1 = inlined_call_operand.vmem [shape: f32[1,4], index: 1, kind: input, shape index: {}]
  %s2 = inlined_call_operand.vmem [shape: f32[1,4], index: 2, kind: input, shape index: {}]
  %s3 = inlined_call_operand.vmem [shape: f32[36,8], index: 3, kind: input, shape index: {}]
  %s4 = inlined_call_operand.vmem [shape: f32[2,256,8], index: 4, kind: output, shape index: {0}]
  %s5 = inlined_call_operand.vmem [shape: f32[2,2,8], index: 5, kind: output, shape index: {1}]
  %6 = xla_tuple %s4, %s5
  %s7 = sld [smem:[#allocation0]]
  $region57: #{_lambda_.3} parent=0
    _
  %s9 = ssub.s32 1, %s7
  %s10 = scalar_select 0, %s9, %s7
  loop: start=0, step=1, limit=4
  $region2: #{_lambda_.3} parent=0 // loop_pre_header
    _
  $region3: #{_lambda_.3} parent=0 // loop_header
    %s12 = sphi 0, %s16
    %p13 = scmp.ge.s32.totalorder %s12, 4
    %s22 = sphi 0, %s24
    %s25 = sphi 0, %s22
    %s26 = sphi 0, %s25
    %s42 = sphi 0, %s26
    %s46 = sphi 0, %s46
    %s48 = sphi 0, %s46
    %s49 = sphi 0, %s48
    %s63 = sphi 0, %s49
    %s67 = sphi 0, %s67
    %s69 = sphi 0, %s67
    %s70 = sphi 0, %s69
    %s84 = sphi 0, %s70
    %s88 = sphi 0, %s88
    %s90 = sphi 0, %s88
    %s91 = sphi 0, %s90
    %s105 = sphi 0, %s91
    %s111 = sphi 0, %s113
    %s114 = sphi 0, %s111
    %s115 = sphi 0, %s114
    %s131 = sphi 0, %s115
    %s137 = sphi 0, %s139
    %s140 = sphi 0, %s137
    %s141 = sphi 0, %s140
    %s157 = sphi 0, %s141
  $region4: #{_lambda_.3} parent=0 // loop_header_branch
    %15 = sbr.rel (%p13) target = $region8
  $region5: #{_lambda_.3} parent=0 // loop_body
    %s17 = ssub.s32 %s12, 1
    %s18 = ssub.s32 %s12, 2
    %s19 = sadd.s32 %s12, 1
    %s20 = ssub.s32 %s12, %s19
    %p21 = scmp.eq.s32.totalorder %s20, 0
    %s23 = sadd.s32 %s22, 1
    %s24 = scalar_select %p21, %s22, %s23
    %p27 = pneg %p21
    %p28 = scmp.eq.s32.totalorder %s12, 1
    %p29 = por %p27, %p28
    %p30 = scmp.ne.s32.totalorder %s22, %s25
    %p31 = scmp.eq.s32.totalorder %s12, 0
    %p32 = por %p30, %p31
    %p33 = scmp.ne.s32.totalorder %s22, %s25
    %p34 = scmp.eq.s32.totalorder %s17, 1
    %p35 = por %p33, %p34
    %p36 = scmp.ne.s32.totalorder %s25, %s26
    %p37 = scmp.eq.s32.totalorder %s17, 0
    %p38 = por %p36, %p37
    %p39 = scmp.ne.s32.totalorder %s25, %s26
    %p40 = scmp.eq.s32.totalorder %s18, 1
    %p41 = por %p39, %p40
    %p43 = scmp.ne.s32.totalorder %s26, %s42
    %p44 = scmp.eq.s32.totalorder %s18, 0
    %p45 = por %p43, %p44
    %s47 = sadd.s32 %s46, 1
    %p50 = scmp.eq.s32.totalorder %s12, 1
    %p51 = scmp.ne.s32.totalorder %s46, %s48
    %p52 = scmp.eq.s32.totalorder %s12, 0
    %p53 = por %p51, %p52
    %p54 = scmp.ne.s32.totalorder %s46, %s48
    %p55 = scmp.eq.s32.totalorder %s17, 1
    %p56 = por %p54, %p55
    %p57 = scmp.ne.s32.totalorder %s48, %s49
    %p58 = scmp.eq.s32.totalorder %s17, 0
    %p59 = por %p57, %p58
    %p60 = scmp.ne.s32.totalorder %s48, %s49
    %p61 = scmp.eq.s32.totalorder %s18, 1
    %p62 = por %p60, %p61
    %p64 = scmp.ne.s32.totalorder %s49, %s63
    %p65 = scmp.eq.s32.totalorder %s18, 0
    %p66 = por %p64, %p65
    %s68 = sadd.s32 %s67, 1
    %p71 = scmp.eq.s32.totalorder %s12, 1
    %p72 = scmp.ne.s32.totalorder %s67, %s69
    %p73 = scmp.eq.s32.totalorder %s12, 0
    %p74 = por %p72, %p73
    %p75 = scmp.ne.s32.totalorder %s67, %s69
    %p76 = scmp.eq.s32.totalorder %s17, 1
    %p77 = por %p75, %p76
    %p78 = scmp.ne.s32.totalorder %s69, %s70
    %p79 = scmp.eq.s32.totalorder %s17, 0
    %p80 = por %p78, %p79
    %p81 = scmp.ne.s32.totalorder %s69, %s70
    %p82 = scmp.eq.s32.totalorder %s18, 1
    %p83 = por %p81, %p82
    %p85 = scmp.ne.s32.totalorder %s70, %s84
    %p86 = scmp.eq.s32.totalorder %s18, 0
    %p87 = por %p85, %p86
    %s89 = sadd.s32 %s88, 1
    %p92 = scmp.eq.s32.totalorder %s12, 1
    %p93 = scmp.ne.s32.totalorder %s88, %s90
    %p94 = scmp.eq.s32.totalorder %s12, 0
    %p95 = por %p93, %p94
    %p96 = scmp.ne.s32.totalorder %s88, %s90
    %p97 = scmp.eq.s32.totalorder %s17, 1
    %p98 = por %p96, %p97
    %p99 = scmp.ne.s32.totalorder %s90, %s91
    %p100 = scmp.eq.s32.totalorder %s17, 0
    %p101 = por %p99, %p100
    %p102 = scmp.ne.s32.totalorder %s90, %s91
    %p103 = scmp.eq.s32.totalorder %s18, 1
    %p104 = por %p102, %p103
    %p106 = scmp.ne.s32.totalorder %s91, %s105
    %p107 = scmp.eq.s32.totalorder %s18, 0
    %p108 = por %p106, %p107
    %s109 = ssub.s32 %s12, %s19
    %p110 = scmp.eq.s32.totalorder %s109, 0
    %s112 = sadd.s32 %s111, 1
    %s113 = scalar_select %p110, %s111, %s112
    %p116 = pneg %p110
    %p117 = scmp.eq.s32.totalorder %s12, 1
    %p118 = por %p116, %p117
    %p119 = scmp.ne.s32.totalorder %s111, %s114
    %p120 = scmp.eq.s32.totalorder %s12, 0
    %p121 = por %p119, %p120
    %p122 = scmp.ne.s32.totalorder %s111, %s114
    %p123 = scmp.eq.s32.totalorder %s17, 1
    %p124 = por %p122, %p123
    %p125 = scmp.ne.s32.totalorder %s114, %s115
    %p126 = scmp.eq.s32.totalorder %s17, 0
    %p127 = por %p125, %p126
    %p128 = scmp.ne.s32.totalorder %s114, %s115
    %p129 = scmp.eq.s32.totalorder %s18, 1
    %p130 = por %p128, %p129
    %p132 = scmp.ne.s32.totalorder %s115, %s131
    %p133 = scmp.eq.s32.totalorder %s18, 0
    %p134 = por %p132, %p133
    %s135 = ssub.s32 %s12, %s19
    %p136 = scmp.eq.s32.totalorder %s135, 0
    %s138 = sadd.s32 %s137, 1
    %s139 = scalar_select %p136, %s137, %s138
    %p142 = pneg %p136
    %p143 = scmp.eq.s32.totalorder %s12, 1
    %p144 = por %p142, %p143
    %p145 = scmp.ne.s32.totalorder %s137, %s140
    %p146 = scmp.eq.s32.totalorder %s12, 0
    %p147 = por %p145, %p146
    %p148 = scmp.ne.s32.totalorder %s137, %s140
    %p149 = scmp.eq.s32.totalorder %s17, 1
    %p150 = por %p148, %p149
    %p151 = scmp.ne.s32.totalorder %s140, %s141
    %p152 = scmp.eq.s32.totalorder %s17, 0
    %p153 = por %p151, %p152
    %p154 = scmp.ne.s32.totalorder %s140, %s141
    %p155 = scmp.eq.s32.totalorder %s18, 1
    %p156 = por %p154, %p155
    %p158 = scmp.ne.s32.totalorder %s141, %s157
    %p159 = scmp.eq.s32.totalorder %s18, 0
    %p160 = por %p158, %p159
    %p161 = scmp.le.s32.totalorder 1, %s12
    %p162 = scmp.lt.s32.totalorder %s12, 3
    %p163 = pnand %p161, %p162
    %p164 = pneg %p163
    // Predicated region
    $region9: #{_lambda_.3} parent=5 // pred_check
      _
    $region10: #{_lambda_.3} parent=5 // pred_check_branch
      %166 = sbr.rel (%p163) target = $region12
    $region11: #{_lambda_.3} parent=5 // pred_region
      %s167 = ssub.s32 %s12, 1
      // Predicated region
      $region13: #{_lambda_.3} parent=11 // pred_check
        %p168 = pneg %p59
      $region14: #{_lambda_.3} parent=11 // pred_check_branch
        %170 = sbr.rel (%p168) target = $region16
      $region15: #{_lambda_.3} parent=11 // pred_region
        _
      $region16: #{_lambda_.3} parent=11 // pred_fallthru
        _
      // Predicated region
      $region17: #{_lambda_.3} parent=11 // pred_check
        %p171 = pneg %p80
      $region18: #{_lambda_.3} parent=11 // pred_check_branch
        %173 = sbr.rel (%p171) target = $region20
      $region19: #{_lambda_.3} parent=11 // pred_region
        _
      $region20: #{_lambda_.3} parent=11 // pred_fallthru
        _
      // Predicated region
      $region21: #{_lambda_.3} parent=11 // pred_check
        %p174 = pneg %p101
      $region22: #{_lambda_.3} parent=11 // pred_check_branch
        %176 = sbr.rel (%p174) target = $region24
      $region23: #{_lambda_.3} parent=11 // pred_region
        _
      $region24: #{_lambda_.3} parent=11 // pred_fallthru
        _
    $region12: #{_lambda_.3} parent=5 // pred_fallthru
      _
    %p177 = scmp.lt.s32.totalorder %s12, 2
    // Predicated region
    $region25: #{_lambda_.3} parent=5 // pred_check
      %p178 = pneg %p177
    $region26: #{_lambda_.3} parent=5 // pred_check_branch
      %180 = sbr.rel (%p178) target = $region28
    $region27: #{_lambda_.3} parent=5 // pred_region
      // Predicated region
      $region29: #{_lambda_.3} parent=27 // pred_check
        %p181 = pneg %p32
      $region30: #{_lambda_.3} parent=27 // pred_check_branch
        %183 = sbr.rel (%p181) target = $region32
      $region31: #{_lambda_.3} parent=27 // pred_region
        %p184 = scmp.lt.s32.totalorder %s12, 1
        %s185 = scalar_select %p184, %s12, 1
        %s186 = smul.addr %s185, 32
        %s187 = smul.addr %s186, 8
        %s188 = scalar_lea.vmem %s0, %s187
      $region32: #{_lambda_.3} parent=27 // pred_fallthru
        _
    $region28: #{_lambda_.3} parent=5 // pred_fallthru
      _
    %p189 = scmp.le.s32.totalorder 1, %s12
    %p190 = scmp.lt.s32.totalorder %s12, 3
    %p191 = pnand %p189, %p190
    %p192 = pneg %p191
    // Predicated region
    $region33: #{_lambda_.3} parent=5 // pred_check
      _
    $region34: #{_lambda_.3} parent=5 // pred_check_branch
      %194 = sbr.rel (%p191) target = $region36
    $region35: #{_lambda_.3} parent=5 // pred_region
      %s195 = ssub.s32 %s12, 1
      %p196 = scmp.lt.s32.totalorder %s17, 1
      %s197 = scalar_select %p196, %s17, 1
      %s198 = smul.addr %s197, 32
      %s199 = smul.addr %s198, 8
      %s200 = scalar_lea.vmem %s0, %s199
      %p201 = pneg %p38
      %p202 = pneg %p35
      %p203 = pneg %p59
      %p204 = pneg %p56
      %p205 = pneg %p80
      %p206 = pneg %p77
      %p207 = pneg %p101
      %p208 = pneg %p98
      %p209 = pneg %p127
      %p210 = pneg %p124
      %p211 = scmp.lt.s32.totalorder %s17, 1
      %s212 = scalar_select %p211, %s17, 1
      %s213 = smul.addr %s212, 32
      %s214 = smul.addr %s213, 8
      %s215 = scalar_lea.vmem %s4, %s214
      %p216 = pneg %p153
      %p217 = pneg %p150
      %p218 = scmp.lt.s32.totalorder %s17, 1
      %s219 = scalar_select %p218, %s17, 1
      %s220 = smul.addr %s219, 2
      %s221 = scalar_lea.vmem %s5, %s220
      %p222 = scmp.lt.s32.totalorder %s17, 1
      %s223 = scalar_select %p222, %s17, 1
      %s224 = smul.addr %s223, 32
      %s225 = smul.addr %s224, 8
      %s226 = scalar_lea.vmem %s0, %s225
      %p227 = scmp.lt.s32.totalorder %s17, 1
      %s228 = scalar_select %p227, %s17, 1
      %s229 = smul.addr %s228, 32
      %s230 = smul.addr %s229, 8
      %s231 = scalar_lea.vmem %s4, %s230
      %p232 = scmp.lt.s32.totalorder %s17, 1
      %s233 = scalar_select %p232, %s17, 1
      %s234 = smul.addr %s233, 2
      %s235 = scalar_lea.vmem %s5, %s234
      %v236 = vld [vmem:[%s226] sm:$0xff]
      %v237 = vld [vmem:[%s226 + $0x8] sm:$0xff]
      %v238 = vld [vmem:[%s226 + $0x10] sm:$0xff]
      %v239 = vld [vmem:[%s226 + $0x18] sm:$0xff]
      %v240 = vld [vmem:[%s226 + $0x20] sm:$0xff]
      %v241 = vld [vmem:[%s226 + $0x28] sm:$0xff]
      %v242 = vld [vmem:[%s226 + $0x30] sm:$0xff]
      %v243 = vld [vmem:[%s226 + $0x38] sm:$0xff]
      %v244 = vld [vmem:[%s226 + $0x40] sm:$0xff]
      %v245 = vld [vmem:[%s226 + $0x48] sm:$0xff]
      %v246 = vld [vmem:[%s226 + $0x50] sm:$0xff]
      %v247 = vld [vmem:[%s226 + $0x58] sm:$0xff]
      %v248 = vld [vmem:[%s226 + $0x60] sm:$0xff]
      %v249 = vld [vmem:[%s226 + $0x68] sm:$0xff]
      %v250 = vld [vmem:[%s226 + $0x70] sm:$0xff]
      %v251 = vld [vmem:[%s226 + $0x78] sm:$0xff]
      %v252 = vld [vmem:[%s226 + $0x80] sm:$0xff]
      %v253 = vld [vmem:[%s226 + $0x88] sm:$0xff]
      %v254 = vld [vmem:[%s226 + $0x90] sm:$0xff]
      %v255 = vld [vmem:[%s226 + $0x98] sm:$0xff]
      %v256 = vld [vmem:[%s226 + $0xa0] sm:$0xff]
      %v257 = vld [vmem:[%s226 + $0xa8] sm:$0xff]
      %v258 = vld [vmem:[%s226 + $0xb0] sm:$0xff]
      %v259 = vld [vmem:[%s226 + $0xb8] sm:$0xff]
      %v260 = vld [vmem:[%s226 + $0xc0] sm:$0xff]
      %v261 = vld [vmem:[%s226 + $0xc8] sm:$0xff]
      %v262 = vld [vmem:[%s226 + $0xd0] sm:$0xff]
      %v263 = vld [vmem:[%s226 + $0xd8] sm:$0xff]
      %v264 = vld [vmem:[%s226 + $0xe0] sm:$0xff]
      %v265 = vld [vmem:[%s226 + $0xe8] sm:$0xff]
      %v266 = vld [vmem:[%s226 + $0xf0] sm:$0xff]
      %v267 = vld [vmem:[%s226 + $0xf8] sm:$0xff]
      %v268 = vmax.f32 %v236, 0.0
      %v269 = vmax.f32 %v237, 0.0
      %v270 = vmax.f32 %v238, 0.0
      %v271 = vmax.f32 %v239, 0.0
      %v272 = vmax.f32 %v240, 0.0
      %v273 = vmax.f32 %v241, 0.0
      %v274 = vmax.f32 %v242, 0.0
      %v275 = vmax.f32 %v243, 0.0
      %v276 = vmax.f32 %v244, 0.0
      %v277 = vmax.f32 %v245, 0.0
      %v278 = vmax.f32 %v246, 0.0
      %v279 = vmax.f32 %v247, 0.0
      %v280 = vmax.f32 %v248, 0.0
      %v281 = vmax.f32 %v249, 0.0
      %v282 = vmax.f32 %v250, 0.0
      %v283 = vmax.f32 %v251, 0.0
      %v284 = vmax.f32 %v252, 0.0
      %v285 = vmax.f32 %v253, 0.0
      %v286 = vmax.f32 %v254, 0.0
      %v287 = vmax.f32 %v255, 0.0
      %v288 = vmax.f32 %v256, 0.0
      %v289 = vmax.f32 %v257, 0.0
      %v290 = vmax.f32 %v258, 0.0
      %v291 = vmax.f32 %v259, 0.0
      %v292 = vmax.f32 %v260, 0.0
      %v293 = vmax.f32 %v261, 0.0
      %v294 = vmax.f32 %v262, 0.0
      %v295 = vmax.f32 %v263, 0.0
      %v296 = vmax.f32 %v264, 0.0
      %v297 = vmax.f32 %v265, 0.0
      %v298 = vmax.f32 %v266, 0.0
      %v299 = vmax.f32 %v267, 0.0
      %vm300 = vcmask 31744
      %301 = vst.msk [vmem:[#allocation2] sm:$0xff] %vm300, 0.0
      %302 = vst.msk [vmem:[#allocation2 + $0x8] sm:$0xff] %vm300, 0.0
      %303 = vst.msk [vmem:[#allocation2 + $0x10] sm:$0xff] %vm300, 0.0
      %304 = vst.msk [vmem:[#allocation2 + $0x18] sm:$0xff] %vm300, 0.0
      %s305 = scalar_lea.vmem [#allocation2], 544
      %306 = vst.msk [vmem:[%s305] sm:$0xff] %vm300, 0.0
      %307 = vst.msk [vmem:[%s305 + $0x8] sm:$0xff] %vm300, 0.0
      %308 = vst.msk [vmem:[%s305 + $0x10] sm:$0xff] %vm300, 0.0
      %309 = vst.msk [vmem:[%s305 + $0x18] sm:$0xff] %vm300, 0.0
      %s310 = scalar_lea.vmem [#allocation2], 32
      %311 = vst.msk [vmem:[%s310] sm:$0xff] %vm300, 0.0
      %312 = vst.msk [vmem:[%s310 + $0x20] sm:$0xff] %vm300, 0.0
      %313 = vst.msk [vmem:[%s310 + $0x40] sm:$0xff] %vm300, 0.0
      %314 = vst.msk [vmem:[%s310 + $0x60] sm:$0xff] %vm300, 0.0
      %315 = vst.msk [vmem:[%s310 + $0x80] sm:$0xff] %vm300, 0.0
      %316 = vst.msk [vmem:[%s310 + $0xa0] sm:$0xff] %vm300, 0.0
      %317 = vst.msk [vmem:[%s310 + $0xc0] sm:$0xff] %vm300, 0.0
      %318 = vst.msk [vmem:[%s310 + $0xe0] sm:$0xff] %vm300, 0.0
      %319 = vst.msk [vmem:[%s310 + $0x100] sm:$0xff] %vm300, 0.0
      %320 = vst.msk [vmem:[%s310 + $0x120] sm:$0xff] %vm300, 0.0
      %321 = vst.msk [vmem:[%s310 + $0x140] sm:$0xff] %vm300, 0.0
      %322 = vst.msk [vmem:[%s310 + $0x160] sm:$0xff] %vm300, 0.0
      %323 = vst.msk [vmem:[%s310 + $0x180] sm:$0xff] %vm300, 0.0
      %324 = vst.msk [vmem:[%s310 + $0x1a0] sm:$0xff] %vm300, 0.0
      %325 = vst.msk [vmem:[%s310 + $0x1c0] sm:$0xff] %vm300, 0.0
      %326 = vst.msk [vmem:[%s310 + $0x1e0] sm:$0xff] %vm300, 0.0
      %327 = vst.msk [vmem:[%s310 + $0x18] sm:$0xff] %vm300, 0.0
      %328 = vst.msk [vmem:[%s310 + $0x38] sm:$0xff] %vm300, 0.0
      %329 = vst.msk [vmem:[%s310 + $0x58] sm:$0xff] %vm300, 0.0
      %330 = vst.msk [vmem:[%s310 + $0x78] sm:$0xff] %vm300, 0.0
      %331 = vst.msk [vmem:[%s310 + $0x98] sm:$0xff] %vm300, 0.0
      %332 = vst.msk [vmem:[%s310 + $0xb8] sm:$0xff] %vm300, 0.0
      %333 = vst.msk [vmem:[%s310 + $0xd8] sm:$0xff] %vm300, 0.0
      %334 = vst.msk [vmem:[%s310 + $0xf8] sm:$0xff] %vm300, 0.0
      %335 = vst.msk [vmem:[%s310 + $0x118] sm:$0xff] %vm300, 0.0
      %336 = vst.msk [vmem:[%s310 + $0x138] sm:$0xff] %vm300, 0.0
      %337 = vst.msk [vmem:[%s310 + $0x158] sm:$0xff] %vm300, 0.0
      %338 = vst.msk [vmem:[%s310 + $0x178] sm:$0xff] %vm300, 0.0
      %339 = vst.msk [vmem:[%s310 + $0x198] sm:$0xff] %vm300, 0.0
      %340 = vst.msk [vmem:[%s310 + $0x1b8] sm:$0xff] %vm300, 0.0
      %341 = vst.msk [vmem:[%s310 + $0x1d8] sm:$0xff] %vm300, 0.0
      %342 = vst.msk [vmem:[%s310 + $0x1f8] sm:$0xff] %vm300, 0.0
      %343 = vst.msk [vmem:[%s310 + $0x8] sm:$0xff] %vm300, %v268
      %344 = vst.msk [vmem:[%s310 + $0x10] sm:$0xff] %vm300, %v269
      %345 = vst.msk [vmem:[%s310 + $0x28] sm:$0xff] %vm300, %v270
      %346 = vst.msk [vmem:[%s310 + $0x30] sm:$0xff] %vm300, %v271
      %347 = vst.msk [vmem:[%s310 + $0x48] sm:$0xff] %vm300, %v272
      %348 = vst.msk [vmem:[%s310 + $0x50] sm:$0xff] %vm300, %v273
      %349 = vst.msk [vmem:[%s310 + $0x68] sm:$0xff] %vm300, %v274
      %350 = vst.msk [vmem:[%s310 + $0x70] sm:$0xff] %vm300, %v275
      %351 = vst.msk [vmem:[%s310 + $0x88] sm:$0xff] %vm300, %v276
      %352 = vst.msk [vmem:[%s310 + $0x90] sm:$0xff] %vm300, %v277
      %353 = vst.msk [vmem:[%s310 + $0xa8] sm:$0xff] %vm300, %v278
      %354 = vst.msk [vmem:[%s310 + $0xb0] sm:$0xff] %vm300, %v279
      %355 = vst.msk [vmem:[%s310 + $0xc8] sm:$0xff] %vm300, %v280
      %356 = vst.msk [vmem:[%s310 + $0xd0] sm:$0xff] %vm300, %v281
      %357 = vst.msk [vmem:[%s310 + $0xe8] sm:$0xff] %vm300, %v282
      %358 = vst.msk [vmem:[%s310 + $0xf0] sm:$0xff] %vm300, %v283
      %359 = vst.msk [vmem:[%s310 + $0x108] sm:$0xff] %vm300, %v284
      %360 = vst.msk [vmem:[%s310 + $0x110] sm:$0xff] %vm300, %v285
      %361 = vst.msk [vmem:[%s310 + $0x128] sm:$0xff] %vm300, %v286
      %362 = vst.msk [vmem:[%s310 + $0x130] sm:$0xff] %vm300, %v287
      %363 = vst.msk [vmem:[%s310 + $0x148] sm:$0xff] %vm300, %v288
      %364 = vst.msk [vmem:[%s310 + $0x150] sm:$0xff] %vm300, %v289
      %365 = vst.msk [vmem:[%s310 + $0x168] sm:$0xff] %vm300, %v290
      %366 = vst.msk [vmem:[%s310 + $0x170] sm:$0xff] %vm300, %v291
      %367 = vst.msk [vmem:[%s310 + $0x188] sm:$0xff] %vm300, %v292
      %368 = vst.msk [vmem:[%s310 + $0x190] sm:$0xff] %vm300, %v293
      %369 = vst.msk [vmem:[%s310 + $0x1a8] sm:$0xff] %vm300, %v294
      %370 = vst.msk [vmem:[%s310 + $0x1b0] sm:$0xff] %vm300, %v295
      %371 = vst.msk [vmem:[%s310 + $0x1c8] sm:$0xff] %vm300, %v296
      %372 = vst.msk [vmem:[%s310 + $0x1d0] sm:$0xff] %vm300, %v297
      %373 = vst.msk [vmem:[%s310 + $0x1e8] sm:$0xff] %vm300, %v298
      %374 = vst.msk [vmem:[%s310 + $0x1f0] sm:$0xff] %vm300, %v299
      %v375 = vld [vmem:[#allocation2 + $0x7] sm:$0xff]
      %v376 = vld [vmem:[#allocation2 + $0xf] sm:$0xff]
      %v377 = vld [vmem:[#allocation2 + $0x27] sm:$0xff]
      %v378 = vld [vmem:[#allocation2 + $0x2f] sm:$0xff]
      %v379 = vld [vmem:[#allocation2 + $0x47] sm:$0xff]
      %v380 = vld [vmem:[#allocation2 + $0x4f] sm:$0xff]
      %v381 = vld [vmem:[#allocation2 + $0x67] sm:$0xff]
      %v382 = vld [vmem:[#allocation2 + $0x6f] sm:$0xff]
      %v383 = vld [vmem:[#allocation2 + $0x87] sm:$0xff]
      %v384 = vld [vmem:[#allocation2 + $0x8f] sm:$0xff]
      %v385 = vld [vmem:[#allocation2 + $0xa7] sm:$0xff]
      %v386 = vld [vmem:[#allocation2 + $0xaf] sm:$0xff]
      %v387 = vld [vmem:[#allocation2 + $0xc7] sm:$0xff]
      %v388 = vld [vmem:[#allocation2 + $0xcf] sm:$0xff]
      %v389 = vld [vmem:[#allocation2 + $0xe7] sm:$0xff]
      %v390 = vld [vmem:[#allocation2 + $0xef] sm:$0xff]
      %v391 = vld [vmem:[#allocation2 + $0x107] sm:$0xff]
      %v392 = vld [vmem:[#allocation2 + $0x10f] sm:$0xff]
      %v393 = vld [vmem:[#allocation2 + $0x127] sm:$0xff]
      %v394 = vld [vmem:[#allocation2 + $0x12f] sm:$0xff]
      %v395 = vld [vmem:[#allocation2 + $0x147] sm:$0xff]
      %v396 = vld [vmem:[#allocation2 + $0x14f] sm:$0xff]
      %v397 = vld [vmem:[#allocation2 + $0x167] sm:$0xff]
      %v398 = vld [vmem:[#allocation2 + $0x16f] sm:$0xff]
      %v399 = vld [vmem:[#allocation2 + $0x187] sm:$0xff]
      %v400 = vld [vmem:[#allocation2 + $0x18f] sm:$0xff]
      %v401 = vld [vmem:[#allocation2 + $0x1a7] sm:$0xff]
      %v402 = vld [vmem:[#allocation2 + $0x1af] sm:$0xff]
      %v403 = vld [vmem:[#allocation2 + $0x1c7] sm:$0xff]
      %v404 = vld [vmem:[#allocation2 + $0x1cf] sm:$0xff]
      %v405 = vld [vmem:[#allocation2 + $0x1e7] sm:$0xff]
      %v406 = vld [vmem:[#allocation2 + $0x1ef] sm:$0xff]
      %v407 = vld [vmem:[#allocation2 + $0x8] sm:$0xff]
      %v408 = vld [vmem:[#allocation2 + $0x10] sm:$0xff]
      %v409 = vld [vmem:[#allocation2 + $0x28] sm:$0xff]
      %v410 = vld [vmem:[#allocation2 + $0x30] sm:$0xff]
      %v411 = vld [vmem:[#allocation2 + $0x48] sm:$0xff]
      %v412 = vld [vmem:[#allocation2 + $0x50] sm:$0xff]
      %v413 = vld [vmem:[#allocation2 + $0x68] sm:$0xff]
      %v414 = vld [vmem:[#allocation2 + $0x70] sm:$0xff]
      %v415 = vld [vmem:[#allocation2 + $0x88] sm:$0xff]
      %v416 = vld [vmem:[#allocation2 + $0x90] sm:$0xff]
      %v417 = vld [vmem:[#allocation2 + $0xa8] sm:$0xff]
      %v418 = vld [vmem:[#allocation2 + $0xb0] sm:$0xff]
      %v419 = vld [vmem:[#allocation2 + $0xc8] sm:$0xff]
      %v420 = vld [vmem:[#allocation2 + $0xd0] sm:$0xff]
      %v421 = vld [vmem:[#allocation2 + $0xe8] sm:$0xff]
      %v422 = vld [vmem:[#allocation2 + $0xf0] sm:$0xff]
      %v423 = vld [vmem:[#allocation2 + $0x108] sm:$0xff]
      %v424 = vld [vmem:[#allocation2 + $0x110] sm:$0xff]
      %v425 = vld [vmem:[#allocation2 + $0x128] sm:$0xff]
      %v426 = vld [vmem:[#allocation2 + $0x130] sm:$0xff]
      %v427 = vld [vmem:[#allocation2 + $0x148] sm:$0xff]
      %v428 = vld [vmem:[#allocation2 + $0x150] sm:$0xff]
      %v429 = vld [vmem:[#allocation2 + $0x168] sm:$0xff]
      %v430 = vld [vmem:[#allocation2 + $0x170] sm:$0xff]
      %v431 = vld [vmem:[#allocation2 + $0x188] sm:$0xff]
      %v432 = vld [vmem:[#allocation2 + $0x190] sm:$0xff]
      %v433 = vld [vmem:[#allocation2 + $0x1a8] sm:$0xff]
      %v434 = vld [vmem:[#allocation2 + $0x1b0] sm:$0xff]
      %v435 = vld [vmem:[#allocation2 + $0x1c8] sm:$0xff]
      %v436 = vld [vmem:[#allocation2 + $0x1d0] sm:$0xff]
      %v437 = vld [vmem:[#allocation2 + $0x1e8] sm:$0xff]
      %v438 = vld [vmem:[#allocation2 + $0x1f0] sm:$0xff]
      %v439 = vld [vmem:[#allocation2 + $0x9] sm:$0xff]
      %v440 = vld [vmem:[#allocation2 + $0x11] sm:$0xff]
      %v441 = vld [vmem:[#allocation2 + $0x29] sm:$0xff]
      %v442 = vld [vmem:[#allocation2 + $0x31] sm:$0xff]
      %v443 = vld [vmem:[#allocation2 + $0x49] sm:$0xff]
      %v444 = vld [vmem:[#allocation2 + $0x51] sm:$0xff]
      %v445 = vld [vmem:[#allocation2 + $0x69] sm:$0xff]
      %v446 = vld [vmem:[#allocation2 + $0x71] sm:$0xff]
      %v447 = vld [vmem:[#allocation2 + $0x89] sm:$0xff]
      %v448 = vld [vmem:[#allocation2 + $0x91] sm:$0xff]
      %v449 = vld [vmem:[#allocation2 + $0xa9] sm:$0xff]
      %v450 = vld [vmem:[#allocation2 + $0xb1] sm:$0xff]
      %v451 = vld [vmem:[#allocation2 + $0xc9] sm:$0xff]
      %v452 = vld [vmem:[#allocation2 + $0xd1] sm:$0xff]
      %v453 = vld [vmem:[#allocation2 + $0xe9] sm:$0xff]
      %v454 = vld [vmem:[#allocation2 + $0xf1] sm:$0xff]
      %v455 = vld [vmem:[#allocation2 + $0x109] sm:$0xff]
      %v456 = vld [vmem:[#allocation2 + $0x111] sm:$0xff]
      %v457 = vld [vmem:[#allocation2 + $0x129] sm:$0xff]
      %v458 = vld [vmem:[#allocation2 + $0x131] sm:$0xff]
      %v459 = vld [vmem:[#allocation2 + $0x149] sm:$0xff]
      %v460 = vld [vmem:[#allocation2 + $0x151] sm:$0xff]
      %v461 = vld [vmem:[#allocation2 + $0x169] sm:$0xff]
      %v462 = vld [vmem:[#allocation2 + $0x171] sm:$0xff]
      %v463 = vld [vmem:[#allocation2 + $0x189] sm:$0xff]
      %v464 = vld [vmem:[#allocation2 + $0x191] sm:$0xff]
      %v465 = vld [vmem:[#allocation2 + $0x1a9] sm:$0xff]
      %v466 = vld [vmem:[#allocation2 + $0x1b1] sm:$0xff]
      %v467 = vld [vmem:[#allocation2 + $0x1c9] sm:$0xff]
      %v468 = vld [vmem:[#allocation2 + $0x1d1] sm:$0xff]
      %v469 = vld [vmem:[#allocation2 + $0x1e9] sm:$0xff]
      %v470 = vld [vmem:[#allocation2 + $0x1f1] sm:$0xff]
      %v471 = vld [vmem:[%s310 + $0x7] sm:$0xff]
      %v472 = vld [vmem:[%s310 + $0xf] sm:$0xff]
      %v473 = vld [vmem:[%s310 + $0x27] sm:$0xff]
      %v474 = vld [vmem:[%s310 + $0x2f] sm:$0xff]
      %v475 = vld [vmem:[%s310 + $0x47] sm:$0xff]
      %v476 = vld [vmem:[%s310 + $0x4f] sm:$0xff]
      %v477 = vld [vmem:[%s310 + $0x67] sm:$0xff]
      %v478 = vld [vmem:[%s310 + $0x6f] sm:$0xff]
      %v479 = vld [vmem:[%s310 + $0x87] sm:$0xff]
      %v480 = vld [vmem:[%s310 + $0x8f] sm:$0xff]
      %v481 = vld [vmem:[%s310 + $0xa7] sm:$0xff]
      %v482 = vld [vmem:[%s310 + $0xaf] sm:$0xff]
      %v483 = vld [vmem:[%s310 + $0xc7] sm:$0xff]
      %v484 = vld [vmem:[%s310 + $0xcf] sm:$0xff]
      %v485 = vld [vmem:[%s310 + $0xe7] sm:$0xff]
      %v486 = vld [vmem:[%s310 + $0xef] sm:$0xff]
      %v487 = vld [vmem:[%s310 + $0x107] sm:$0xff]
      %v488 = vld [vmem:[%s310 + $0x10f] sm:$0xff]
      %v489 = vld [vmem:[%s310 + $0x127] sm:$0xff]
      %v490 = vld [vmem:[%s310 + $0x12f] sm:$0xff]
      %v491 = vld [vmem:[%s310 + $0x147] sm:$0xff]
      %v492 = vld [vmem:[%s310 + $0x14f] sm:$0xff]
      %v493 = vld [vmem:[%s310 + $0x167] sm:$0xff]
      %v494 = vld [vmem:[%s310 + $0x16f] sm:$0xff]
      %v495 = vld [vmem:[%s310 + $0x187] sm:$0xff]
      %v496 = vld [vmem:[%s310 + $0x18f] sm:$0xff]
      %v497 = vld [vmem:[%s310 + $0x1a7] sm:$0xff]
      %v498 = vld [vmem:[%s310 + $0x1af] sm:$0xff]
      %v499 = vld [vmem:[%s310 + $0x1c7] sm:$0xff]
      %v500 = vld [vmem:[%s310 + $0x1cf] sm:$0xff]
      %v501 = vld [vmem:[%s310 + $0x1e7] sm:$0xff]
      %v502 = vld [vmem:[%s310 + $0x1ef] sm:$0xff]
      %v503 = vld [vmem:[%s310 + $0x8] sm:$0xff]
      %v504 = vld [vmem:[%s310 + $0x10] sm:$0xff]
      %v505 = vld [vmem:[%s310 + $0x28] sm:$0xff]
      %v506 = vld [vmem:[%s310 + $0x30] sm:$0xff]
      %v507 = vld [vmem:[%s310 + $0x48] sm:$0xff]
      %v508 = vld [vmem:[%s310 + $0x50] sm:$0xff]
      %v509 = vld [vmem:[%s310 + $0x68] sm:$0xff]
      %v510 = vld [vmem:[%s310 + $0x70] sm:$0xff]
      %v511 = vld [vmem:[%s310 + $0x88] sm:$0xff]
      %v512 = vld [vmem:[%s310 + $0x90] sm:$0xff]
      %v513 = vld [vmem:[%s310 + $0xa8] sm:$0xff]
      %v514 = vld [vmem:[%s310 + $0xb0] sm:$0xff]
      %v515 = vld [vmem:[%s310 + $0xc8] sm:$0xff]
      %v516 = vld [vmem:[%s310 + $0xd0] sm:$0xff]
      %v517 = vld [vmem:[%s310 + $0xe8] sm:$0xff]
      %v518 = vld [vmem:[%s310 + $0xf0] sm:$0xff]
      %v519 = vld [vmem:[%s310 + $0x108] sm:$0xff]
      %v520 = vld [vmem:[%s310 + $0x110] sm:$0xff]
      %v521 = vld [vmem:[%s310 + $0x128] sm:$0xff]
      %v522 = vld [vmem:[%s310 + $0x130] sm:$0xff]
      %v523 = vld [vmem:[%s310 + $0x148] sm:$0xff]
      %v524 = vld [vmem:[%s310 + $0x150] sm:$0xff]
      %v525 = vld [vmem:[%s310 + $0x168] sm:$0xff]
      %v526 = vld [vmem:[%s310 + $0x170] sm:$0xff]
      %v527 = vld [vmem:[%s310 + $0x188] sm:$0xff]
      %v528 = vld [vmem:[%s310 + $0x190] sm:$0xff]
      %v529 = vld [vmem:[%s310 + $0x1a8] sm:$0xff]
      %v530 = vld [vmem:[%s310 + $0x1b0] sm:$0xff]
      %v531 = vld [vmem:[%s310 + $0x1c8] sm:$0xff]
      %v532 = vld [vmem:[%s310 + $0x1d0] sm:$0xff]
      %v533 = vld [vmem:[%s310 + $0x1e8] sm:$0xff]
      %v534 = vld [vmem:[%s310 + $0x1f0] sm:$0xff]
      %v535 = vld [vmem:[%s310 + $0x9] sm:$0xff]
      %v536 = vld [vmem:[%s310 + $0x11] sm:$0xff]
      %v537 = vld [vmem:[%s310 + $0x29] sm:$0xff]
      %v538 = vld [vmem:[%s310 + $0x31] sm:$0xff]
      %v539 = vld [vmem:[%s310 + $0x49] sm:$0xff]
      %v540 = vld [vmem:[%s310 + $0x51] sm:$0xff]
      %v541 = vld [vmem:[%s310 + $0x69] sm:$0xff]
      %v542 = vld [vmem:[%s310 + $0x71] sm:$0xff]
      %v543 = vld [vmem:[%s310 + $0x89] sm:$0xff]
      %v544 = vld [vmem:[%s310 + $0x91] sm:$0xff]
      %v545 = vld [vmem:[%s310 + $0xa9] sm:$0xff]
      %v546 = vld [vmem:[%s310 + $0xb1] sm:$0xff]
      %v547 = vld [vmem:[%s310 + $0xc9] sm:$0xff]
      %v548 = vld [vmem:[%s310 + $0xd1] sm:$0xff]
      %v549 = vld [vmem:[%s310 + $0xe9] sm:$0xff]
      %v550 = vld [vmem:[%s310 + $0xf1] sm:$0xff]
      %v551 = vld [vmem:[%s310 + $0x109] sm:$0xff]
      %v552 = vld [vmem:[%s310 + $0x111] sm:$0xff]
      %v553 = vld [vmem:[%s310 + $0x129] sm:$0xff]
      %v554 = vld [vmem:[%s310 + $0x131] sm:$0xff]
      %v555 = vld [vmem:[%s310 + $0x149] sm:$0xff]
      %v556 = vld [vmem:[%s310 + $0x151] sm:$0xff]
      %v557 = vld [vmem:[%s310 + $0x169] sm:$0xff]
      %v558 = vld [vmem:[%s310 + $0x171] sm:$0xff]
      %v559 = vld [vmem:[%s310 + $0x189] sm:$0xff]
      %v560 = vld [vmem:[%s310 + $0x191] sm:$0xff]
      %v561 = vld [vmem:[%s310 + $0x1a9] sm:$0xff]
      %v562 = vld [vmem:[%s310 + $0x1b1] sm:$0xff]
      %v563 = vld [vmem:[%s310 + $0x1c9] sm:$0xff]
      %v564 = vld [vmem:[%s310 + $0x1d1] sm:$0xff]
      %v565 = vld [vmem:[%s310 + $0x1e9] sm:$0xff]
      %v566 = vld [vmem:[%s310 + $0x1f1] sm:$0xff]
      %s567 = scalar_lea.vmem [#allocation2], 64
      %v568 = vld [vmem:[%s567 + $0x7] sm:$0xff]
      %v569 = vld [vmem:[%s567 + $0xf] sm:$0xff]
      %v570 = vld [vmem:[%s567 + $0x27] sm:$0xff]
      %v571 = vld [vmem:[%s567 + $0x2f] sm:$0xff]
      %v572 = vld [vmem:[%s567 + $0x47] sm:$0xff]
      %v573 = vld [vmem:[%s567 + $0x4f] sm:$0xff]
      %v574 = vld [vmem:[%s567 + $0x67] sm:$0xff]
      %v575 = vld [vmem:[%s567 + $0x6f] sm:$0xff]
      %v576 = vld [vmem:[%s567 + $0x87] sm:$0xff]
      %v577 = vld [vmem:[%s567 + $0x8f] sm:$0xff]
      %v578 = vld [vmem:[%s567 + $0xa7] sm:$0xff]
      %v579 = vld [vmem:[%s567 + $0xaf] sm:$0xff]
      %v580 = vld [vmem:[%s567 + $0xc7] sm:$0xff]
      %v581 = vld [vmem:[%s567 + $0xcf] sm:$0xff]
      %v582 = vld [vmem:[%s567 + $0xe7] sm:$0xff]
      %v583 = vld [vmem:[%s567 + $0xef] sm:$0xff]
      %v584 = vld [vmem:[%s567 + $0x107] sm:$0xff]
      %v585 = vld [vmem:[%s567 + $0x10f] sm:$0xff]
      %v586 = vld [vmem:[%s567 + $0x127] sm:$0xff]
      %v587 = vld [vmem:[%s567 + $0x12f] sm:$0xff]
      %v588 = vld [vmem:[%s567 + $0x147] sm:$0xff]
      %v589 = vld [vmem:[%s567 + $0x14f] sm:$0xff]
      %v590 = vld [vmem:[%s567 + $0x167] sm:$0xff]
      %v591 = vld [vmem:[%s567 + $0x16f] sm:$0xff]
      %v592 = vld [vmem:[%s567 + $0x187] sm:$0xff]
      %v593 = vld [vmem:[%s567 + $0x18f] sm:$0xff]
      %v594 = vld [vmem:[%s567 + $0x1a7] sm:$0xff]
      %v595 = vld [vmem:[%s567 + $0x1af] sm:$0xff]
      %v596 = vld [vmem:[%s567 + $0x1c7] sm:$0xff]
      %v597 = vld [vmem:[%s567 + $0x1cf] sm:$0xff]
      %v598 = vld [vmem:[%s567 + $0x1e7] sm:$0xff]
      %v599 = vld [vmem:[%s567 + $0x1ef] sm:$0xff]
      %v600 = vld [vmem:[%s567 + $0x8] sm:$0xff]
      %v601 = vld [vmem:[%s567 + $0x10] sm:$0xff]
      %v602 = vld [vmem:[%s567 + $0x28] sm:$0xff]
      %v603 = vld [vmem:[%s567 + $0x30] sm:$0xff]
      %v604 = vld [vmem:[%s567 + $0x48] sm:$0xff]
      %v605 = vld [vmem:[%s567 + $0x50] sm:$0xff]
      %v606 = vld [vmem:[%s567 + $0x68] sm:$0xff]
      %v607 = vld [vmem:[%s567 + $0x70] sm:$0xff]
      %v608 = vld [vmem:[%s567 + $0x88] sm:$0xff]
      %v609 = vld [vmem:[%s567 + $0x90] sm:$0xff]
      %v610 = vld [vmem:[%s567 + $0xa8] sm:$0xff]
      %v611 = vld [vmem:[%s567 + $0xb0] sm:$0xff]
      %v612 = vld [vmem:[%s567 + $0xc8] sm:$0xff]
      %v613 = vld [vmem:[%s567 + $0xd0] sm:$0xff]
      %v614 = vld [vmem:[%s567 + $0xe8] sm:$0xff]
      %v615 = vld [vmem:[%s567 + $0xf0] sm:$0xff]
      %v616 = vld [vmem:[%s567 + $0x108] sm:$0xff]
      %v617 = vld [vmem:[%s567 + $0x110] sm:$0xff]
      %v618 = vld [vmem:[%s567 + $0x128] sm:$0xff]
      %v619 = vld [vmem:[%s567 + $0x130] sm:$0xff]
      %v620 = vld [vmem:[%s567 + $0x148] sm:$0xff]
      %v621 = vld [vmem:[%s567 + $0x150] sm:$0xff]
      %v622 = vld [vmem:[%s567 + $0x168] sm:$0xff]
      %v623 = vld [vmem:[%s567 + $0x170] sm:$0xff]
      %v624 = vld [vmem:[%s567 + $0x188] sm:$0xff]
      %v625 = vld [vmem:[%s567 + $0x190] sm:$0xff]
      %v626 = vld [vmem:[%s567 + $0x1a8] sm:$0xff]
      %v627 = vld [vmem:[%s567 + $0x1b0] sm:$0xff]
      %v628 = vld [vmem:[%s567 + $0x1c8] sm:$0xff]
      %v629 = vld [vmem:[%s567 + $0x1d0] sm:$0xff]
      %v630 = vld [vmem:[%s567 + $0x1e8] sm:$0xff]
      %v631 = vld [vmem:[%s567 + $0x1f0] sm:$0xff]
      %v632 = vld [vmem:[%s567 + $0x9] sm:$0xff]
      %v633 = vld [vmem:[%s567 + $0x11] sm:$0xff]
      %v634 = vld [vmem:[%s567 + $0x29] sm:$0xff]
      %v635 = vld [vmem:[%s567 + $0x31] sm:$0xff]
      %v636 = vld [vmem:[%s567 + $0x49] sm:$0xff]
      %v637 = vld [vmem:[%s567 + $0x51] sm:$0xff]
      %v638 = vld [vmem:[%s567 + $0x69] sm:$0xff]
      %v639 = vld [vmem:[%s567 + $0x71] sm:$0xff]
      %v640 = vld [vmem:[%s567 + $0x89] sm:$0xff]
      %v641 = vld [vmem:[%s567 + $0x91] sm:$0xff]
      %v642 = vld [vmem:[%s567 + $0xa9] sm:$0xff]
      %v643 = vld [vmem:[%s567 + $0xb1] sm:$0xff]
      %v644 = vld [vmem:[%s567 + $0xc9] sm:$0xff]
      %v645 = vld [vmem:[%s567 + $0xd1] sm:$0xff]
      %v646 = vld [vmem:[%s567 + $0xe9] sm:$0xff]
      %v647 = vld [vmem:[%s567 + $0xf1] sm:$0xff]
      %v648 = vld [vmem:[%s567 + $0x109] sm:$0xff]
      %v649 = vld [vmem:[%s567 + $0x111] sm:$0xff]
      %v650 = vld [vmem:[%s567 + $0x129] sm:$0xff]
      %v651 = vld [vmem:[%s567 + $0x131] sm:$0xff]
      %v652 = vld [vmem:[%s567 + $0x149] sm:$0xff]
      %v653 = vld [vmem:[%s567 + $0x151] sm:$0xff]
      %v654 = vld [vmem:[%s567 + $0x169] sm:$0xff]
      %v655 = vld [vmem:[%s567 + $0x171] sm:$0xff]
      %v656 = vld [vmem:[%s567 + $0x189] sm:$0xff]
      %v657 = vld [vmem:[%s567 + $0x191] sm:$0xff]
      %v658 = vld [vmem:[%s567 + $0x1a9] sm:$0xff]
      %v659 = vld [vmem:[%s567 + $0x1b1] sm:$0xff]
      %v660 = vld [vmem:[%s567 + $0x1c9] sm:$0xff]
      %v661 = vld [vmem:[%s567 + $0x1d1] sm:$0xff]
      %v662 = vld [vmem:[%s567 + $0x1e9] sm:$0xff]
      %v663 = vld [vmem:[%s567 + $0x1f1] sm:$0xff]
      %696 = vrot.lane.b32.xlu0 %v407, 4
      %v697 = vpop.permute.xlu0 %696
      %698 = vrot.lane.b32.xlu0 %v408, 4
      %v699 = vpop.permute.xlu0 %698
      %700 = vrot.lane.b32.xlu0 %v409, 4
      %v701 = vpop.permute.xlu0 %700
      %702 = vrot.lane.b32.xlu0 %v410, 4
      %v703 = vpop.permute.xlu0 %702
      %704 = vrot.lane.b32.xlu0 %v411, 4
      %v705 = vpop.permute.xlu0 %704
      %706 = vrot.lane.b32.xlu0 %v412, 4
      %v707 = vpop.permute.xlu0 %706
      %708 = vrot.lane.b32.xlu0 %v413, 4
      %v709 = vpop.permute.xlu0 %708
      %710 = vrot.lane.b32.xlu0 %v414, 4
      %v711 = vpop.permute.xlu0 %710
      %712 = vrot.lane.b32.xlu0 %v415, 4
      %v713 = vpop.permute.xlu0 %712
      %714 = vrot.lane.b32.xlu0 %v416, 4
      %v715 = vpop.permute.xlu0 %714
      %716 = vrot.lane.b32.xlu0 %v417, 4
      %v717 = vpop.permute.xlu0 %716
      %718 = vrot.lane.b32.xlu0 %v418, 4
      %v719 = vpop.permute.xlu0 %718
      %720 = vrot.lane.b32.xlu0 %v419, 4
      %v721 = vpop.permute.xlu0 %720
      %722 = vrot.lane.b32.xlu0 %v420, 4
      %v723 = vpop.permute.xlu0 %722
      %724 = vrot.lane.b32.xlu0 %v421, 4
      %v725 = vpop.permute.xlu0 %724
      %726 = vrot.lane.b32.xlu0 %v422, 4
      %v727 = vpop.permute.xlu0 %726
      %728 = vrot.lane.b32.xlu0 %v423, 4
      %v729 = vpop.permute.xlu0 %728
      %730 = vrot.lane.b32.xlu0 %v424, 4
      %v731 = vpop.permute.xlu0 %730
      %732 = vrot.lane.b32.xlu0 %v425, 4
      %v733 = vpop.permute.xlu0 %732
      %734 = vrot.lane.b32.xlu0 %v426, 4
      %v735 = vpop.permute.xlu0 %734
      %736 = vrot.lane.b32.xlu0 %v427, 4
      %v737 = vpop.permute.xlu0 %736
      %738 = vrot.lane.b32.xlu0 %v428, 4
      %v739 = vpop.permute.xlu0 %738
      %740 = vrot.lane.b32.xlu0 %v429, 4
      %v741 = vpop.permute.xlu0 %740
      %742 = vrot.lane.b32.xlu0 %v430, 4
      %v743 = vpop.permute.xlu0 %742
      %744 = vrot.lane.b32.xlu0 %v431, 4
      %v745 = vpop.permute.xlu0 %744
      %746 = vrot.lane.b32.xlu0 %v432, 4
      %v747 = vpop.permute.xlu0 %746
      %748 = vrot.lane.b32.xlu0 %v433, 4
      %v749 = vpop.permute.xlu0 %748
      %750 = vrot.lane.b32.xlu0 %v434, 4
      %v751 = vpop.permute.xlu0 %750
      %752 = vrot.lane.b32.xlu0 %v435, 4
      %v753 = vpop.permute.xlu0 %752
      %754 = vrot.lane.b32.xlu0 %v436, 4
      %v755 = vpop.permute.xlu0 %754
      %756 = vrot.lane.b32.xlu0 %v437, 4
      %v757 = vpop.permute.xlu0 %756
      %758 = vrot.lane.b32.xlu0 %v438, 4
      %v759 = vpop.permute.xlu0 %758
      %824 = vrot.lane.b32.xlu0 %v439, 8
      %v825 = vpop.permute.xlu0 %824
      %826 = vrot.lane.b32.xlu0 %v440, 8
      %v827 = vpop.permute.xlu0 %826
      %828 = vrot.lane.b32.xlu0 %v441, 8
      %v829 = vpop.permute.xlu0 %828
      %830 = vrot.lane.b32.xlu0 %v442, 8
      %v831 = vpop.permute.xlu0 %830
      %832 = vrot.lane.b32.xlu0 %v443, 8
      %v833 = vpop.permute.xlu0 %832
      %834 = vrot.lane.b32.xlu0 %v444, 8
      %v835 = vpop.permute.xlu0 %834
      %836 = vrot.lane.b32.xlu0 %v445, 8
      %v837 = vpop.permute.xlu0 %836
      %838 = vrot.lane.b32.xlu0 %v446, 8
      %v839 = vpop.permute.xlu0 %838
      %840 = vrot.lane.b32.xlu0 %v447, 8
      %v841 = vpop.permute.xlu0 %840
      %842 = vrot.lane.b32.xlu0 %v448, 8
      %v843 = vpop.permute.xlu0 %842
      %844 = vrot.lane.b32.xlu0 %v449, 8
      %v845 = vpop.permute.xlu0 %844
      %846 = vrot.lane.b32.xlu0 %v450, 8
      %v847 = vpop.permute.xlu0 %846
      %848 = vrot.lane.b32.xlu0 %v451, 8
      %v849 = vpop.permute.xlu0 %848
      %850 = vrot.lane.b32.xlu0 %v452, 8
      %v851 = vpop.permute.xlu0 %850
      %852 = vrot.lane.b32.xlu0 %v453, 8
      %v853 = vpop.permute.xlu0 %852
      %854 = vrot.lane.b32.xlu0 %v454, 8
      %v855 = vpop.permute.xlu0 %854
      %856 = vrot.lane.b32.xlu0 %v455, 8
      %v857 = vpop.permute.xlu0 %856
      %858 = vrot.lane.b32.xlu0 %v456, 8
      %v859 = vpop.permute.xlu0 %858
      %860 = vrot.lane.b32.xlu0 %v457, 8
      %v861 = vpop.permute.xlu0 %860
      %862 = vrot.lane.b32.xlu0 %v458, 8
      %v863 = vpop.permute.xlu0 %862
      %864 = vrot.lane.b32.xlu0 %v459, 8
      %v865 = vpop.permute.xlu0 %864
      %866 = vrot.lane.b32.xlu0 %v460, 8
      %v867 = vpop.permute.xlu0 %866
      %868 = vrot.lane.b32.xlu0 %v461, 8
      %v869 = vpop.permute.xlu0 %868
      %870 = vrot.lane.b32.xlu0 %v462, 8
      %v871 = vpop.permute.xlu0 %870
      %872 = vrot.lane.b32.xlu0 %v463, 8
      %v873 = vpop.permute.xlu0 %872
      %874 = vrot.lane.b32.xlu0 %v464, 8
      %v875 = vpop.permute.xlu0 %874
      %876 = vrot.lane.b32.xlu0 %v465, 8
      %v877 = vpop.permute.xlu0 %876
      %878 = vrot.lane.b32.xlu0 %v466, 8
      %v879 = vpop.permute.xlu0 %878
      %880 = vrot.lane.b32.xlu0 %v467, 8
      %v881 = vpop.permute.xlu0 %880
      %882 = vrot.lane.b32.xlu0 %v468, 8
      %v883 = vpop.permute.xlu0 %882
      %884 = vrot.lane.b32.xlu0 %v469, 8
      %v885 = vpop.permute.xlu0 %884
      %886 = vrot.lane.b32.xlu0 %v470, 8
      %v887 = vpop.permute.xlu0 %886
      %952 = vrot.lane.b32.xlu0 %v471, 12
      %v953 = vpop.permute.xlu0 %952
      %954 = vrot.lane.b32.xlu0 %v472, 12
      %v955 = vpop.permute.xlu0 %954
      %956 = vrot.lane.b32.xlu0 %v473, 12
      %v957 = vpop.permute.xlu0 %956
      %958 = vrot.lane.b32.xlu0 %v474, 12
      %v959 = vpop.permute.xlu0 %958
      %960 = vrot.lane.b32.xlu0 %v475, 12
      %v961 = vpop.permute.xlu0 %960
      %962 = vrot.lane.b32.xlu0 %v476, 12
      %v963 = vpop.permute.xlu0 %962
      %964 = vrot.lane.b32.xlu0 %v477, 12
      %v965 = vpop.permute.xlu0 %964
      %966 = vrot.lane.b32.xlu0 %v478, 12
      %v967 = vpop.permute.xlu0 %966
      %968 = vrot.lane.b32.xlu0 %v479, 12
      %v969 = vpop.permute.xlu0 %968
      %970 = vrot.lane.b32.xlu0 %v480, 12
      %v971 = vpop.permute.xlu0 %970
      %972 = vrot.lane.b32.xlu0 %v481, 12
      %v973 = vpop.permute.xlu0 %972
      %974 = vrot.lane.b32.xlu0 %v482, 12
      %v975 = vpop.permute.xlu0 %974
      %976 = vrot.lane.b32.xlu0 %v483, 12
      %v977 = vpop.permute.xlu0 %976
      %978 = vrot.lane.b32.xlu0 %v484, 12
      %v979 = vpop.permute.xlu0 %978
      %980 = vrot.lane.b32.xlu0 %v485, 12
      %v981 = vpop.permute.xlu0 %980
      %982 = vrot.lane.b32.xlu0 %v486, 12
      %v983 = vpop.permute.xlu0 %982
      %984 = vrot.lane.b32.xlu0 %v487, 12
      %v985 = vpop.permute.xlu0 %984
      %986 = vrot.lane.b32.xlu0 %v488, 12
      %v987 = vpop.permute.xlu0 %986
      %988 = vrot.lane.b32.xlu0 %v489, 12
      %v989 = vpop.permute.xlu0 %988
      %990 = vrot.lane.b32.xlu0 %v490, 12
      %v991 = vpop.permute.xlu0 %990
      %992 = vrot.lane.b32.xlu0 %v491, 12
      %v993 = vpop.permute.xlu0 %992
      %994 = vrot.lane.b32.xlu0 %v492, 12
      %v995 = vpop.permute.xlu0 %994
      %996 = vrot.lane.b32.xlu0 %v493, 12
      %v997 = vpop.permute.xlu0 %996
      %998 = vrot.lane.b32.xlu0 %v494, 12
      %v999 = vpop.permute.xlu0 %998
      %1000 = vrot.lane.b32.xlu0 %v495, 12
      %v1001 = vpop.permute.xlu0 %1000
      %1002 = vrot.lane.b32.xlu0 %v496, 12
      %v1003 = vpop.permute.xlu0 %1002
      %1004 = vrot.lane.b32.xlu0 %v497, 12
      %v1005 = vpop.permute.xlu0 %1004
      %1006 = vrot.lane.b32.xlu0 %v498, 12
      %v1007 = vpop.permute.xlu0 %1006
      %1008 = vrot.lane.b32.xlu0 %v499, 12
      %v1009 = vpop.permute.xlu0 %1008
      %1010 = vrot.lane.b32.xlu0 %v500, 12
      %v1011 = vpop.permute.xlu0 %1010
      %1012 = vrot.lane.b32.xlu0 %v501, 12
      %v1013 = vpop.permute.xlu0 %1012
      %1014 = vrot.lane.b32.xlu0 %v502, 12
      %v1015 = vpop.permute.xlu0 %1014
      %1080 = vrot.lane.b32.xlu0 %v503, 16
      %v1081 = vpop.permute.xlu0 %1080
      %1082 = vrot.lane.b32.xlu0 %v504, 16
      %v1083 = vpop.permute.xlu0 %1082
      %1084 = vrot.lane.b32.xlu0 %v505, 16
      %v1085 = vpop.permute.xlu0 %1084
      %1086 = vrot.lane.b32.xlu0 %v506, 16
      %v1087 = vpop.permute.xlu0 %1086
      %1088 = vrot.lane.b32.xlu0 %v507, 16
      %v1089 = vpop.permute.xlu0 %1088
      %1090 = vrot.lane.b32.xlu0 %v508, 16
      %v1091 = vpop.permute.xlu0 %1090
      %1092 = vrot.lane.b32.xlu0 %v509, 16
      %v1093 = vpop.permute.xlu0 %1092
      %1094 = vrot.lane.b32.xlu0 %v510, 16
      %v1095 = vpop.permute.xlu0 %1094
      %1096 = vrot.lane.b32.xlu0 %v511, 16
      %v1097 = vpop.permute.xlu0 %1096
      %1098 = vrot.lane.b32.xlu0 %v512, 16
      %v1099 = vpop.permute.xlu0 %1098
      %1100 = vrot.lane.b32.xlu0 %v513, 16
      %v1101 = vpop.permute.xlu0 %1100
      %1102 = vrot.lane.b32.xlu0 %v514, 16
      %v1103 = vpop.permute.xlu0 %1102
      %1104 = vrot.lane.b32.xlu0 %v515, 16
      %v1105 = vpop.permute.xlu0 %1104
      %1106 = vrot.lane.b32.xlu0 %v516, 16
      %v1107 = vpop.permute.xlu0 %1106
      %1108 = vrot.lane.b32.xlu0 %v517, 16
      %v1109 = vpop.permute.xlu0 %1108
      %1110 = vrot.lane.b32.xlu0 %v518, 16
      %v1111 = vpop.permute.xlu0 %1110
      %1112 = vrot.lane.b32.xlu0 %v519, 16
      %v1113 = vpop.permute.xlu0 %1112
      %1114 = vrot.lane.b32.xlu0 %v520, 16
      %v1115 = vpop.permute.xlu0 %1114
      %1116 = vrot.lane.b32.xlu0 %v521, 16
      %v1117 = vpop.permute.xlu0 %1116
      %1118 = vrot.lane.b32.xlu0 %v522, 16
      %v1119 = vpop.permute.xlu0 %1118
      %1120 = vrot.lane.b32.xlu0 %v523, 16
      %v1121 = vpop.permute.xlu0 %1120
      %1122 = vrot.lane.b32.xlu0 %v524, 16
      %v1123 = vpop.permute.xlu0 %1122
      %1124 = vrot.lane.b32.xlu0 %v525, 16
      %v1125 = vpop.permute.xlu0 %1124
      %1126 = vrot.lane.b32.xlu0 %v526, 16
      %v1127 = vpop.permute.xlu0 %1126
      %1128 = vrot.lane.b32.xlu0 %v527, 16
      %v1129 = vpop.permute.xlu0 %1128
      %1130 = vrot.lane.b32.xlu0 %v528, 16
      %v1131 = vpop.permute.xlu0 %1130
      %1132 = vrot.lane.b32.xlu0 %v529, 16
      %v1133 = vpop.permute.xlu0 %1132
      %1134 = vrot.lane.b32.xlu0 %v530, 16
      %v1135 = vpop.permute.xlu0 %1134
      %1136 = vrot.lane.b32.xlu0 %v531, 16
      %v1137 = vpop.permute.xlu0 %1136
      %1138 = vrot.lane.b32.xlu0 %v532, 16
      %v1139 = vpop.permute.xlu0 %1138
      %1140 = vrot.lane.b32.xlu0 %v533, 16
      %v1141 = vpop.permute.xlu0 %1140
      %1142 = vrot.lane.b32.xlu0 %v534, 16
      %v1143 = vpop.permute.xlu0 %1142
      %1208 = vrot.lane.b32.xlu0 %v535, 20
      %v1209 = vpop.permute.xlu0 %1208
      %1210 = vrot.lane.b32.xlu0 %v536, 20
      %v1211 = vpop.permute.xlu0 %1210
      %1212 = vrot.lane.b32.xlu0 %v537, 20
      %v1213 = vpop.permute.xlu0 %1212
      %1214 = vrot.lane.b32.xlu0 %v538, 20
      %v1215 = vpop.permute.xlu0 %1214
      %1216 = vrot.lane.b32.xlu0 %v539, 20
      %v1217 = vpop.permute.xlu0 %1216
      %1218 = vrot.lane.b32.xlu0 %v540, 20
      %v1219 = vpop.permute.xlu0 %1218
      %1220 = vrot.lane.b32.xlu0 %v541, 20
      %v1221 = vpop.permute.xlu0 %1220
      %1222 = vrot.lane.b32.xlu0 %v542, 20
      %v1223 = vpop.permute.xlu0 %1222
      %1224 = vrot.lane.b32.xlu0 %v543, 20
      %v1225 = vpop.permute.xlu0 %1224
      %1226 = vrot.lane.b32.xlu0 %v544, 20
      %v1227 = vpop.permute.xlu0 %1226
      %1228 = vrot.lane.b32.xlu0 %v545, 20
      %v1229 = vpop.permute.xlu0 %1228
      %1230 = vrot.lane.b32.xlu0 %v546, 20
      %v1231 = vpop.permute.xlu0 %1230
      %1232 = vrot.lane.b32.xlu0 %v547, 20
      %v1233 = vpop.permute.xlu0 %1232
      %1234 = vrot.lane.b32.xlu0 %v548, 20
      %v1235 = vpop.permute.xlu0 %1234
      %1236 = vrot.lane.b32.xlu0 %v549, 20
      %v1237 = vpop.permute.xlu0 %1236
      %1238 = vrot.lane.b32.xlu0 %v550, 20
      %v1239 = vpop.permute.xlu0 %1238
      %1240 = vrot.lane.b32.xlu0 %v551, 20
      %v1241 = vpop.permute.xlu0 %1240
      %1242 = vrot.lane.b32.xlu0 %v552, 20
      %v1243 = vpop.permute.xlu0 %1242
      %1244 = vrot.lane.b32.xlu0 %v553, 20
      %v1245 = vpop.permute.xlu0 %1244
      %1246 = vrot.lane.b32.xlu0 %v554, 20
      %v1247 = vpop.permute.xlu0 %1246
      %1248 = vrot.lane.b32.xlu0 %v555, 20
      %v1249 = vpop.permute.xlu0 %1248
      %1250 = vrot.lane.b32.xlu0 %v556, 20
      %v1251 = vpop.permute.xlu0 %1250
      %1252 = vrot.lane.b32.xlu0 %v557, 20
      %v1253 = vpop.permute.xlu0 %1252
      %1254 = vrot.lane.b32.xlu0 %v558, 20
      %v1255 = vpop.permute.xlu0 %1254
      %1256 = vrot.lane.b32.xlu0 %v559, 20
      %v1257 = vpop.permute.xlu0 %1256
      %1258 = vrot.lane.b32.xlu0 %v560, 20
      %v1259 = vpop.permute.xlu0 %1258
      %1260 = vrot.lane.b32.xlu0 %v561, 20
      %v1261 = vpop.permute.xlu0 %1260
      %1262 = vrot.lane.b32.xlu0 %v562, 20
      %v1263 = vpop.permute.xlu0 %1262
      %1264 = vrot.lane.b32.xlu0 %v563, 20
      %v1265 = vpop.permute.xlu0 %1264
      %1266 = vrot.lane.b32.xlu0 %v564, 20
      %v1267 = vpop.permute.xlu0 %1266
      %1268 = vrot.lane.b32.xlu0 %v565, 20
      %v1269 = vpop.permute.xlu0 %1268
      %1270 = vrot.lane.b32.xlu0 %v566, 20
      %v1271 = vpop.permute.xlu0 %1270
      %1336 = vrot.lane.b32.xlu0 %v568, 24
      %v1337 = vpop.permute.xlu0 %1336
      %1338 = vrot.lane.b32.xlu0 %v569, 24
      %v1339 = vpop.permute.xlu0 %1338
      %1340 = vrot.lane.b32.xlu0 %v570, 24
      %v1341 = vpop.permute.xlu0 %1340
      %1342 = vrot.lane.b32.xlu0 %v571, 24
      %v1343 = vpop.permute.xlu0 %1342
      %1344 = vrot.lane.b32.xlu0 %v572, 24
      %v1345 = vpop.permute.xlu0 %1344
      %1346 = vrot.lane.b32.xlu0 %v573, 24
      %v1347 = vpop.permute.xlu0 %1346
      %1348 = vrot.lane.b32.xlu0 %v574, 24
      %v1349 = vpop.permute.xlu0 %1348
      %1350 = vrot.lane.b32.xlu0 %v575, 24
      %v1351 = vpop.permute.xlu0 %1350
      %1352 = vrot.lane.b32.xlu0 %v576, 24
      %v1353 = vpop.permute.xlu0 %1352
      %1354 = vrot.lane.b32.xlu0 %v577, 24
      %v1355 = vpop.permute.xlu0 %1354
      %1356 = vrot.lane.b32.xlu0 %v578, 24
      %v1357 = vpop.permute.xlu0 %1356
      %1358 = vrot.lane.b32.xlu0 %v579, 24
      %v1359 = vpop.permute.xlu0 %1358
      %1360 = vrot.lane.b32.xlu0 %v580, 24
      %v1361 = vpop.permute.xlu0 %1360
      %1362 = vrot.lane.b32.xlu0 %v581, 24
      %v1363 = vpop.permute.xlu0 %1362
      %1364 = vrot.lane.b32.xlu0 %v582, 24
      %v1365 = vpop.permute.xlu0 %1364
      %1366 = vrot.lane.b32.xlu0 %v583, 24
      %v1367 = vpop.permute.xlu0 %1366
      %1368 = vrot.lane.b32.xlu0 %v584, 24
      %v1369 = vpop.permute.xlu0 %1368
      %1370 = vrot.lane.b32.xlu0 %v585, 24
      %v1371 = vpop.permute.xlu0 %1370
      %1372 = vrot.lane.b32.xlu0 %v586, 24
      %v1373 = vpop.permute.xlu0 %1372
      %1374 = vrot.lane.b32.xlu0 %v587, 24
      %v1375 = vpop.permute.xlu0 %1374
      %1376 = vrot.lane.b32.xlu0 %v588, 24
      %v1377 = vpop.permute.xlu0 %1376
      %1378 = vrot.lane.b32.xlu0 %v589, 24
      %v1379 = vpop.permute.xlu0 %1378
      %1380 = vrot.lane.b32.xlu0 %v590, 24
      %v1381 = vpop.permute.xlu0 %1380
      %1382 = vrot.lane.b32.xlu0 %v591, 24
      %v1383 = vpop.permute.xlu0 %1382
      %1384 = vrot.lane.b32.xlu0 %v592, 24
      %v1385 = vpop.permute.xlu0 %1384
      %1386 = vrot.lane.b32.xlu0 %v593, 24
      %v1387 = vpop.permute.xlu0 %1386
      %1388 = vrot.lane.b32.xlu0 %v594, 24
      %v1389 = vpop.permute.xlu0 %1388
      %1390 = vrot.lane.b32.xlu0 %v595, 24
      %v1391 = vpop.permute.xlu0 %1390
      %1392 = vrot.lane.b32.xlu0 %v596, 24
      %v1393 = vpop.permute.xlu0 %1392
      %1394 = vrot.lane.b32.xlu0 %v597, 24
      %v1395 = vpop.permute.xlu0 %1394
      %1396 = vrot.lane.b32.xlu0 %v598, 24
      %v1397 = vpop.permute.xlu0 %1396
      %1398 = vrot.lane.b32.xlu0 %v599, 24
      %v1399 = vpop.permute.xlu0 %1398
      %1464 = vrot.lane.b32.xlu0 %v600, 28
      %v1465 = vpop.permute.xlu0 %1464
      %1466 = vrot.lane.b32.xlu0 %v601, 28
      %v1467 = vpop.permute.xlu0 %1466
      %1468 = vrot.lane.b32.xlu0 %v602, 28
      %v1469 = vpop.permute.xlu0 %1468
      %1470 = vrot.lane.b32.xlu0 %v603, 28
      %v1471 = vpop.permute.xlu0 %1470
      %1472 = vrot.lane.b32.xlu0 %v604, 28
      %v1473 = vpop.permute.xlu0 %1472
      %1474 = vrot.lane.b32.xlu0 %v605, 28
      %v1475 = vpop.permute.xlu0 %1474
      %1476 = vrot.lane.b32.xlu0 %v606, 28
      %v1477 = vpop.permute.xlu0 %1476
      %1478 = vrot.lane.b32.xlu0 %v607, 28
      %v1479 = vpop.permute.xlu0 %1478
      %1480 = vrot.lane.b32.xlu0 %v608, 28
      %v1481 = vpop.permute.xlu0 %1480
      %1482 = vrot.lane.b32.xlu0 %v609, 28
      %v1483 = vpop.permute.xlu0 %1482
      %1484 = vrot.lane.b32.xlu0 %v610, 28
      %v1485 = vpop.permute.xlu0 %1484
      %1486 = vrot.lane.b32.xlu0 %v611, 28
      %v1487 = vpop.permute.xlu0 %1486
      %1488 = vrot.lane.b32.xlu0 %v612, 28
      %v1489 = vpop.permute.xlu0 %1488
      %1490 = vrot.lane.b32.xlu0 %v613, 28
      %v1491 = vpop.permute.xlu0 %1490
      %1492 = vrot.lane.b32.xlu0 %v614, 28
      %v1493 = vpop.permute.xlu0 %1492
      %1494 = vrot.lane.b32.xlu0 %v615, 28
      %v1495 = vpop.permute.xlu0 %1494
      %1496 = vrot.lane.b32.xlu0 %v616, 28
      %v1497 = vpop.permute.xlu0 %1496
      %1498 = vrot.lane.b32.xlu0 %v617, 28
      %v1499 = vpop.permute.xlu0 %1498
      %1500 = vrot.lane.b32.xlu0 %v618, 28
      %v1501 = vpop.permute.xlu0 %1500
      %1502 = vrot.lane.b32.xlu0 %v619, 28
      %v1503 = vpop.permute.xlu0 %1502
      %1504 = vrot.lane.b32.xlu0 %v620, 28
      %v1505 = vpop.permute.xlu0 %1504
      %1506 = vrot.lane.b32.xlu0 %v621, 28
      %v1507 = vpop.permute.xlu0 %1506
      %1508 = vrot.lane.b32.xlu0 %v622, 28
      %v1509 = vpop.permute.xlu0 %1508
      %1510 = vrot.lane.b32.xlu0 %v623, 28
      %v1511 = vpop.permute.xlu0 %1510
      %1512 = vrot.lane.b32.xlu0 %v624, 28
      %v1513 = vpop.permute.xlu0 %1512
      %1514 = vrot.lane.b32.xlu0 %v625, 28
      %v1515 = vpop.permute.xlu0 %1514
      %1516 = vrot.lane.b32.xlu0 %v626, 28
      %v1517 = vpop.permute.xlu0 %1516
      %1518 = vrot.lane.b32.xlu0 %v627, 28
      %v1519 = vpop.permute.xlu0 %1518
      %1520 = vrot.lane.b32.xlu0 %v628, 28
      %v1521 = vpop.permute.xlu0 %1520
      %1522 = vrot.lane.b32.xlu0 %v629, 28
      %v1523 = vpop.permute.xlu0 %1522
      %1524 = vrot.lane.b32.xlu0 %v630, 28
      %v1525 = vpop.permute.xlu0 %1524
      %1526 = vrot.lane.b32.xlu0 %v631, 28
      %v1527 = vpop.permute.xlu0 %1526
      %1592 = vrot.lane.b32.xlu0 %v632, 32
      %v1593 = vpop.permute.xlu0 %1592
      %1594 = vrot.lane.b32.xlu0 %v633, 32
      %v1595 = vpop.permute.xlu0 %1594
      %1596 = vrot.lane.b32.xlu0 %v634, 32
      %v1597 = vpop.permute.xlu0 %1596
      %1598 = vrot.lane.b32.xlu0 %v635, 32
      %v1599 = vpop.permute.xlu0 %1598
      %1600 = vrot.lane.b32.xlu0 %v636, 32
      %v1601 = vpop.permute.xlu0 %1600
      %1602 = vrot.lane.b32.xlu0 %v637, 32
      %v1603 = vpop.permute.xlu0 %1602
      %1604 = vrot.lane.b32.xlu0 %v638, 32
      %v1605 = vpop.permute.xlu0 %1604
      %1606 = vrot.lane.b32.xlu0 %v639, 32
      %v1607 = vpop.permute.xlu0 %1606
      %1608 = vrot.lane.b32.xlu0 %v640, 32
      %v1609 = vpop.permute.xlu0 %1608
      %1610 = vrot.lane.b32.xlu0 %v641, 32
      %v1611 = vpop.permute.xlu0 %1610
      %1612 = vrot.lane.b32.xlu0 %v642, 32
      %v1613 = vpop.permute.xlu0 %1612
      %1614 = vrot.lane.b32.xlu0 %v643, 32
      %v1615 = vpop.permute.xlu0 %1614
      %1616 = vrot.lane.b32.xlu0 %v644, 32
      %v1617 = vpop.permute.xlu0 %1616
      %1618 = vrot.lane.b32.xlu0 %v645, 32
      %v1619 = vpop.permute.xlu0 %1618
      %1620 = vrot.lane.b32.xlu0 %v646, 32
      %v1621 = vpop.permute.xlu0 %1620
      %1622 = vrot.lane.b32.xlu0 %v647, 32
      %v1623 = vpop.permute.xlu0 %1622
      %1624 = vrot.lane.b32.xlu0 %v648, 32
      %v1625 = vpop.permute.xlu0 %1624
      %1626 = vrot.lane.b32.xlu0 %v649, 32
      %v1627 = vpop.permute.xlu0 %1626
      %1628 = vrot.lane.b32.xlu0 %v650, 32
      %v1629 = vpop.permute.xlu0 %1628
      %1630 = vrot.lane.b32.xlu0 %v651, 32
      %v1631 = vpop.permute.xlu0 %1630
      %1632 = vrot.lane.b32.xlu0 %v652, 32
      %v1633 = vpop.permute.xlu0 %1632
      %1634 = vrot.lane.b32.xlu0 %v653, 32
      %v1635 = vpop.permute.xlu0 %1634
      %1636 = vrot.lane.b32.xlu0 %v654, 32
      %v1637 = vpop.permute.xlu0 %1636
      %1638 = vrot.lane.b32.xlu0 %v655, 32
      %v1639 = vpop.permute.xlu0 %1638
      %1640 = vrot.lane.b32.xlu0 %v656, 32
      %v1641 = vpop.permute.xlu0 %1640
      %1642 = vrot.lane.b32.xlu0 %v657, 32
      %v1643 = vpop.permute.xlu0 %1642
      %1644 = vrot.lane.b32.xlu0 %v658, 32
      %v1645 = vpop.permute.xlu0 %1644
      %1646 = vrot.lane.b32.xlu0 %v659, 32
      %v1647 = vpop.permute.xlu0 %1646
      %1648 = vrot.lane.b32.xlu0 %v660, 32
      %v1649 = vpop.permute.xlu0 %1648
      %1650 = vrot.lane.b32.xlu0 %v661, 32
      %v1651 = vpop.permute.xlu0 %1650
      %1652 = vrot.lane.b32.xlu0 %v662, 32
      %v1653 = vpop.permute.xlu0 %1652
      %1654 = vrot.lane.b32.xlu0 %v663, 32
      %v1655 = vpop.permute.xlu0 %1654
      %v1688 = vsel %vm300, %v375, %v697
      %v1689 = vsel %vm300, %v376, %v699
      %v1690 = vsel %vm300, %v377, %v701
      %v1691 = vsel %vm300, %v378, %v703
      %v1692 = vsel %vm300, %v379, %v705
      %v1693 = vsel %vm300, %v380, %v707
      %v1694 = vsel %vm300, %v381, %v709
      %v1695 = vsel %vm300, %v382, %v711
      %v1696 = vsel %vm300, %v383, %v713
      %v1697 = vsel %vm300, %v384, %v715
      %v1698 = vsel %vm300, %v385, %v717
      %v1699 = vsel %vm300, %v386, %v719
      %v1700 = vsel %vm300, %v387, %v721
      %v1701 = vsel %vm300, %v388, %v723
      %v1702 = vsel %vm300, %v389, %v725
      %v1703 = vsel %vm300, %v390, %v727
      %v1704 = vsel %vm300, %v391, %v729
      %v1705 = vsel %vm300, %v392, %v731
      %v1706 = vsel %vm300, %v393, %v733
      %v1707 = vsel %vm300, %v394, %v735
      %v1708 = vsel %vm300, %v395, %v737
      %v1709 = vsel %vm300, %v396, %v739
      %v1710 = vsel %vm300, %v397, %v741
      %v1711 = vsel %vm300, %v398, %v743
      %v1712 = vsel %vm300, %v399, %v745
      %v1713 = vsel %vm300, %v400, %v747
      %v1714 = vsel %vm300, %v401, %v749
      %v1715 = vsel %vm300, %v402, %v751
      %v1716 = vsel %vm300, %v403, %v753
      %v1717 = vsel %vm300, %v404, %v755
      %v1718 = vsel %vm300, %v405, %v757
      %v1719 = vsel %vm300, %v406, %v759
      %vm1720 = vcmask 64512
      %v1721 = vsel %vm1720, %v1688, %v825
      %v1722 = vsel %vm1720, %v1689, %v827
      %v1723 = vsel %vm1720, %v1690, %v829
      %v1724 = vsel %vm1720, %v1691, %v831
      %v1725 = vsel %vm1720, %v1692, %v833
      %v1726 = vsel %vm1720, %v1693, %v835
      %v1727 = vsel %vm1720, %v1694, %v837
      %v1728 = vsel %vm1720, %v1695, %v839
      %v1729 = vsel %vm1720, %v1696, %v841
      %v1730 = vsel %vm1720, %v1697, %v843
      %v1731 = vsel %vm1720, %v1698, %v845
      %v1732 = vsel %vm1720, %v1699, %v847
      %v1733 = vsel %vm1720, %v1700, %v849
      %v1734 = vsel %vm1720, %v1701, %v851
      %v1735 = vsel %vm1720, %v1702, %v853
      %v1736 = vsel %vm1720, %v1703, %v855
      %v1737 = vsel %vm1720, %v1704, %v857
      %v1738 = vsel %vm1720, %v1705, %v859
      %v1739 = vsel %vm1720, %v1706, %v861
      %v1740 = vsel %vm1720, %v1707, %v863
      %v1741 = vsel %vm1720, %v1708, %v865
      %v1742 = vsel %vm1720, %v1709, %v867
      %v1743 = vsel %vm1720, %v1710, %v869
      %v1744 = vsel %vm1720, %v1711, %v871
      %v1745 = vsel %vm1720, %v1712, %v873
      %v1746 = vsel %vm1720, %v1713, %v875
      %v1747 = vsel %vm1720, %v1714, %v877
      %v1748 = vsel %vm1720, %v1715, %v879
      %v1749 = vsel %vm1720, %v1716, %v881
      %v1750 = vsel %vm1720, %v1717, %v883
      %v1751 = vsel %vm1720, %v1718, %v885
      %v1752 = vsel %vm1720, %v1719, %v887
      %vm1753 = vcmask 97280
      %v1754 = vsel %vm1753, %v1721, %v953
      %v1755 = vsel %vm1753, %v1722, %v955
      %v1756 = vsel %vm1753, %v1723, %v957
      %v1757 = vsel %vm1753, %v1724, %v959
      %v1758 = vsel %vm1753, %v1725, %v961
      %v1759 = vsel %vm1753, %v1726, %v963
      %v1760 = vsel %vm1753, %v1727, %v965
      %v1761 = vsel %vm1753, %v1728, %v967
      %v1762 = vsel %vm1753, %v1729, %v969
      %v1763 = vsel %vm1753, %v1730, %v971
      %v1764 = vsel %vm1753, %v1731, %v973
      %v1765 = vsel %vm1753, %v1732, %v975
      %v1766 = vsel %vm1753, %v1733, %v977
      %v1767 = vsel %vm1753, %v1734, %v979
      %v1768 = vsel %vm1753, %v1735, %v981
      %v1769 = vsel %vm1753, %v1736, %v983
      %v1770 = vsel %vm1753, %v1737, %v985
      %v1771 = vsel %vm1753, %v1738, %v987
      %v1772 = vsel %vm1753, %v1739, %v989
      %v1773 = vsel %vm1753, %v1740, %v991
      %v1774 = vsel %vm1753, %v1741, %v993
      %v1775 = vsel %vm1753, %v1742, %v995
      %v1776 = vsel %vm1753, %v1743, %v997
      %v1777 = vsel %vm1753, %v1744, %v999
      %v1778 = vsel %vm1753, %v1745, %v1001
      %v1779 = vsel %vm1753, %v1746, %v1003
      %v1780 = vsel %vm1753, %v1747, %v1005
      %v1781 = vsel %vm1753, %v1748, %v1007
      %v1782 = vsel %vm1753, %v1749, %v1009
      %v1783 = vsel %vm1753, %v1750, %v1011
      %v1784 = vsel %vm1753, %v1751, %v1013
      %v1785 = vsel %vm1753, %v1752, %v1015
      %vm1786 = vcmask 130048
      %v1787 = vsel %vm1786, %v1754, %v1081
      %v1788 = vsel %vm1786, %v1755, %v1083
      %v1789 = vsel %vm1786, %v1756, %v1085
      %v1790 = vsel %vm1786, %v1757, %v1087
      %v1791 = vsel %vm1786, %v1758, %v1089
      %v1792 = vsel %vm1786, %v1759, %v1091
      %v1793 = vsel %vm1786, %v1760, %v1093
      %v1794 = vsel %vm1786, %v1761, %v1095
      %v1795 = vsel %vm1786, %v1762, %v1097
      %v1796 = vsel %vm1786, %v1763, %v1099
      %v1797 = vsel %vm1786, %v1764, %v1101
      %v1798 = vsel %vm1786, %v1765, %v1103
      %v1799 = vsel %vm1786, %v1766, %v1105
      %v1800 = vsel %vm1786, %v1767, %v1107
      %v1801 = vsel %vm1786, %v1768, %v1109
      %v1802 = vsel %vm1786, %v1769, %v1111
      %v1803 = vsel %vm1786, %v1770, %v1113
      %v1804 = vsel %vm1786, %v1771, %v1115
      %v1805 = vsel %vm1786, %v1772, %v1117
      %v1806 = vsel %vm1786, %v1773, %v1119
      %v1807 = vsel %vm1786, %v1774, %v1121
      %v1808 = vsel %vm1786, %v1775, %v1123
      %v1809 = vsel %vm1786, %v1776, %v1125
      %v1810 = vsel %vm1786, %v1777, %v1127
      %v1811 = vsel %vm1786, %v1778, %v1129
      %v1812 = vsel %vm1786, %v1779, %v1131
      %v1813 = vsel %vm1786, %v1780, %v1133
      %v1814 = vsel %vm1786, %v1781, %v1135
      %v1815 = vsel %vm1786, %v1782, %v1137
      %v1816 = vsel %vm1786, %v1783, %v1139
      %v1817 = vsel %vm1786, %v1784, %v1141
      %v1818 = vsel %vm1786, %v1785, %v1143
      %vm1819 = vcmask 162816
      %v1820 = vsel %vm1819, %v1787, %v1209
      %v1821 = vsel %vm1819, %v1788, %v1211
      %v1822 = vsel %vm1819, %v1789, %v1213
      %v1823 = vsel %vm1819, %v1790, %v1215
      %v1824 = vsel %vm1819, %v1791, %v1217
      %v1825 = vsel %vm1819, %v1792, %v1219
      %v1826 = vsel %vm1819, %v1793, %v1221
      %v1827 = vsel %vm1819, %v1794, %v1223
      %v1828 = vsel %vm1819, %v1795, %v1225
      %v1829 = vsel %vm1819, %v1796, %v1227
      %v1830 = vsel %vm1819, %v1797, %v1229
      %v1831 = vsel %vm1819, %v1798, %v1231
      %v1832 = vsel %vm1819, %v1799, %v1233
      %v1833 = vsel %vm1819, %v1800, %v1235
      %v1834 = vsel %vm1819, %v1801, %v1237
      %v1835 = vsel %vm1819, %v1802, %v1239
      %v1836 = vsel %vm1819, %v1803, %v1241
      %v1837 = vsel %vm1819, %v1804, %v1243
      %v1838 = vsel %vm1819, %v1805, %v1245
      %v1839 = vsel %vm1819, %v1806, %v1247
      %v1840 = vsel %vm1819, %v1807, %v1249
      %v1841 = vsel %vm1819, %v1808, %v1251
      %v1842 = vsel %vm1819, %v1809, %v1253
      %v1843 = vsel %vm1819, %v1810, %v1255
      %v1844 = vsel %vm1819, %v1811, %v1257
      %v1845 = vsel %vm1819, %v1812, %v1259
      %v1846 = vsel %vm1819, %v1813, %v1261
      %v1847 = vsel %vm1819, %v1814, %v1263
      %v1848 = vsel %vm1819, %v1815, %v1265
      %v1849 = vsel %vm1819, %v1816, %v1267
      %v1850 = vsel %vm1819, %v1817, %v1269
      %v1851 = vsel %vm1819, %v1818, %v1271
      %vm1852 = vcmask 195584
      %v1853 = vsel %vm1852, %v1820, %v1337
      %v1854 = vsel %vm1852, %v1821, %v1339
      %v1855 = vsel %vm1852, %v1822, %v1341
      %v1856 = vsel %vm1852, %v1823, %v1343
      %v1857 = vsel %vm1852, %v1824, %v1345
      %v1858 = vsel %vm1852, %v1825, %v1347
      %v1859 = vsel %vm1852, %v1826, %v1349
      %v1860 = vsel %vm1852, %v1827, %v1351
      %v1861 = vsel %vm1852, %v1828, %v1353
      %v1862 = vsel %vm1852, %v1829, %v1355
      %v1863 = vsel %vm1852, %v1830, %v1357
      %v1864 = vsel %vm1852, %v1831, %v1359
      %v1865 = vsel %vm1852, %v1832, %v1361
      %v1866 = vsel %vm1852, %v1833, %v1363
      %v1867 = vsel %vm1852, %v1834, %v1365
      %v1868 = vsel %vm1852, %v1835, %v1367
      %v1869 = vsel %vm1852, %v1836, %v1369
      %v1870 = vsel %vm1852, %v1837, %v1371
      %v1871 = vsel %vm1852, %v1838, %v1373
      %v1872 = vsel %vm1852, %v1839, %v1375
      %v1873 = vsel %vm1852, %v1840, %v1377
      %v1874 = vsel %vm1852, %v1841, %v1379
      %v1875 = vsel %vm1852, %v1842, %v1381
      %v1876 = vsel %vm1852, %v1843, %v1383
      %v1877 = vsel %vm1852, %v1844, %v1385
      %v1878 = vsel %vm1852, %v1845, %v1387
      %v1879 = vsel %vm1852, %v1846, %v1389
      %v1880 = vsel %vm1852, %v1847, %v1391
      %v1881 = vsel %vm1852, %v1848, %v1393
      %v1882 = vsel %vm1852, %v1849, %v1395
      %v1883 = vsel %vm1852, %v1850, %v1397
      %v1884 = vsel %vm1852, %v1851, %v1399
      %vm1885 = vcmask 228352
      %v1886 = vsel %vm1885, %v1853, %v1465
      %v1887 = vsel %vm1885, %v1854, %v1467
      %v1888 = vsel %vm1885, %v1855, %v1469
      %v1889 = vsel %vm1885, %v1856, %v1471
      %v1890 = vsel %vm1885, %v1857, %v1473
      %v1891 = vsel %vm1885, %v1858, %v1475
      %v1892 = vsel %vm1885, %v1859, %v1477
      %v1893 = vsel %vm1885, %v1860, %v1479
      %v1894 = vsel %vm1885, %v1861, %v1481
      %v1895 = vsel %vm1885, %v1862, %v1483
      %v1896 = vsel %vm1885, %v1863, %v1485
      %v1897 = vsel %vm1885, %v1864, %v1487
      %v1898 = vsel %vm1885, %v1865, %v1489
      %v1899 = vsel %vm1885, %v1866, %v1491
      %v1900 = vsel %vm1885, %v1867, %v1493
      %v1901 = vsel %vm1885, %v1868, %v1495
      %v1902 = vsel %vm1885, %v1869, %v1497
      %v1903 = vsel %vm1885, %v1870, %v1499
      %v1904 = vsel %vm1885, %v1871, %v1501
      %v1905 = vsel %vm1885, %v1872, %v1503
      %v1906 = vsel %vm1885, %v1873, %v1505
      %v1907 = vsel %vm1885, %v1874, %v1507
      %v1908 = vsel %vm1885, %v1875, %v1509
      %v1909 = vsel %vm1885, %v1876, %v1511
      %v1910 = vsel %vm1885, %v1877, %v1513
      %v1911 = vsel %vm1885, %v1878, %v1515
      %v1912 = vsel %vm1885, %v1879, %v1517
      %v1913 = vsel %vm1885, %v1880, %v1519
      %v1914 = vsel %vm1885, %v1881, %v1521
      %v1915 = vsel %vm1885, %v1882, %v1523
      %v1916 = vsel %vm1885, %v1883, %v1525
      %v1917 = vsel %vm1885, %v1884, %v1527
      %vm1918 = vcmask 261120
      %v1919 = vsel %vm1918, %v1886, %v1593
      %v1920 = vsel %vm1918, %v1887, %v1595
      %v1921 = vsel %vm1918, %v1888, %v1597
      %v1922 = vsel %vm1918, %v1889, %v1599
      %v1923 = vsel %vm1918, %v1890, %v1601
      %v1924 = vsel %vm1918, %v1891, %v1603
      %v1925 = vsel %vm1918, %v1892, %v1605
      %v1926 = vsel %vm1918, %v1893, %v1607
      %v1927 = vsel %vm1918, %v1894, %v1609
      %v1928 = vsel %vm1918, %v1895, %v1611
      %v1929 = vsel %vm1918, %v1896, %v1613
      %v1930 = vsel %vm1918, %v1897, %v1615
      %v1931 = vsel %vm1918, %v1898, %v1617
      %v1932 = vsel %vm1918, %v1899, %v1619
      %v1933 = vsel %vm1918, %v1900, %v1621
      %v1934 = vsel %vm1918, %v1901, %v1623
      %v1935 = vsel %vm1918, %v1902, %v1625
      %v1936 = vsel %vm1918, %v1903, %v1627
      %v1937 = vsel %vm1918, %v1904, %v1629
      %v1938 = vsel %vm1918, %v1905, %v1631
      %v1939 = vsel %vm1918, %v1906, %v1633
      %v1940 = vsel %vm1918, %v1907, %v1635
      %v1941 = vsel %vm1918, %v1908, %v1637
      %v1942 = vsel %vm1918, %v1909, %v1639
      %v1943 = vsel %vm1918, %v1910, %v1641
      %v1944 = vsel %vm1918, %v1911, %v1643
      %v1945 = vsel %vm1918, %v1912, %v1645
      %v1946 = vsel %vm1918, %v1913, %v1647
      %v1947 = vsel %vm1918, %v1914, %v1649
      %v1948 = vsel %vm1918, %v1915, %v1651
      %v1949 = vsel %vm1918, %v1916, %v1653
      %v1950 = vsel %vm1918, %v1917, %v1655
      %v1951 = vld [vmem:[%s3] sm:$0xff]
      %v1952 = vld [vmem:[%s3 + $0x8] sm:$0xff]
      %v1953 = vld [vmem:[%s3 + $0x10] sm:$0xff]
      %v1954 = vld [vmem:[%s3 + $0x18] sm:$0xff]
      %v1955 = vld [vmem:[%s3 + $0x20] sm:$0xf]
      %vm1956 = vcmask 293888
      %v1958 = vsel %vm1956, %v1919, 0
      %v1961 = vsel %vm1956, %v1920, 0
      %v1964 = vsel %vm1956, %v1921, 0
      %v1967 = vsel %vm1956, %v1922, 0
      %v1970 = vsel %vm1956, %v1923, 0
      %v1973 = vsel %vm1956, %v1924, 0
      %v1976 = vsel %vm1956, %v1925, 0
      %v1979 = vsel %vm1956, %v1926, 0
      %v1982 = vsel %vm1956, %v1927, 0
      %v1985 = vsel %vm1956, %v1928, 0
      %v1988 = vsel %vm1956, %v1929, 0
      %v1991 = vsel %vm1956, %v1930, 0
      %v1994 = vsel %vm1956, %v1931, 0
      %v1997 = vsel %vm1956, %v1932, 0
      %v2000 = vsel %vm1956, %v1933, 0
      %v2003 = vsel %vm1956, %v1934, 0
      %v2006 = vsel %vm1956, %v1935, 0
      %v2009 = vsel %vm1956, %v1936, 0
      %v2012 = vsel %vm1956, %v1937, 0
      %v2015 = vsel %vm1956, %v1938, 0
      %v2018 = vsel %vm1956, %v1939, 0
      %v2021 = vsel %vm1956, %v1940, 0
      %v2024 = vsel %vm1956, %v1941, 0
      %v2027 = vsel %vm1956, %v1942, 0
      %v2030 = vsel %vm1956, %v1943, 0
      %v2033 = vsel %vm1956, %v1944, 0
      %v2036 = vsel %vm1956, %v1945, 0
      %v2039 = vsel %vm1956, %v1946, 0
      %v2042 = vsel %vm1956, %v1947, 0
      %v2045 = vsel %vm1956, %v1948, 0
      %v2048 = vsel %vm1956, %v1949, 0
      %v2051 = vsel %vm1956, %v1950, 0
      %vm2053 = vcmask 1043456
      %v2055 = vsel %vm2053, %v1955, 0
      %2057 = vmatprep.subr.mxu0 0.0
      %2058 = vmatpush1.msra.mxu0 %v1951
      %2059 = vmatprep.subr.mxu0 0.0
      %2060 = vmatpush1.msra.mxu0 %v1952
      %2061 = vmatprep.subr.mxu0 0.0
      %2062 = vmatpush1.msra.mxu0 %v1953
      %2063 = vmatprep.subr.mxu0 0.0
      %2064 = vmatpush1.msra.mxu0 %v1954
      %2065 = vmatprep.subr.mxu0 0.0
      %2066 = vmatpush1.msra.mxu0 %v2055
      %2067 = vmatprep.subr.mxu0 0.0
      %2068 = vmatpush1.msra.mxu0 0.0
      %2069 = vmatprep.subr.mxu0 0.0
      %2070 = vmatpush1.msra.mxu0 0.0
      %2071 = vmatprep.subr.mxu0 0.0
      %2072 = vmatpush1.msra.mxu0 0.0
      %2073 = vmatprep.subr.mxu0 0.0
      %2074 = vmatpush1.msra.mxu0 0.0
      %2075 = vmatprep.subr.mxu0 0.0
      %2076 = vmatpush1.msra.mxu0 0.0
      %2077 = vmatprep.subr.mxu0 0.0
      %2078 = vmatpush1.msra.mxu0 0.0
      %2079 = vmatprep.subr.mxu0 0.0
      %2080 = vmatpush1.msra.mxu0 0.0
      %2081 = vmatprep.subr.mxu0 0.0
      %2082 = vmatpush1.msra.mxu0 0.0
      %2083 = vmatprep.subr.mxu0 0.0
      %2084 = vmatpush1.msra.mxu0 0.0
      %2085 = vmatprep.subr.mxu0 0.0
      %2086 = vmatpush1.msra.mxu0 0.0
      %2087 = vmatprep.subr.mxu0 0.0
      %2088 = vmatpush1.msra.mxu0 0.0
      %2089 = vmatprep.subr.mxu0 0.0
      %2090 = vmatpush1.msra.mxu0 0.0
      %2091 = vmatprep.subr.mxu0 0.0
      %2092 = vmatpush1.msra.mxu0 0.0
      %2093 = vmatprep.subr.mxu0 0.0
      %2094 = vmatpush1.msra.mxu0 0.0
      %2095 = vmatprep.subr.mxu0 0.0
      %2096 = vmatpush1.msra.mxu0 0.0
      %2097 = vmatprep.subr.mxu0 0.0
      %2098 = vmatpush1.msra.mxu0 0.0
      %2099 = vmatprep.subr.mxu0 0.0
      %2100 = vmatpush1.msra.mxu0 0.0
      %2101 = vmatprep.subr.mxu0 0.0
      %2102 = vmatpush1.msra.mxu0 0.0
      %2103 = vmatprep.subr.mxu0 0.0
      %2104 = vmatpush1.msra.mxu0 0.0
      %2105 = vmatprep.subr.mxu0 0.0
      %2106 = vmatpush1.msra.mxu0 0.0
      %2107 = vmatprep.subr.mxu0 0.0
      %2108 = vmatpush1.msra.mxu0 0.0
      %2109 = vmatprep.subr.mxu0 0.0
      %2110 = vmatpush1.msra.mxu0 0.0
      %2111 = vmatprep.subr.mxu0 0.0
      %2112 = vmatpush1.msra.mxu0 0.0
      %2113 = vmatprep.subr.mxu0 0.0
      %2114 = vmatpush1.msra.mxu0 0.0
      %2115 = vmatprep.subr.mxu0 0.0
      %2116 = vmatpush1.msra.mxu0 0.0
      %2117 = vmatprep.subr.mxu0 0.0
      %2118 = vmatpush1.msra.mxu0 0.0
      %2119 = vmatprep.subr.mxu0 0.0
      %2120 = vmatpush1.msra.mxu0 0.0
      %2121 = vmatprep.mubr.f32.mxu0 0.0
      %2122 = vmatmul.mubr.f32.gmra.mrb[0].mxu0 %v1958
      %v2123 = vpop.f32.mrb[0].mxu0
      %v2124 = vadd.f32 0.0, %v2123
      %v2125 = vpop.f32.mrb[0].mxu0
      %2126 = vmatprep.mubr.f32.mxu0 0.0
      %2127 = vmatmul.mubr.f32.gmra.mrb[0].mxu0 %v1961
      %v2128 = vpop.f32.mrb[0].mxu0
      %v2129 = vadd.f32 0.0, %v2128
      %v2130 = vpop.f32.mrb[0].mxu0
      %2131 = vmatprep.mubr.f32.mxu0 0.0
      %2132 = vmatmul.mubr.f32.gmra.mrb[0].mxu0 %v1964
      %v2133 = vpop.f32.mrb[0].mxu0
      %v2134 = vadd.f32 0.0, %v2133
      %v2135 = vpop.f32.mrb[0].mxu0
      %2136 = vmatprep.mubr.f32.mxu0 0.0
      %2137 = vmatmul.mubr.f32.gmra.mrb[0].mxu0 %v1967
      %v2138 = vpop.f32.mrb[0].mxu0
      %v2139 = vadd.f32 0.0, %v2138
      %v2140 = vpop.f32.mrb[0].mxu0
      %2141 = vmatprep.mubr.f32.mxu0 0.0
      %2142 = vmatmul.mubr.f32.gmra.mrb[0].mxu0 %v1970
      %v2143 = vpop.f32.mrb[0].mxu0
      %v2144 = vadd.f32 0.0, %v2143
      %v2145 = vpop.f32.mrb[0].mxu0
      %2146 = vmatprep.mubr.f32.mxu0 0.0
      %2147 = vmatmul.mubr.f32.gmra.mrb[0].mxu0 %v1973
      %v2148 = vpop.f32.mrb[0].mxu0
      %v2149 = vadd.f32 0.0, %v2148
      %v2150 = vpop.f32.mrb[0].mxu0
      %2151 = vmatprep.mubr.f32.mxu0 0.0
      %2152 = vmatmul.mubr.f32.gmra.mrb[0].mxu0 %v1976
      %v2153 = vpop.f32.mrb[0].mxu0
      %v2154 = vadd.f32 0.0, %v2153
      %v2155 = vpop.f32.mrb[0].mxu0
      %2156 = vmatprep.mubr.f32.mxu0 0.0
      %2157 = vmatmul.mubr.f32.gmra.mrb[0].mxu0 %v1979
      %v2158 = vpop.f32.mrb[0].mxu0
      %v2159 = vadd.f32 0.0, %v2158
      %v2160 = vpop.f32.mrb[0].mxu0
      %2161 = vmatprep.mubr.f32.mxu0 0.0
      %2162 = vmatmul.mubr.f32.gmra.mrb[0].mxu0 %v1982
      %v2163 = vpop.f32.mrb[0].mxu0
      %v2164 = vadd.f32 0.0, %v2163
      %v2165 = vpop.f32.mrb[0].mxu0
      %2166 = vmatprep.mubr.f32.mxu0 0.0
      %2167 = vmatmul.mubr.f32.gmra.mrb[0].mxu0 %v1985
      %v2168 = vpop.f32.mrb[0].mxu0
      %v2169 = vadd.f32 0.0, %v2168
      %v2170 = vpop.f32.mrb[0].mxu0
      %2171 = vmatprep.mubr.f32.mxu0 0.0
      %2172 = vmatmul.mubr.f32.gmra.mrb[0].mxu0 %v1988
      %v2173 = vpop.f32.mrb[0].mxu0
      %v2174 = vadd.f32 0.0, %v2173
      %v2175 = vpop.f32.mrb[0].mxu0
      %2176 = vmatprep.mubr.f32.mxu0 0.0
      %2177 = vmatmul.mubr.f32.gmra.mrb[0].mxu0 %v1991
      %v2178 = vpop.f32.mrb[0].mxu0
      %v2179 = vadd.f32 0.0, %v2178
      %v2180 = vpop.f32.mrb[0].mxu0
      %2181 = vmatprep.mubr.f32.mxu0 0.0
      %2182 = vmatmul.mubr.f32.gmra.mrb[0].mxu0 %v1994
      %v2183 = vpop.f32.mrb[0].mxu0
      %v2184 = vadd.f32 0.0, %v2183
      %v2185 = vpop.f32.mrb[0].mxu0
      %2186 = vmatprep.mubr.f32.mxu0 0.0
      %2187 = vmatmul.mubr.f32.gmra.mrb[0].mxu0 %v1997
      %v2188 = vpop.f32.mrb[0].mxu0
      %v2189 = vadd.f32 0.0, %v2188
      %v2190 = vpop.f32.mrb[0].mxu0
      %2191 = vmatprep.mubr.f32.mxu0 0.0
      %2192 = vmatmul.mubr.f32.gmra.mrb[0].mxu0 %v2000
      %v2193 = vpop.f32.mrb[0].mxu0
      %v2194 = vadd.f32 0.0, %v2193
      %v2195 = vpop.f32.mrb[0].mxu0
      %2196 = vmatprep.mubr.f32.mxu0 0.0
      %2197 = vmatmul.mubr.f32.gmra.mrb[0].mxu0 %v2003
      %v2198 = vpop.f32.mrb[0].mxu0
      %v2199 = vadd.f32 0.0, %v2198
      %v2200 = vpop.f32.mrb[0].mxu0
      %2201 = vmatprep.mubr.f32.mxu0 0.0
      %2202 = vmatmul.mubr.f32.gmra.mrb[0].mxu0 %v2006
      %v2203 = vpop.f32.mrb[0].mxu0
      %v2204 = vadd.f32 0.0, %v2203
      %v2205 = vpop.f32.mrb[0].mxu0
      %2206 = vmatprep.mubr.f32.mxu0 0.0
      %2207 = vmatmul.mubr.f32.gmra.mrb[0].mxu0 %v2009
      %v2208 = vpop.f32.mrb[0].mxu0
      %v2209 = vadd.f32 0.0, %v2208
      %v2210 = vpop.f32.mrb[0].mxu0
      %2211 = vmatprep.mubr.f32.mxu0 0.0
      %2212 = vmatmul.mubr.f32.gmra.mrb[0].mxu0 %v2012
      %v2213 = vpop.f32.mrb[0].mxu0
      %v2214 = vadd.f32 0.0, %v2213
      %v2215 = vpop.f32.mrb[0].mxu0
      %2216 = vmatprep.mubr.f32.mxu0 0.0
      %2217 = vmatmul.mubr.f32.gmra.mrb[0].mxu0 %v2015
      %v2218 = vpop.f32.mrb[0].mxu0
      %v2219 = vadd.f32 0.0, %v2218
      %v2220 = vpop.f32.mrb[0].mxu0
      %2221 = vmatprep.mubr.f32.mxu0 0.0
      %2222 = vmatmul.mubr.f32.gmra.mrb[0].mxu0 %v2018
      %v2223 = vpop.f32.mrb[0].mxu0
      %v2224 = vadd.f32 0.0, %v2223
      %v2225 = vpop.f32.mrb[0].mxu0
      %2226 = vmatprep.mubr.f32.mxu0 0.0
      %2227 = vmatmul.mubr.f32.gmra.mrb[0].mxu0 %v2021
      %v2228 = vpop.f32.mrb[0].mxu0
      %v2229 = vadd.f32 0.0, %v2228
      %v2230 = vpop.f32.mrb[0].mxu0
      %2231 = vmatprep.mubr.f32.mxu0 0.0
      %2232 = vmatmul.mubr.f32.gmra.mrb[0].mxu0 %v2024
      %v2233 = vpop.f32.mrb[0].mxu0
      %v2234 = vadd.f32 0.0, %v2233
      %v2235 = vpop.f32.mrb[0].mxu0
      %2236 = vmatprep.mubr.f32.mxu0 0.0
      %2237 = vmatmul.mubr.f32.gmra.mrb[0].mxu0 %v2027
      %v2238 = vpop.f32.mrb[0].mxu0
      %v2239 = vadd.f32 0.0, %v2238
      %v2240 = vpop.f32.mrb[0].mxu0
      %2241 = vmatprep.mubr.f32.mxu0 0.0
      %2242 = vmatmul.mubr.f32.gmra.mrb[0].mxu0 %v2030
      %v2243 = vpop.f32.mrb[0].mxu0
      %v2244 = vadd.f32 0.0, %v2243
      %v2245 = vpop.f32.mrb[0].mxu0
      %2246 = vmatprep.mubr.f32.mxu0 0.0
      %2247 = vmatmul.mubr.f32.gmra.mrb[0].mxu0 %v2033
      %v2248 = vpop.f32.mrb[0].mxu0
      %v2249 = vadd.f32 0.0, %v2248
      %v2250 = vpop.f32.mrb[0].mxu0
      %2251 = vmatprep.mubr.f32.mxu0 0.0
      %2252 = vmatmul.mubr.f32.gmra.mrb[0].mxu0 %v2036
      %v2253 = vpop.f32.mrb[0].mxu0
      %v2254 = vadd.f32 0.0, %v2253
      %v2255 = vpop.f32.mrb[0].mxu0
      %2256 = vmatprep.mubr.f32.mxu0 0.0
      %2257 = vmatmul.mubr.f32.gmra.mrb[0].mxu0 %v2039
      %v2258 = vpop.f32.mrb[0].mxu0
      %v2259 = vadd.f32 0.0, %v2258
      %v2260 = vpop.f32.mrb[0].mxu0
      %2261 = vmatprep.mubr.f32.mxu0 0.0
      %2262 = vmatmul.mubr.f32.gmra.mrb[0].mxu0 %v2042
      %v2263 = vpop.f32.mrb[0].mxu0
      %v2264 = vadd.f32 0.0, %v2263
      %v2265 = vpop.f32.mrb[0].mxu0
      %2266 = vmatprep.mubr.f32.mxu0 0.0
      %2267 = vmatmul.mubr.f32.gmra.mrb[0].mxu0 %v2045
      %v2268 = vpop.f32.mrb[0].mxu0
      %v2269 = vadd.f32 0.0, %v2268
      %v2270 = vpop.f32.mrb[0].mxu0
      %2271 = vmatprep.mubr.f32.mxu0 0.0
      %2272 = vmatmul.mubr.f32.gmra.mrb[0].mxu0 %v2048
      %v2273 = vpop.f32.mrb[0].mxu0
      %v2274 = vadd.f32 0.0, %v2273
      %v2275 = vpop.f32.mrb[0].mxu0
      %2276 = vmatprep.mubr.f32.mxu0 0.0
      %2277 = vmatmul.mubr.f32.gmra.mrb[0].mxu0 %v2051
      %v2278 = vpop.f32.mrb[0].mxu0
      %v2279 = vadd.f32 0.0, %v2278
      %v2280 = vpop.f32.mrb[0].mxu0
      %2281 = vdwg.mxu0
      %2282 = vst.msk [vmem:[%s231] sm:$0xff] %vm1720, %v2124
      %2283 = vst.msk [vmem:[%s231 + $0x8] sm:$0xff] %vm1720, %v2129
      %2284 = vst.msk [vmem:[%s231 + $0x10] sm:$0xff] %vm1720, %v2134
      %2285 = vst.msk [vmem:[%s231 + $0x18] sm:$0xff] %vm1720, %v2139
      %2286 = vst.msk [vmem:[%s231 + $0x20] sm:$0xff] %vm1720, %v2144
      %2287 = vst.msk [vmem:[%s231 + $0x28] sm:$0xff] %vm1720, %v2149
      %2288 = vst.msk [vmem:[%s231 + $0x30] sm:$0xff] %vm1720, %v2154
      %2289 = vst.msk [vmem:[%s231 + $0x38] sm:$0xff] %vm1720, %v2159
      %2290 = vst.msk [vmem:[%s231 + $0x40] sm:$0xff] %vm1720, %v2164
      %2291 = vst.msk [vmem:[%s231 + $0x48] sm:$0xff] %vm1720, %v2169
      %2292 = vst.msk [vmem:[%s231 + $0x50] sm:$0xff] %vm1720, %v2174
      %2293 = vst.msk [vmem:[%s231 + $0x58] sm:$0xff] %vm1720, %v2179
      %2294 = vst.msk [vmem:[%s231 + $0x60] sm:$0xff] %vm1720, %v2184
      %2295 = vst.msk [vmem:[%s231 + $0x68] sm:$0xff] %vm1720, %v2189
      %2296 = vst.msk [vmem:[%s231 + $0x70] sm:$0xff] %vm1720, %v2194
      %2297 = vst.msk [vmem:[%s231 + $0x78] sm:$0xff] %vm1720, %v2199
      %2298 = vst.msk [vmem:[%s231 + $0x80] sm:$0xff] %vm1720, %v2204
      %2299 = vst.msk [vmem:[%s231 + $0x88] sm:$0xff] %vm1720, %v2209
      %2300 = vst.msk [vmem:[%s231 + $0x90] sm:$0xff] %vm1720, %v2214
      %2301 = vst.msk [vmem:[%s231 + $0x98] sm:$0xff] %vm1720, %v2219
      %2302 = vst.msk [vmem:[%s231 + $0xa0] sm:$0xff] %vm1720, %v2224
      %2303 = vst.msk [vmem:[%s231 + $0xa8] sm:$0xff] %vm1720, %v2229
      %2304 = vst.msk [vmem:[%s231 + $0xb0] sm:$0xff] %vm1720, %v2234
      %2305 = vst.msk [vmem:[%s231 + $0xb8] sm:$0xff] %vm1720, %v2239
      %2306 = vst.msk [vmem:[%s231 + $0xc0] sm:$0xff] %vm1720, %v2244
      %2307 = vst.msk [vmem:[%s231 + $0xc8] sm:$0xff] %vm1720, %v2249
      %2308 = vst.msk [vmem:[%s231 + $0xd0] sm:$0xff] %vm1720, %v2254
      %2309 = vst.msk [vmem:[%s231 + $0xd8] sm:$0xff] %vm1720, %v2259
      %2310 = vst.msk [vmem:[%s231 + $0xe0] sm:$0xff] %vm1720, %v2264
      %2311 = vst.msk [vmem:[%s231 + $0xe8] sm:$0xff] %vm1720, %v2269
      %2312 = vst.msk [vmem:[%s231 + $0xf0] sm:$0xff] %vm1720, %v2274
      %2313 = vst.msk [vmem:[%s231 + $0xf8] sm:$0xff] %vm1720, %v2279
      %2314 = vmatprep.subr.mxu0 0.0
      %2315 = vmatpush1.msra.mxu0 %v2124
      %2316 = vmatprep.subr.mxu0 0.0
      %2317 = vmatpush1.msra.mxu0 %v2129
      %2318 = vmatprep.subr.mxu0 0.0
      %2319 = vmatpush1.msra.mxu0 %v2134
      %2320 = vmatprep.subr.mxu0 0.0
      %2321 = vmatpush1.msra.mxu0 %v2139
      %2322 = vmatprep.subr.mxu0 0.0
      %2323 = vmatpush1.msra.mxu0 %v2144
      %2324 = vmatprep.subr.mxu0 0.0
      %2325 = vmatpush1.msra.mxu0 %v2149
      %2326 = vmatprep.subr.mxu0 0.0
      %2327 = vmatpush1.msra.mxu0 %v2154
      %2328 = vmatprep.subr.mxu0 0.0
      %2329 = vmatpush1.msra.mxu0 %v2159
      %2330 = vmatprep.subr.mxu0 0.0
      %2331 = vmatpush1.msra.mxu0 %v2164
      %2332 = vmatprep.subr.mxu0 0.0
      %2333 = vmatpush1.msra.mxu0 %v2169
      %2334 = vmatprep.subr.mxu0 0.0
      %2335 = vmatpush1.msra.mxu0 %v2174
      %2336 = vmatprep.subr.mxu0 0.0
      %2337 = vmatpush1.msra.mxu0 %v2179
      %2338 = vmatprep.subr.mxu0 0.0
      %2339 = vmatpush1.msra.mxu0 %v2184
      %2340 = vmatprep.subr.mxu0 0.0
      %2341 = vmatpush1.msra.mxu0 %v2189
      %2342 = vmatprep.subr.mxu0 0.0
      %2343 = vmatpush1.msra.mxu0 %v2194
      %2344 = vmatprep.subr.mxu0 0.0
      %2345 = vmatpush1.msra.mxu0 %v2199
      %2346 = vmatprep.subr.mxu0 0.0
      %2347 = vmatpush1.msra.mxu0 %v2204
      %2348 = vmatprep.subr.mxu0 0.0
      %2349 = vmatpush1.msra.mxu0 %v2209
      %2350 = vmatprep.subr.mxu0 0.0
      %2351 = vmatpush1.msra.mxu0 %v2214
      %2352 = vmatprep.subr.mxu0 0.0
      %2353 = vmatpush1.msra.mxu0 %v2219
      %2354 = vmatprep.subr.mxu0 0.0
      %2355 = vmatpush1.msra.mxu0 %v2224
      %2356 = vmatprep.subr.mxu0 0.0
      %2357 = vmatpush1.msra.mxu0 %v2229
      %2358 = vmatprep.subr.mxu0 0.0
      %2359 = vmatpush1.msra.mxu0 %v2234
      %2360 = vmatprep.subr.mxu0 0.0
      %2361 = vmatpush1.msra.mxu0 %v2239
      %2362 = vmatprep.subr.mxu0 0.0
      %2363 = vmatpush1.msra.mxu0 %v2244
      %2364 = vmatprep.subr.mxu0 0.0
      %2365 = vmatpush1.msra.mxu0 %v2249
      %2366 = vmatprep.subr.mxu0 0.0
      %2367 = vmatpush1.msra.mxu0 %v2254
      %2368 = vmatprep.subr.mxu0 0.0
      %2369 = vmatpush1.msra.mxu0 %v2259
      %2370 = vmatprep.subr.mxu0 0.0
      %2371 = vmatpush1.msra.mxu0 %v2264
      %2372 = vmatprep.subr.mxu0 0.0
      %2373 = vmatpush1.msra.mxu0 %v2269
      %2374 = vmatprep.subr.mxu0 0.0
      %2375 = vmatpush1.msra.mxu0 %v2274
      %2376 = vmatprep.subr.mxu0 0.0
      %2377 = vmatpush1.msra.mxu0 %v2279
      %2378 = vmatprep.mubr.f32.mxu0 1.0
      %2379 = vmatmul.mubr.f32.gmra.mrb[0].mxu0 1.0
      %v2380 = vpop.f32.mrb[0].mxu0
      %v2381 = vadd.f32 0.0, %v2380
      %v2382 = vpop.f32.mrb[0].mxu0
      %2383 = vdwg.mxu0
      %v2384 = vmul.f32 %v2381, 0.00390625
      %v2385 = vlaneseq
      %v2386 = vshrl.u32 %v2385, 7
      %v2387 = vsub.s32 0, %v2386
      %v2388 = vrot.slane %v2384, %v2387
      %v2389 = vsub.f32 %v2124, %v2388
      %v2390 = vsub.f32 %v2129, %v2388
      %v2391 = vsub.f32 %v2134, %v2388
      %v2392 = vsub.f32 %v2139, %v2388
      %v2393 = vsub.f32 %v2144, %v2388
      %v2394 = vsub.f32 %v2149, %v2388
      %v2395 = vsub.f32 %v2154, %v2388
      %v2396 = vsub.f32 %v2159, %v2388
      %v2397 = vsub.f32 %v2164, %v2388
      %v2398 = vsub.f32 %v2169, %v2388
      %v2399 = vsub.f32 %v2174, %v2388
      %v2400 = vsub.f32 %v2179, %v2388
      %v2401 = vsub.f32 %v2184, %v2388
      %v2402 = vsub.f32 %v2189, %v2388
      %v2403 = vsub.f32 %v2194, %v2388
      %v2404 = vsub.f32 %v2199, %v2388
      %v2405 = vsub.f32 %v2204, %v2388
      %v2406 = vsub.f32 %v2209, %v2388
      %v2407 = vsub.f32 %v2214, %v2388
      %v2408 = vsub.f32 %v2219, %v2388
      %v2409 = vsub.f32 %v2224, %v2388
      %v2410 = vsub.f32 %v2229, %v2388
      %v2411 = vsub.f32 %v2234, %v2388
      %v2412 = vsub.f32 %v2239, %v2388
      %v2413 = vsub.f32 %v2244, %v2388
      %v2414 = vsub.f32 %v2249, %v2388
      %v2415 = vsub.f32 %v2254, %v2388
      %v2416 = vsub.f32 %v2259, %v2388
      %v2417 = vsub.f32 %v2264, %v2388
      %v2418 = vsub.f32 %v2269, %v2388
      %v2419 = vsub.f32 %v2274, %v2388
      %v2420 = vsub.f32 %v2279, %v2388
      %v2421 = vmul.f32 %v2389, %v2389
      %v2422 = vmul.f32 %v2390, %v2390
      %v2423 = vmul.f32 %v2391, %v2391
      %v2424 = vmul.f32 %v2392, %v2392
      %v2425 = vmul.f32 %v2393, %v2393
      %v2426 = vmul.f32 %v2394, %v2394
      %v2427 = vmul.f32 %v2395, %v2395
      %v2428 = vmul.f32 %v2396, %v2396
      %v2429 = vmul.f32 %v2397, %v2397
      %v2430 = vmul.f32 %v2398, %v2398
      %v2431 = vmul.f32 %v2399, %v2399
      %v2432 = vmul.f32 %v2400, %v2400
      %v2433 = vmul.f32 %v2401, %v2401
      %v2434 = vmul.f32 %v2402, %v2402
      %v2435 = vmul.f32 %v2403, %v2403
      %v2436 = vmul.f32 %v2404, %v2404
      %v2437 = vmul.f32 %v2405, %v2405
      %v2438 = vmul.f32 %v2406, %v2406
      %v2439 = vmul.f32 %v2407, %v2407
      %v2440 = vmul.f32 %v2408, %v2408
      %v2441 = vmul.f32 %v2409, %v2409
      %v2442 = vmul.f32 %v2410, %v2410
      %v2443 = vmul.f32 %v2411, %v2411
      %v2444 = vmul.f32 %v2412, %v2412
      %v2445 = vmul.f32 %v2413, %v2413
      %v2446 = vmul.f32 %v2414, %v2414
      %v2447 = vmul.f32 %v2415, %v2415
      %v2448 = vmul.f32 %v2416, %v2416
      %v2449 = vmul.f32 %v2417, %v2417
      %v2450 = vmul.f32 %v2418, %v2418
      %v2451 = vmul.f32 %v2419, %v2419
      %v2452 = vmul.f32 %v2420, %v2420
      %2453 = vmatprep.subr.mxu0 0.0
      %2454 = vmatpush1.msra.mxu0 %v2421
      %2455 = vmatprep.subr.mxu0 0.0
      %2456 = vmatpush1.msra.mxu0 %v2422
      %2457 = vmatprep.subr.mxu0 0.0
      %2458 = vmatpush1.msra.mxu0 %v2423
      %2459 = vmatprep.subr.mxu0 0.0
      %2460 = vmatpush1.msra.mxu0 %v2424
      %2461 = vmatprep.subr.mxu0 0.0
      %2462 = vmatpush1.msra.mxu0 %v2425
      %2463 = vmatprep.subr.mxu0 0.0
      %2464 = vmatpush1.msra.mxu0 %v2426
      %2465 = vmatprep.subr.mxu0 0.0
      %2466 = vmatpush1.msra.mxu0 %v2427
      %2467 = vmatprep.subr.mxu0 0.0
      %2468 = vmatpush1.msra.mxu0 %v2428
      %2469 = vmatprep.subr.mxu0 0.0
      %2470 = vmatpush1.msra.mxu0 %v2429
      %2471 = vmatprep.subr.mxu0 0.0
      %2472 = vmatpush1.msra.mxu0 %v2430
      %2473 = vmatprep.subr.mxu0 0.0
      %2474 = vmatpush1.msra.mxu0 %v2431
      %2475 = vmatprep.subr.mxu0 0.0
      %2476 = vmatpush1.msra.mxu0 %v2432
      %2477 = vmatprep.subr.mxu0 0.0
      %2478 = vmatpush1.msra.mxu0 %v2433
      %2479 = vmatprep.subr.mxu0 0.0
      %2480 = vmatpush1.msra.mxu0 %v2434
      %2481 = vmatprep.subr.mxu0 0.0
      %2482 = vmatpush1.msra.mxu0 %v2435
      %2483 = vmatprep.subr.mxu0 0.0
      %2484 = vmatpush1.msra.mxu0 %v2436
      %2485 = vmatprep.subr.mxu0 0.0
      %2486 = vmatpush1.msra.mxu0 %v2437
      %2487 = vmatprep.subr.mxu0 0.0
      %2488 = vmatpush1.msra.mxu0 %v2438
      %2489 = vmatprep.subr.mxu0 0.0
      %2490 = vmatpush1.msra.mxu0 %v2439
      %2491 = vmatprep.subr.mxu0 0.0
      %2492 = vmatpush1.msra.mxu0 %v2440
      %2493 = vmatprep.subr.mxu0 0.0
      %2494 = vmatpush1.msra.mxu0 %v2441
      %2495 = vmatprep.subr.mxu0 0.0
      %2496 = vmatpush1.msra.mxu0 %v2442
      %2497 = vmatprep.subr.mxu0 0.0
      %2498 = vmatpush1.msra.mxu0 %v2443
      %2499 = vmatprep.subr.mxu0 0.0
      %2500 = vmatpush1.msra.mxu0 %v2444
      %2501 = vmatprep.subr.mxu0 0.0
      %2502 = vmatpush1.msra.mxu0 %v2445
      %2503 = vmatprep.subr.mxu0 0.0
      %2504 = vmatpush1.msra.mxu0 %v2446
      %2505 = vmatprep.subr.mxu0 0.0
      %2506 = vmatpush1.msra.mxu0 %v2447
      %2507 = vmatprep.subr.mxu0 0.0
      %2508 = vmatpush1.msra.mxu0 %v2448
      %2509 = vmatprep.subr.mxu0 0.0
      %2510 = vmatpush1.msra.mxu0 %v2449
      %2511 = vmatprep.subr.mxu0 0.0
      %2512 = vmatpush1.msra.mxu0 %v2450
      %2513 = vmatprep.subr.mxu0 0.0
      %2514 = vmatpush1.msra.mxu0 %v2451
      %2515 = vmatprep.subr.mxu0 0.0
      %2516 = vmatpush1.msra.mxu0 %v2452
      %2517 = vmatprep.mubr.f32.mxu0 1.0
      %2518 = vmatmul.mubr.f32.gmra.mrb[0].mxu0 1.0
      %v2519 = vpop.f32.mrb[0].mxu0
      %v2520 = vadd.f32 0.0, %v2519
      %v2521 = vpop.f32.mrb[0].mxu0
      %2522 = vdwg.mxu0
      %v2524 = vrot.slane %v2520, 7
      %vm2526 = vcmask 1040384
      %v2527 = vsel %vm2526, %v2381, %v2524
      %vm2528 = vcmask 58368
      %2529 = vst.msk [vmem:[%s235] sm:$0x3] %vm2528, %v2527
      %p2530 = scmp.lt.s32.totalorder %s17, 1
      %s2531 = scalar_select %p2530, %s17, 1
      %s2532 = smul.addr %s2531, 32
      %s2533 = smul.addr %s2532, 8
      %s2534 = scalar_lea.vmem %s4, %s2533
      %p2535 = scmp.lt.s32.totalorder %s17, 1
      %s2536 = scalar_select %p2535, %s17, 1
      %s2537 = smul.addr %s2536, 2
      %s2538 = scalar_lea.vmem %s5, %s2537
      // Predicated region
      $region37: #{_lambda_.3} parent=35 // pred_check
        %p2539 = pneg %p124
      $region38: #{_lambda_.3} parent=35 // pred_check_branch
        %2541 = sbr.rel (%p2539) target = $region40
      $region39: #{_lambda_.3} parent=35 // pred_region
        _
      $region40: #{_lambda_.3} parent=35 // pred_fallthru
        _
      // Predicated region
      $region41: #{_lambda_.3} parent=35 // pred_check
        %p2542 = pneg %p150
      $region42: #{_lambda_.3} parent=35 // pred_check_branch
        %2544 = sbr.rel (%p2542) target = $region44
      $region43: #{_lambda_.3} parent=35 // pred_region
        _
      $region44: #{_lambda_.3} parent=35 // pred_fallthru
        _
    $region36: #{_lambda_.3} parent=5 // pred_fallthru
      _
    %p2545 = scmp.le.s32.totalorder 2, %s12
    // Predicated region
    $region45: #{_lambda_.3} parent=5 // pred_check
      %p2546 = pneg %p2545
    $region46: #{_lambda_.3} parent=5 // pred_check_branch
      %2548 = sbr.rel (%p2546) target = $region48
    $region47: #{_lambda_.3} parent=5 // pred_region
      %s2549 = ssub.s32 %s12, 2
      // Predicated region
      $region49: #{_lambda_.3} parent=47 // pred_check
        %p2550 = pneg %p130
      $region50: #{_lambda_.3} parent=47 // pred_check_branch
        %2552 = sbr.rel (%p2550) target = $region52
      $region51: #{_lambda_.3} parent=47 // pred_region
        %p2553 = scmp.lt.s32.totalorder %s18, 1
        %s2554 = scalar_select %p2553, %s18, 1
        %s2555 = smul.addr %s2554, 32
        %s2556 = smul.addr %s2555, 8
        %s2557 = scalar_lea.vmem %s4, %s2556
      $region52: #{_lambda_.3} parent=47 // pred_fallthru
        _
      // Predicated region
      $region53: #{_lambda_.3} parent=47 // pred_check
        %p2558 = pneg %p156
      $region54: #{_lambda_.3} parent=47 // pred_check_branch
        %2560 = sbr.rel (%p2558) target = $region56
      $region55: #{_lambda_.3} parent=47 // pred_region
        %p2561 = scmp.lt.s32.totalorder %s18, 1
        %s2562 = scalar_select %p2561, %s18, 1
        %s2563 = smul.addr %s2562, 2
        %s2564 = scalar_lea.vmem %s5, %s2563
      $region56: #{_lambda_.3} parent=47 // pred_fallthru
        _
    $region48: #{_lambda_.3} parent=5 // pred_fallthru
      _
  $region6: #{_lambda_.3} parent=0 // loop_footer
    %s16 = sadd.s32 1, %s12
  $region7: #{_lambda_.3} parent=0 // loop_footer_branch
    %11 = sbr.rel target = $region3
  $region8: #{_lambda_.3} parent=0 // loop_exit
    _

// kernel: _lambda_.4
$region0: #{_lambda_.4}
  #allocation0 [shape = 'u32[]', space=smem, size = 0x4, offset = 0x4, fixed_abs, tag = 'smem constant byte address 0x4 - core index']
  #allocation1 [shape = 'u32[144,128]{1,0:T(1,128)}', space=vmem, size = 0x12000, scoped, tag = 'internal scratch']
  #allocation2 [shape = 'f32[18,32,8]{2,1,0:T(8,128)}', space=vmem, size = 0x48000, scoped, tag = 'scratch operand']
  %s0 = inlined_call_operand.vmem [shape: f32[2,16,16,8], index: 0, kind: input, shape index: {}]
  %s1 = inlined_call_operand.vmem [shape: f32[1,8], index: 1, kind: input, shape index: {}]
  %s2 = inlined_call_operand.vmem [shape: f32[1,8], index: 2, kind: input, shape index: {}]
  %s3 = inlined_call_operand.vmem [shape: f32[72,8], index: 3, kind: input, shape index: {}]
  %s4 = inlined_call_operand.vmem [shape: f32[2,256,8], index: 4, kind: output, shape index: {0}]
  %s5 = inlined_call_operand.vmem [shape: f32[2,2,8], index: 5, kind: output, shape index: {1}]
  %6 = xla_tuple %s4, %s5
  %s7 = sld [smem:[#allocation0]]
  $region57: #{_lambda_.4} parent=0
    _
  %s9 = ssub.s32 1, %s7
  %s10 = scalar_select 0, %s9, %s7
  loop: start=0, step=1, limit=4
  $region2: #{_lambda_.4} parent=0 // loop_pre_header
    _
  $region3: #{_lambda_.4} parent=0 // loop_header
    %s12 = sphi 0, %s16
    %p13 = scmp.ge.s32.totalorder %s12, 4
    %s22 = sphi 0, %s24
    %s25 = sphi 0, %s22
    %s26 = sphi 0, %s25
    %s42 = sphi 0, %s26
    %s46 = sphi 0, %s46
    %s48 = sphi 0, %s46
    %s49 = sphi 0, %s48
    %s63 = sphi 0, %s49
    %s67 = sphi 0, %s67
    %s69 = sphi 0, %s67
    %s70 = sphi 0, %s69
    %s84 = sphi 0, %s70
    %s88 = sphi 0, %s88
    %s90 = sphi 0, %s88
    %s91 = sphi 0, %s90
    %s105 = sphi 0, %s91
    %s111 = sphi 0, %s113
    %s114 = sphi 0, %s111
    %s115 = sphi 0, %s114
    %s131 = sphi 0, %s115
    %s137 = sphi 0, %s139
    %s140 = sphi 0, %s137
    %s141 = sphi 0, %s140
    %s157 = sphi 0, %s141
  $region4: #{_lambda_.4} parent=0 // loop_header_branch
    %15 = sbr.rel (%p13) target = $region8
  $region5: #{_lambda_.4} parent=0 // loop_body
    %s17 = ssub.s32 %s12, 1
    %s18 = ssub.s32 %s12, 2
    %s19 = sadd.s32 %s12, 1
    %s20 = ssub.s32 %s12, %s19
    %p21 = scmp.eq.s32.totalorder %s20, 0
    %s23 = sadd.s32 %s22, 1
    %s24 = scalar_select %p21, %s22, %s23
    %p27 = pneg %p21
    %p28 = scmp.eq.s32.totalorder %s12, 1
    %p29 = por %p27, %p28
    %p30 = scmp.ne.s32.totalorder %s22, %s25
    %p31 = scmp.eq.s32.totalorder %s12, 0
    %p32 = por %p30, %p31
    %p33 = scmp.ne.s32.totalorder %s22, %s25
    %p34 = scmp.eq.s32.totalorder %s17, 1
    %p35 = por %p33, %p34
    %p36 = scmp.ne.s32.totalorder %s25, %s26
    %p37 = scmp.eq.s32.totalorder %s17, 0
    %p38 = por %p36, %p37
    %p39 = scmp.ne.s32.totalorder %s25, %s26
    %p40 = scmp.eq.s32.totalorder %s18, 1
    %p41 = por %p39, %p40
    %p43 = scmp.ne.s32.totalorder %s26, %s42
    %p44 = scmp.eq.s32.totalorder %s18, 0
    %p45 = por %p43, %p44
    %s47 = sadd.s32 %s46, 1
    %p50 = scmp.eq.s32.totalorder %s12, 1
    %p51 = scmp.ne.s32.totalorder %s46, %s48
    %p52 = scmp.eq.s32.totalorder %s12, 0
    %p53 = por %p51, %p52
    %p54 = scmp.ne.s32.totalorder %s46, %s48
    %p55 = scmp.eq.s32.totalorder %s17, 1
    %p56 = por %p54, %p55
    %p57 = scmp.ne.s32.totalorder %s48, %s49
    %p58 = scmp.eq.s32.totalorder %s17, 0
    %p59 = por %p57, %p58
    %p60 = scmp.ne.s32.totalorder %s48, %s49
    %p61 = scmp.eq.s32.totalorder %s18, 1
    %p62 = por %p60, %p61
    %p64 = scmp.ne.s32.totalorder %s49, %s63
    %p65 = scmp.eq.s32.totalorder %s18, 0
    %p66 = por %p64, %p65
    %s68 = sadd.s32 %s67, 1
    %p71 = scmp.eq.s32.totalorder %s12, 1
    %p72 = scmp.ne.s32.totalorder %s67, %s69
    %p73 = scmp.eq.s32.totalorder %s12, 0
    %p74 = por %p72, %p73
    %p75 = scmp.ne.s32.totalorder %s67, %s69
    %p76 = scmp.eq.s32.totalorder %s17, 1
    %p77 = por %p75, %p76
    %p78 = scmp.ne.s32.totalorder %s69, %s70
    %p79 = scmp.eq.s32.totalorder %s17, 0
    %p80 = por %p78, %p79
    %p81 = scmp.ne.s32.totalorder %s69, %s70
    %p82 = scmp.eq.s32.totalorder %s18, 1
    %p83 = por %p81, %p82
    %p85 = scmp.ne.s32.totalorder %s70, %s84
    %p86 = scmp.eq.s32.totalorder %s18, 0
    %p87 = por %p85, %p86
    %s89 = sadd.s32 %s88, 1
    %p92 = scmp.eq.s32.totalorder %s12, 1
    %p93 = scmp.ne.s32.totalorder %s88, %s90
    %p94 = scmp.eq.s32.totalorder %s12, 0
    %p95 = por %p93, %p94
    %p96 = scmp.ne.s32.totalorder %s88, %s90
    %p97 = scmp.eq.s32.totalorder %s17, 1
    %p98 = por %p96, %p97
    %p99 = scmp.ne.s32.totalorder %s90, %s91
    %p100 = scmp.eq.s32.totalorder %s17, 0
    %p101 = por %p99, %p100
    %p102 = scmp.ne.s32.totalorder %s90, %s91
    %p103 = scmp.eq.s32.totalorder %s18, 1
    %p104 = por %p102, %p103
    %p106 = scmp.ne.s32.totalorder %s91, %s105
    %p107 = scmp.eq.s32.totalorder %s18, 0
    %p108 = por %p106, %p107
    %s109 = ssub.s32 %s12, %s19
    %p110 = scmp.eq.s32.totalorder %s109, 0
    %s112 = sadd.s32 %s111, 1
    %s113 = scalar_select %p110, %s111, %s112
    %p116 = pneg %p110
    %p117 = scmp.eq.s32.totalorder %s12, 1
    %p118 = por %p116, %p117
    %p119 = scmp.ne.s32.totalorder %s111, %s114
    %p120 = scmp.eq.s32.totalorder %s12, 0
    %p121 = por %p119, %p120
    %p122 = scmp.ne.s32.totalorder %s111, %s114
    %p123 = scmp.eq.s32.totalorder %s17, 1
    %p124 = por %p122, %p123
    %p125 = scmp.ne.s32.totalorder %s114, %s115
    %p126 = scmp.eq.s32.totalorder %s17, 0
    %p127 = por %p125, %p126
    %p128 = scmp.ne.s32.totalorder %s114, %s115
    %p129 = scmp.eq.s32.totalorder %s18, 1
    %p130 = por %p128, %p129
    %p132 = scmp.ne.s32.totalorder %s115, %s131
    %p133 = scmp.eq.s32.totalorder %s18, 0
    %p134 = por %p132, %p133
    %s135 = ssub.s32 %s12, %s19
    %p136 = scmp.eq.s32.totalorder %s135, 0
    %s138 = sadd.s32 %s137, 1
    %s139 = scalar_select %p136, %s137, %s138
    %p142 = pneg %p136
    %p143 = scmp.eq.s32.totalorder %s12, 1
    %p144 = por %p142, %p143
    %p145 = scmp.ne.s32.totalorder %s137, %s140
    %p146 = scmp.eq.s32.totalorder %s12, 0
    %p147 = por %p145, %p146
    %p148 = scmp.ne.s32.totalorder %s137, %s140
    %p149 = scmp.eq.s32.totalorder %s17, 1
    %p150 = por %p148, %p149
    %p151 = scmp.ne.s32.totalorder %s140, %s141
    %p152 = scmp.eq.s32.totalorder %s17, 0
    %p153 = por %p151, %p152
    %p154 = scmp.ne.s32.totalorder %s140, %s141
    %p155 = scmp.eq.s32.totalorder %s18, 1
    %p156 = por %p154, %p155
    %p158 = scmp.ne.s32.totalorder %s141, %s157
    %p159 = scmp.eq.s32.totalorder %s18, 0
    %p160 = por %p158, %p159
    %p161 = scmp.le.s32.totalorder 1, %s12
    %p162 = scmp.lt.s32.totalorder %s12, 3
    %p163 = pnand %p161, %p162
    %p164 = pneg %p163
    // Predicated region
    $region9: #{_lambda_.4} parent=5 // pred_check
      _
    $region10: #{_lambda_.4} parent=5 // pred_check_branch
      %166 = sbr.rel (%p163) target = $region12
    $region11: #{_lambda_.4} parent=5 // pred_region
      %s167 = ssub.s32 %s12, 1
      // Predicated region
      $region13: #{_lambda_.4} parent=11 // pred_check
        %p168 = pneg %p59
      $region14: #{_lambda_.4} parent=11 // pred_check_branch
        %170 = sbr.rel (%p168) target = $region16
      $region15: #{_lambda_.4} parent=11 // pred_region
        _
      $region16: #{_lambda_.4} parent=11 // pred_fallthru
        _
      // Predicated region
      $region17: #{_lambda_.4} parent=11 // pred_check
        %p171 = pneg %p80
      $region18: #{_lambda_.4} parent=11 // pred_check_branch
        %173 = sbr.rel (%p171) target = $region20
      $region19: #{_lambda_.4} parent=11 // pred_region
        _
      $region20: #{_lambda_.4} parent=11 // pred_fallthru
        _
      // Predicated region
      $region21: #{_lambda_.4} parent=11 // pred_check
        %p174 = pneg %p101
      $region22: #{_lambda_.4} parent=11 // pred_check_branch
        %176 = sbr.rel (%p174) target = $region24
      $region23: #{_lambda_.4} parent=11 // pred_region
        _
      $region24: #{_lambda_.4} parent=11 // pred_fallthru
        _
    $region12: #{_lambda_.4} parent=5 // pred_fallthru
      _
    %p177 = scmp.lt.s32.totalorder %s12, 2
    // Predicated region
    $region25: #{_lambda_.4} parent=5 // pred_check
      %p178 = pneg %p177
    $region26: #{_lambda_.4} parent=5 // pred_check_branch
      %180 = sbr.rel (%p178) target = $region28
    $region27: #{_lambda_.4} parent=5 // pred_region
      // Predicated region
      $region29: #{_lambda_.4} parent=27 // pred_check
        %p181 = pneg %p32
      $region30: #{_lambda_.4} parent=27 // pred_check_branch
        %183 = sbr.rel (%p181) target = $region32
      $region31: #{_lambda_.4} parent=27 // pred_region
        %p184 = scmp.lt.s32.totalorder %s12, 1
        %s185 = scalar_select %p184, %s12, 1
        %s186 = smul.addr %s185, 32
        %s187 = smul.addr %s186, 8
        %s188 = scalar_lea.vmem %s0, %s187
      $region32: #{_lambda_.4} parent=27 // pred_fallthru
        _
    $region28: #{_lambda_.4} parent=5 // pred_fallthru
      _
    %p189 = scmp.le.s32.totalorder 1, %s12
    %p190 = scmp.lt.s32.totalorder %s12, 3
    %p191 = pnand %p189, %p190
    %p192 = pneg %p191
    // Predicated region
    $region33: #{_lambda_.4} parent=5 // pred_check
      _
    $region34: #{_lambda_.4} parent=5 // pred_check_branch
      %194 = sbr.rel (%p191) target = $region36
    $region35: #{_lambda_.4} parent=5 // pred_region
      %s195 = ssub.s32 %s12, 1
      %p196 = scmp.lt.s32.totalorder %s17, 1
      %s197 = scalar_select %p196, %s17, 1
      %s198 = smul.addr %s197, 32
      %s199 = smul.addr %s198, 8
      %s200 = scalar_lea.vmem %s0, %s199
      %p201 = pneg %p38
      %p202 = pneg %p35
      %p203 = pneg %p59
      %p204 = pneg %p56
      %p205 = pneg %p80
      %p206 = pneg %p77
      %p207 = pneg %p101
      %p208 = pneg %p98
      %p209 = pneg %p127
      %p210 = pneg %p124
      %p211 = scmp.lt.s32.totalorder %s17, 1
      %s212 = scalar_select %p211, %s17, 1
      %s213 = smul.addr %s212, 32
      %s214 = smul.addr %s213, 8
      %s215 = scalar_lea.vmem %s4, %s214
      %p216 = pneg %p153
      %p217 = pneg %p150
      %p218 = scmp.lt.s32.totalorder %s17, 1
      %s219 = scalar_select %p218, %s17, 1
      %s220 = smul.addr %s219, 2
      %s221 = scalar_lea.vmem %s5, %s220
      %p222 = scmp.lt.s32.totalorder %s17, 1
      %s223 = scalar_select %p222, %s17, 1
      %s224 = smul.addr %s223, 32
      %s225 = smul.addr %s224, 8
      %s226 = scalar_lea.vmem %s0, %s225
      %p227 = scmp.lt.s32.totalorder %s17, 1
      %s228 = scalar_select %p227, %s17, 1
      %s229 = smul.addr %s228, 32
      %s230 = smul.addr %s229, 8
      %s231 = scalar_lea.vmem %s4, %s230
      %p232 = scmp.lt.s32.totalorder %s17, 1
      %s233 = scalar_select %p232, %s17, 1
      %s234 = smul.addr %s233, 2
      %s235 = scalar_lea.vmem %s5, %s234
      %v236 = vld [vmem:[%s226] sm:$0xff]
      %v237 = vld [vmem:[%s226 + $0x8] sm:$0xff]
      %v238 = vld [vmem:[%s226 + $0x10] sm:$0xff]
      %v239 = vld [vmem:[%s226 + $0x18] sm:$0xff]
      %v240 = vld [vmem:[%s226 + $0x20] sm:$0xff]
      %v241 = vld [vmem:[%s226 + $0x28] sm:$0xff]
      %v242 = vld [vmem:[%s226 + $0x30] sm:$0xff]
      %v243 = vld [vmem:[%s226 + $0x38] sm:$0xff]
      %v244 = vld [vmem:[%s226 + $0x40] sm:$0xff]
      %v245 = vld [vmem:[%s226 + $0x48] sm:$0xff]
      %v246 = vld [vmem:[%s226 + $0x50] sm:$0xff]
      %v247 = vld [vmem:[%s226 + $0x58] sm:$0xff]
      %v248 = vld [vmem:[%s226 + $0x60] sm:$0xff]
      %v249 = vld [vmem:[%s226 + $0x68] sm:$0xff]
      %v250 = vld [vmem:[%s226 + $0x70] sm:$0xff]
      %v251 = vld [vmem:[%s226 + $0x78] sm:$0xff]
      %v252 = vld [vmem:[%s226 + $0x80] sm:$0xff]
      %v253 = vld [vmem:[%s226 + $0x88] sm:$0xff]
      %v254 = vld [vmem:[%s226 + $0x90] sm:$0xff]
      %v255 = vld [vmem:[%s226 + $0x98] sm:$0xff]
      %v256 = vld [vmem:[%s226 + $0xa0] sm:$0xff]
      %v257 = vld [vmem:[%s226 + $0xa8] sm:$0xff]
      %v258 = vld [vmem:[%s226 + $0xb0] sm:$0xff]
      %v259 = vld [vmem:[%s226 + $0xb8] sm:$0xff]
      %v260 = vld [vmem:[%s226 + $0xc0] sm:$0xff]
      %v261 = vld [vmem:[%s226 + $0xc8] sm:$0xff]
      %v262 = vld [vmem:[%s226 + $0xd0] sm:$0xff]
      %v263 = vld [vmem:[%s226 + $0xd8] sm:$0xff]
      %v264 = vld [vmem:[%s226 + $0xe0] sm:$0xff]
      %v265 = vld [vmem:[%s226 + $0xe8] sm:$0xff]
      %v266 = vld [vmem:[%s226 + $0xf0] sm:$0xff]
      %v267 = vld [vmem:[%s226 + $0xf8] sm:$0xff]
      %v268 = vld [vmem:[%s1] sm:$0x1]
      %v270 = vlaneseq
      %v271 = vshrl.u32 %v270, 7
      %v272 = vsub.s32 0, %v271
      %v273 = vrot.slane %v268, %v272
      %v275 = vmul.f32 %v236, %v273
      %v276 = vmul.f32 %v237, %v273
      %v277 = vmul.f32 %v238, %v273
      %v278 = vmul.f32 %v239, %v273
      %v279 = vmul.f32 %v240, %v273
      %v280 = vmul.f32 %v241, %v273
      %v281 = vmul.f32 %v242, %v273
      %v282 = vmul.f32 %v243, %v273
      %v283 = vmul.f32 %v244, %v273
      %v284 = vmul.f32 %v245, %v273
      %v285 = vmul.f32 %v246, %v273
      %v286 = vmul.f32 %v247, %v273
      %v287 = vmul.f32 %v248, %v273
      %v288 = vmul.f32 %v249, %v273
      %v289 = vmul.f32 %v250, %v273
      %v290 = vmul.f32 %v251, %v273
      %v291 = vmul.f32 %v252, %v273
      %v292 = vmul.f32 %v253, %v273
      %v293 = vmul.f32 %v254, %v273
      %v294 = vmul.f32 %v255, %v273
      %v295 = vmul.f32 %v256, %v273
      %v296 = vmul.f32 %v257, %v273
      %v297 = vmul.f32 %v258, %v273
      %v298 = vmul.f32 %v259, %v273
      %v299 = vmul.f32 %v260, %v273
      %v300 = vmul.f32 %v261, %v273
      %v301 = vmul.f32 %v262, %v273
      %v302 = vmul.f32 %v263, %v273
      %v303 = vmul.f32 %v264, %v273
      %v304 = vmul.f32 %v265, %v273
      %v305 = vmul.f32 %v266, %v273
      %v306 = vmul.f32 %v267, %v273
      %v307 = vld [vmem:[%s2] sm:$0x1]
      %v309 = vlaneseq
      %v310 = vshrl.u32 %v309, 7
      %v311 = vsub.s32 0, %v310
      %v312 = vrot.slane %v307, %v311
      %v314 = vadd.f32 %v275, %v312
      %v315 = vadd.f32 %v276, %v312
      %v316 = vadd.f32 %v277, %v312
      %v317 = vadd.f32 %v278, %v312
      %v318 = vadd.f32 %v279, %v312
      %v319 = vadd.f32 %v280, %v312
      %v320 = vadd.f32 %v281, %v312
      %v321 = vadd.f32 %v282, %v312
      %v322 = vadd.f32 %v283, %v312
      %v323 = vadd.f32 %v284, %v312
      %v324 = vadd.f32 %v285, %v312
      %v325 = vadd.f32 %v286, %v312
      %v326 = vadd.f32 %v287, %v312
      %v327 = vadd.f32 %v288, %v312
      %v328 = vadd.f32 %v289, %v312
      %v329 = vadd.f32 %v290, %v312
      %v330 = vadd.f32 %v291, %v312
      %v331 = vadd.f32 %v292, %v312
      %v332 = vadd.f32 %v293, %v312
      %v333 = vadd.f32 %v294, %v312
      %v334 = vadd.f32 %v295, %v312
      %v335 = vadd.f32 %v296, %v312
      %v336 = vadd.f32 %v297, %v312
      %v337 = vadd.f32 %v298, %v312
      %v338 = vadd.f32 %v299, %v312
      %v339 = vadd.f32 %v300, %v312
      %v340 = vadd.f32 %v301, %v312
      %v341 = vadd.f32 %v302, %v312
      %v342 = vadd.f32 %v303, %v312
      %v343 = vadd.f32 %v304, %v312
      %v344 = vadd.f32 %v305, %v312
      %v345 = vadd.f32 %v306, %v312
      %v346 = vmax.f32 %v314, 0.0
      %v347 = vmax.f32 %v315, 0.0
      %v348 = vmax.f32 %v316, 0.0
      %v349 = vmax.f32 %v317, 0.0
      %v350 = vmax.f32 %v318, 0.0
      %v351 = vmax.f32 %v319, 0.0
      %v352 = vmax.f32 %v320, 0.0
      %v353 = vmax.f32 %v321, 0.0
      %v354 = vmax.f32 %v322, 0.0
      %v355 = vmax.f32 %v323, 0.0
      %v356 = vmax.f32 %v324, 0.0
      %v357 = vmax.f32 %v325, 0.0
      %v358 = vmax.f32 %v326, 0.0
      %v359 = vmax.f32 %v327, 0.0
      %v360 = vmax.f32 %v328, 0.0
      %v361 = vmax.f32 %v329, 0.0
      %v362 = vmax.f32 %v330, 0.0
      %v363 = vmax.f32 %v331, 0.0
      %v364 = vmax.f32 %v332, 0.0
      %v365 = vmax.f32 %v333, 0.0
      %v366 = vmax.f32 %v334, 0.0
      %v367 = vmax.f32 %v335, 0.0
      %v368 = vmax.f32 %v336, 0.0
      %v369 = vmax.f32 %v337, 0.0
      %v370 = vmax.f32 %v338, 0.0
      %v371 = vmax.f32 %v339, 0.0
      %v372 = vmax.f32 %v340, 0.0
      %v373 = vmax.f32 %v341, 0.0
      %v374 = vmax.f32 %v342, 0.0
      %v375 = vmax.f32 %v343, 0.0
      %v376 = vmax.f32 %v344, 0.0
      %v377 = vmax.f32 %v345, 0.0
      %vm378 = vcmask 64512
      %379 = vst.msk [vmem:[#allocation2] sm:$0xff] %vm378, 0.0
      %380 = vst.msk [vmem:[#allocation2 + $0x8] sm:$0xff] %vm378, 0.0
      %381 = vst.msk [vmem:[#allocation2 + $0x10] sm:$0xff] %vm378, 0.0
      %382 = vst.msk [vmem:[#allocation2 + $0x18] sm:$0xff] %vm378, 0.0
      %s383 = scalar_lea.vmem [#allocation2], 544
      %384 = vst.msk [vmem:[%s383] sm:$0xff] %vm378, 0.0
      %385 = vst.msk [vmem:[%s383 + $0x8] sm:$0xff] %vm378, 0.0
      %386 = vst.msk [vmem:[%s383 + $0x10] sm:$0xff] %vm378, 0.0
      %387 = vst.msk [vmem:[%s383 + $0x18] sm:$0xff] %vm378, 0.0
      %s388 = scalar_lea.vmem [#allocation2], 32
      %389 = vst.msk [vmem:[%s388] sm:$0xff] %vm378, 0.0
      %390 = vst.msk [vmem:[%s388 + $0x20] sm:$0xff] %vm378, 0.0
      %391 = vst.msk [vmem:[%s388 + $0x40] sm:$0xff] %vm378, 0.0
      %392 = vst.msk [vmem:[%s388 + $0x60] sm:$0xff] %vm378, 0.0
      %393 = vst.msk [vmem:[%s388 + $0x80] sm:$0xff] %vm378, 0.0
      %394 = vst.msk [vmem:[%s388 + $0xa0] sm:$0xff] %vm378, 0.0
      %395 = vst.msk [vmem:[%s388 + $0xc0] sm:$0xff] %vm378, 0.0
      %396 = vst.msk [vmem:[%s388 + $0xe0] sm:$0xff] %vm378, 0.0
      %397 = vst.msk [vmem:[%s388 + $0x100] sm:$0xff] %vm378, 0.0
      %398 = vst.msk [vmem:[%s388 + $0x120] sm:$0xff] %vm378, 0.0
      %399 = vst.msk [vmem:[%s388 + $0x140] sm:$0xff] %vm378, 0.0
      %400 = vst.msk [vmem:[%s388 + $0x160] sm:$0xff] %vm378, 0.0
      %401 = vst.msk [vmem:[%s388 + $0x180] sm:$0xff] %vm378, 0.0
      %402 = vst.msk [vmem:[%s388 + $0x1a0] sm:$0xff] %vm378, 0.0
      %403 = vst.msk [vmem:[%s388 + $0x1c0] sm:$0xff] %vm378, 0.0
      %404 = vst.msk [vmem:[%s388 + $0x1e0] sm:$0xff] %vm378, 0.0
      %405 = vst.msk [vmem:[%s388 + $0x18] sm:$0xff] %vm378, 0.0
      %406 = vst.msk [vmem:[%s388 + $0x38] sm:$0xff] %vm378, 0.0
      %407 = vst.msk [vmem:[%s388 + $0x58] sm:$0xff] %vm378, 0.0
      %408 = vst.msk [vmem:[%s388 + $0x78] sm:$0xff] %vm378, 0.0
      %409 = vst.msk [vmem:[%s388 + $0x98] sm:$0xff] %vm378, 0.0
      %410 = vst.msk [vmem:[%s388 + $0xb8] sm:$0xff] %vm378, 0.0
      %411 = vst.msk [vmem:[%s388 + $0xd8] sm:$0xff] %vm378, 0.0
      %412 = vst.msk [vmem:[%s388 + $0xf8] sm:$0xff] %vm378, 0.0
      %413 = vst.msk [vmem:[%s388 + $0x118] sm:$0xff] %vm378, 0.0
      %414 = vst.msk [vmem:[%s388 + $0x138] sm:$0xff] %vm378, 0.0
      %415 = vst.msk [vmem:[%s388 + $0x158] sm:$0xff] %vm378, 0.0
      %416 = vst.msk [vmem:[%s388 + $0x178] sm:$0xff] %vm378, 0.0
      %417 = vst.msk [vmem:[%s388 + $0x198] sm:$0xff] %vm378, 0.0
      %418 = vst.msk [vmem:[%s388 + $0x1b8] sm:$0xff] %vm378, 0.0
      %419 = vst.msk [vmem:[%s388 + $0x1d8] sm:$0xff] %vm378, 0.0
      %420 = vst.msk [vmem:[%s388 + $0x1f8] sm:$0xff] %vm378, 0.0
      %421 = vst.msk [vmem:[%s388 + $0x8] sm:$0xff] %vm378, %v346
      %422 = vst.msk [vmem:[%s388 + $0x10] sm:$0xff] %vm378, %v347
      %423 = vst.msk [vmem:[%s388 + $0x28] sm:$0xff] %vm378, %v348
      %424 = vst.msk [vmem:[%s388 + $0x30] sm:$0xff] %vm378, %v349
      %425 = vst.msk [vmem:[%s388 + $0x48] sm:$0xff] %vm378, %v350
      %426 = vst.msk [vmem:[%s388 + $0x50] sm:$0xff] %vm378, %v351
      %427 = vst.msk [vmem:[%s388 + $0x68] sm:$0xff] %vm378, %v352
      %428 = vst.msk [vmem:[%s388 + $0x70] sm:$0xff] %vm378, %v353
      %429 = vst.msk [vmem:[%s388 + $0x88] sm:$0xff] %vm378, %v354
      %430 = vst.msk [vmem:[%s388 + $0x90] sm:$0xff] %vm378, %v355
      %431 = vst.msk [vmem:[%s388 + $0xa8] sm:$0xff] %vm378, %v356
      %432 = vst.msk [vmem:[%s388 + $0xb0] sm:$0xff] %vm378, %v357
      %433 = vst.msk [vmem:[%s388 + $0xc8] sm:$0xff] %vm378, %v358
      %434 = vst.msk [vmem:[%s388 + $0xd0] sm:$0xff] %vm378, %v359
      %435 = vst.msk [vmem:[%s388 + $0xe8] sm:$0xff] %vm378, %v360
      %436 = vst.msk [vmem:[%s388 + $0xf0] sm:$0xff] %vm378, %v361
      %437 = vst.msk [vmem:[%s388 + $0x108] sm:$0xff] %vm378, %v362
      %438 = vst.msk [vmem:[%s388 + $0x110] sm:$0xff] %vm378, %v363
      %439 = vst.msk [vmem:[%s388 + $0x128] sm:$0xff] %vm378, %v364
      %440 = vst.msk [vmem:[%s388 + $0x130] sm:$0xff] %vm378, %v365
      %441 = vst.msk [vmem:[%s388 + $0x148] sm:$0xff] %vm378, %v366
      %442 = vst.msk [vmem:[%s388 + $0x150] sm:$0xff] %vm378, %v367
      %443 = vst.msk [vmem:[%s388 + $0x168] sm:$0xff] %vm378, %v368
      %444 = vst.msk [vmem:[%s388 + $0x170] sm:$0xff] %vm378, %v369
      %445 = vst.msk [vmem:[%s388 + $0x188] sm:$0xff] %vm378, %v370
      %446 = vst.msk [vmem:[%s388 + $0x190] sm:$0xff] %vm378, %v371
      %447 = vst.msk [vmem:[%s388 + $0x1a8] sm:$0xff] %vm378, %v372
      %448 = vst.msk [vmem:[%s388 + $0x1b0] sm:$0xff] %vm378, %v373
      %449 = vst.msk [vmem:[%s388 + $0x1c8] sm:$0xff] %vm378, %v374
      %450 = vst.msk [vmem:[%s388 + $0x1d0] sm:$0xff] %vm378, %v375
      %451 = vst.msk [vmem:[%s388 + $0x1e8] sm:$0xff] %vm378, %v376
      %452 = vst.msk [vmem:[%s388 + $0x1f0] sm:$0xff] %vm378, %v377
      %v453 = vld [vmem:[#allocation2 + $0x7] sm:$0xff]
      %v454 = vld [vmem:[#allocation2 + $0xf] sm:$0xff]
      %v455 = vld [vmem:[#allocation2 + $0x27] sm:$0xff]
      %v456 = vld [vmem:[#allocation2 + $0x2f] sm:$0xff]
      %v457 = vld [vmem:[#allocation2 + $0x47] sm:$0xff]
      %v458 = vld [vmem:[#allocation2 + $0x4f] sm:$0xff]
      %v459 = vld [vmem:[#allocation2 + $0x67] sm:$0xff]
      %v460 = vld [vmem:[#allocation2 + $0x6f] sm:$0xff]
      %v461 = vld [vmem:[#allocation2 + $0x87] sm:$0xff]
      %v462 = vld [vmem:[#allocation2 + $0x8f] sm:$0xff]
      %v463 = vld [vmem:[#allocation2 + $0xa7] sm:$0xff]
      %v464 = vld [vmem:[#allocation2 + $0xaf] sm:$0xff]
      %v465 = vld [vmem:[#allocation2 + $0xc7] sm:$0xff]
      %v466 = vld [vmem:[#allocation2 + $0xcf] sm:$0xff]
      %v467 = vld [vmem:[#allocation2 + $0xe7] sm:$0xff]
      %v468 = vld [vmem:[#allocation2 + $0xef] sm:$0xff]
      %v469 = vld [vmem:[#allocation2 + $0x107] sm:$0xff]
      %v470 = vld [vmem:[#allocation2 + $0x10f] sm:$0xff]
      %v471 = vld [vmem:[#allocation2 + $0x127] sm:$0xff]
      %v472 = vld [vmem:[#allocation2 + $0x12f] sm:$0xff]
      %v473 = vld [vmem:[#allocation2 + $0x147] sm:$0xff]
      %v474 = vld [vmem:[#allocation2 + $0x14f] sm:$0xff]
      %v475 = vld [vmem:[#allocation2 + $0x167] sm:$0xff]
      %v476 = vld [vmem:[#allocation2 + $0x16f] sm:$0xff]
      %v477 = vld [vmem:[#allocation2 + $0x187] sm:$0xff]
      %v478 = vld [vmem:[#allocation2 + $0x18f] sm:$0xff]
      %v479 = vld [vmem:[#allocation2 + $0x1a7] sm:$0xff]
      %v480 = vld [vmem:[#allocation2 + $0x1af] sm:$0xff]
      %v481 = vld [vmem:[#allocation2 + $0x1c7] sm:$0xff]
      %v482 = vld [vmem:[#allocation2 + $0x1cf] sm:$0xff]
      %v483 = vld [vmem:[#allocation2 + $0x1e7] sm:$0xff]
      %v484 = vld [vmem:[#allocation2 + $0x1ef] sm:$0xff]
      %v485 = vld [vmem:[#allocation2 + $0x8] sm:$0xff]
      %v486 = vld [vmem:[#allocation2 + $0x10] sm:$0xff]
      %v487 = vld [vmem:[#allocation2 + $0x28] sm:$0xff]
      %v488 = vld [vmem:[#allocation2 + $0x30] sm:$0xff]
      %v489 = vld [vmem:[#allocation2 + $0x48] sm:$0xff]
      %v490 = vld [vmem:[#allocation2 + $0x50] sm:$0xff]
      %v491 = vld [vmem:[#allocation2 + $0x68] sm:$0xff]
      %v492 = vld [vmem:[#allocation2 + $0x70] sm:$0xff]
      %v493 = vld [vmem:[#allocation2 + $0x88] sm:$0xff]
      %v494 = vld [vmem:[#allocation2 + $0x90] sm:$0xff]
      %v495 = vld [vmem:[#allocation2 + $0xa8] sm:$0xff]
      %v496 = vld [vmem:[#allocation2 + $0xb0] sm:$0xff]
      %v497 = vld [vmem:[#allocation2 + $0xc8] sm:$0xff]
      %v498 = vld [vmem:[#allocation2 + $0xd0] sm:$0xff]
      %v499 = vld [vmem:[#allocation2 + $0xe8] sm:$0xff]
      %v500 = vld [vmem:[#allocation2 + $0xf0] sm:$0xff]
      %v501 = vld [vmem:[#allocation2 + $0x108] sm:$0xff]
      %v502 = vld [vmem:[#allocation2 + $0x110] sm:$0xff]
      %v503 = vld [vmem:[#allocation2 + $0x128] sm:$0xff]
      %v504 = vld [vmem:[#allocation2 + $0x130] sm:$0xff]
      %v505 = vld [vmem:[#allocation2 + $0x148] sm:$0xff]
      %v506 = vld [vmem:[#allocation2 + $0x150] sm:$0xff]
      %v507 = vld [vmem:[#allocation2 + $0x168] sm:$0xff]
      %v508 = vld [vmem:[#allocation2 + $0x170] sm:$0xff]
      %v509 = vld [vmem:[#allocation2 + $0x188] sm:$0xff]
      %v510 = vld [vmem:[#allocation2 + $0x190] sm:$0xff]
      %v511 = vld [vmem:[#allocation2 + $0x1a8] sm:$0xff]
      %v512 = vld [vmem:[#allocation2 + $0x1b0] sm:$0xff]
      %v513 = vld [vmem:[#allocation2 + $0x1c8] sm:$0xff]
      %v514 = vld [vmem:[#allocation2 + $0x1d0] sm:$0xff]
      %v515 = vld [vmem:[#allocation2 + $0x1e8] sm:$0xff]
      %v516 = vld [vmem:[#allocation2 + $0x1f0] sm:$0xff]
      %v517 = vld [vmem:[#allocation2 + $0x9] sm:$0xff]
      %v518 = vld [vmem:[#allocation2 + $0x11] sm:$0xff]
      %v519 = vld [vmem:[#allocation2 + $0x29] sm:$0xff]
      %v520 = vld [vmem:[#allocation2 + $0x31] sm:$0xff]
      %v521 = vld [vmem:[#allocation2 + $0x49] sm:$0xff]
      %v522 = vld [vmem:[#allocation2 + $0x51] sm:$0xff]
      %v523 = vld [vmem:[#allocation2 + $0x69] sm:$0xff]
      %v524 = vld [vmem:[#allocation2 + $0x71] sm:$0xff]
      %v525 = vld [vmem:[#allocation2 + $0x89] sm:$0xff]
      %v526 = vld [vmem:[#allocation2 + $0x91] sm:$0xff]
      %v527 = vld [vmem:[#allocation2 + $0xa9] sm:$0xff]
      %v528 = vld [vmem:[#allocation2 + $0xb1] sm:$0xff]
      %v529 = vld [vmem:[#allocation2 + $0xc9] sm:$0xff]
      %v530 = vld [vmem:[#allocation2 + $0xd1] sm:$0xff]
      %v531 = vld [vmem:[#allocation2 + $0xe9] sm:$0xff]
      %v532 = vld [vmem:[#allocation2 + $0xf1] sm:$0xff]
      %v533 = vld [vmem:[#allocation2 + $0x109] sm:$0xff]
      %v534 = vld [vmem:[#allocation2 + $0x111] sm:$0xff]
      %v535 = vld [vmem:[#allocation2 + $0x129] sm:$0xff]
      %v536 = vld [vmem:[#allocation2 + $0x131] sm:$0xff]
      %v537 = vld [vmem:[#allocation2 + $0x149] sm:$0xff]
      %v538 = vld [vmem:[#allocation2 + $0x151] sm:$0xff]
      %v539 = vld [vmem:[#allocation2 + $0x169] sm:$0xff]
      %v540 = vld [vmem:[#allocation2 + $0x171] sm:$0xff]
      %v541 = vld [vmem:[#allocation2 + $0x189] sm:$0xff]
      %v542 = vld [vmem:[#allocation2 + $0x191] sm:$0xff]
      %v543 = vld [vmem:[#allocation2 + $0x1a9] sm:$0xff]
      %v544 = vld [vmem:[#allocation2 + $0x1b1] sm:$0xff]
      %v545 = vld [vmem:[#allocation2 + $0x1c9] sm:$0xff]
      %v546 = vld [vmem:[#allocation2 + $0x1d1] sm:$0xff]
      %v547 = vld [vmem:[#allocation2 + $0x1e9] sm:$0xff]
      %v548 = vld [vmem:[#allocation2 + $0x1f1] sm:$0xff]
      %v549 = vld [vmem:[%s388 + $0x7] sm:$0xff]
      %v550 = vld [vmem:[%s388 + $0xf] sm:$0xff]
      %v551 = vld [vmem:[%s388 + $0x27] sm:$0xff]
      %v552 = vld [vmem:[%s388 + $0x2f] sm:$0xff]
      %v553 = vld [vmem:[%s388 + $0x47] sm:$0xff]
      %v554 = vld [vmem:[%s388 + $0x4f] sm:$0xff]
      %v555 = vld [vmem:[%s388 + $0x67] sm:$0xff]
      %v556 = vld [vmem:[%s388 + $0x6f] sm:$0xff]
      %v557 = vld [vmem:[%s388 + $0x87] sm:$0xff]
      %v558 = vld [vmem:[%s388 + $0x8f] sm:$0xff]
      %v559 = vld [vmem:[%s388 + $0xa7] sm:$0xff]
      %v560 = vld [vmem:[%s388 + $0xaf] sm:$0xff]
      %v561 = vld [vmem:[%s388 + $0xc7] sm:$0xff]
      %v562 = vld [vmem:[%s388 + $0xcf] sm:$0xff]
      %v563 = vld [vmem:[%s388 + $0xe7] sm:$0xff]
      %v564 = vld [vmem:[%s388 + $0xef] sm:$0xff]
      %v565 = vld [vmem:[%s388 + $0x107] sm:$0xff]
      %v566 = vld [vmem:[%s388 + $0x10f] sm:$0xff]
      %v567 = vld [vmem:[%s388 + $0x127] sm:$0xff]
      %v568 = vld [vmem:[%s388 + $0x12f] sm:$0xff]
      %v569 = vld [vmem:[%s388 + $0x147] sm:$0xff]
      %v570 = vld [vmem:[%s388 + $0x14f] sm:$0xff]
      %v571 = vld [vmem:[%s388 + $0x167] sm:$0xff]
      %v572 = vld [vmem:[%s388 + $0x16f] sm:$0xff]
      %v573 = vld [vmem:[%s388 + $0x187] sm:$0xff]
      %v574 = vld [vmem:[%s388 + $0x18f] sm:$0xff]
      %v575 = vld [vmem:[%s388 + $0x1a7] sm:$0xff]
      %v576 = vld [vmem:[%s388 + $0x1af] sm:$0xff]
      %v577 = vld [vmem:[%s388 + $0x1c7] sm:$0xff]
      %v578 = vld [vmem:[%s388 + $0x1cf] sm:$0xff]
      %v579 = vld [vmem:[%s388 + $0x1e7] sm:$0xff]
      %v580 = vld [vmem:[%s388 + $0x1ef] sm:$0xff]
      %v581 = vld [vmem:[%s388 + $0x8] sm:$0xff]
      %v582 = vld [vmem:[%s388 + $0x10] sm:$0xff]
      %v583 = vld [vmem:[%s388 + $0x28] sm:$0xff]
      %v584 = vld [vmem:[%s388 + $0x30] sm:$0xff]
      %v585 = vld [vmem:[%s388 + $0x48] sm:$0xff]
      %v586 = vld [vmem:[%s388 + $0x50] sm:$0xff]
      %v587 = vld [vmem:[%s388 + $0x68] sm:$0xff]
      %v588 = vld [vmem:[%s388 + $0x70] sm:$0xff]
      %v589 = vld [vmem:[%s388 + $0x88] sm:$0xff]
      %v590 = vld [vmem:[%s388 + $0x90] sm:$0xff]
      %v591 = vld [vmem:[%s388 + $0xa8] sm:$0xff]
      %v592 = vld [vmem:[%s388 + $0xb0] sm:$0xff]
      %v593 = vld [vmem:[%s388 + $0xc8] sm:$0xff]
      %v594 = vld [vmem:[%s388 + $0xd0] sm:$0xff]
      %v595 = vld [vmem:[%s388 + $0xe8] sm:$0xff]
      %v596 = vld [vmem:[%s388 + $0xf0] sm:$0xff]
      %v597 = vld [vmem:[%s388 + $0x108] sm:$0xff]
      %v598 = vld [vmem:[%s388 + $0x110] sm:$0xff]
      %v599 = vld [vmem:[%s388 + $0x128] sm:$0xff]
      %v600 = vld [vmem:[%s388 + $0x130] sm:$0xff]
      %v601 = vld [vmem:[%s388 + $0x148] sm:$0xff]
      %v602 = vld [vmem:[%s388 + $0x150] sm:$0xff]
      %v603 = vld [vmem:[%s388 + $0x168] sm:$0xff]
      %v604 = vld [vmem:[%s388 + $0x170] sm:$0xff]
      %v605 = vld [vmem:[%s388 + $0x188] sm:$0xff]
      %v606 = vld [vmem:[%s388 + $0x190] sm:$0xff]
      %v607 = vld [vmem:[%s388 + $0x1a8] sm:$0xff]
      %v608 = vld [vmem:[%s388 + $0x1b0] sm:$0xff]
      %v609 = vld [vmem:[%s388 + $0x1c8] sm:$0xff]
      %v610 = vld [vmem:[%s388 + $0x1d0] sm:$0xff]
      %v611 = vld [vmem:[%s388 + $0x1e8] sm:$0xff]
      %v612 = vld [vmem:[%s388 + $0x1f0] sm:$0xff]
      %v613 = vld [vmem:[%s388 + $0x9] sm:$0xff]
      %v614 = vld [vmem:[%s388 + $0x11] sm:$0xff]
      %v615 = vld [vmem:[%s388 + $0x29] sm:$0xff]
      %v616 = vld [vmem:[%s388 + $0x31] sm:$0xff]
      %v617 = vld [vmem:[%s388 + $0x49] sm:$0xff]
      %v618 = vld [vmem:[%s388 + $0x51] sm:$0xff]
      %v619 = vld [vmem:[%s388 + $0x69] sm:$0xff]
      %v620 = vld [vmem:[%s388 + $0x71] sm:$0xff]
      %v621 = vld [vmem:[%s388 + $0x89] sm:$0xff]
      %v622 = vld [vmem:[%s388 + $0x91] sm:$0xff]
      %v623 = vld [vmem:[%s388 + $0xa9] sm:$0xff]
      %v624 = vld [vmem:[%s388 + $0xb1] sm:$0xff]
      %v625 = vld [vmem:[%s388 + $0xc9] sm:$0xff]
      %v626 = vld [vmem:[%s388 + $0xd1] sm:$0xff]
      %v627 = vld [vmem:[%s388 + $0xe9] sm:$0xff]
      %v628 = vld [vmem:[%s388 + $0xf1] sm:$0xff]
      %v629 = vld [vmem:[%s388 + $0x109] sm:$0xff]
      %v630 = vld [vmem:[%s388 + $0x111] sm:$0xff]
      %v631 = vld [vmem:[%s388 + $0x129] sm:$0xff]
      %v632 = vld [vmem:[%s388 + $0x131] sm:$0xff]
      %v633 = vld [vmem:[%s388 + $0x149] sm:$0xff]
      %v634 = vld [vmem:[%s388 + $0x151] sm:$0xff]
      %v635 = vld [vmem:[%s388 + $0x169] sm:$0xff]
      %v636 = vld [vmem:[%s388 + $0x171] sm:$0xff]
      %v637 = vld [vmem:[%s388 + $0x189] sm:$0xff]
      %v638 = vld [vmem:[%s388 + $0x191] sm:$0xff]
      %v639 = vld [vmem:[%s388 + $0x1a9] sm:$0xff]
      %v640 = vld [vmem:[%s388 + $0x1b1] sm:$0xff]
      %v641 = vld [vmem:[%s388 + $0x1c9] sm:$0xff]
      %v642 = vld [vmem:[%s388 + $0x1d1] sm:$0xff]
      %v643 = vld [vmem:[%s388 + $0x1e9] sm:$0xff]
      %v644 = vld [vmem:[%s388 + $0x1f1] sm:$0xff]
      %s645 = scalar_lea.vmem [#allocation2], 64
      %v646 = vld [vmem:[%s645 + $0x7] sm:$0xff]
      %v647 = vld [vmem:[%s645 + $0xf] sm:$0xff]
      %v648 = vld [vmem:[%s645 + $0x27] sm:$0xff]
      %v649 = vld [vmem:[%s645 + $0x2f] sm:$0xff]
      %v650 = vld [vmem:[%s645 + $0x47] sm:$0xff]
      %v651 = vld [vmem:[%s645 + $0x4f] sm:$0xff]
      %v652 = vld [vmem:[%s645 + $0x67] sm:$0xff]
      %v653 = vld [vmem:[%s645 + $0x6f] sm:$0xff]
      %v654 = vld [vmem:[%s645 + $0x87] sm:$0xff]
      %v655 = vld [vmem:[%s645 + $0x8f] sm:$0xff]
      %v656 = vld [vmem:[%s645 + $0xa7] sm:$0xff]
      %v657 = vld [vmem:[%s645 + $0xaf] sm:$0xff]
      %v658 = vld [vmem:[%s645 + $0xc7] sm:$0xff]
      %v659 = vld [vmem:[%s645 + $0xcf] sm:$0xff]
      %v660 = vld [vmem:[%s645 + $0xe7] sm:$0xff]
      %v661 = vld [vmem:[%s645 + $0xef] sm:$0xff]
      %v662 = vld [vmem:[%s645 + $0x107] sm:$0xff]
      %v663 = vld [vmem:[%s645 + $0x10f] sm:$0xff]
      %v664 = vld [vmem:[%s645 + $0x127] sm:$0xff]
      %v665 = vld [vmem:[%s645 + $0x12f] sm:$0xff]
      %v666 = vld [vmem:[%s645 + $0x147] sm:$0xff]
      %v667 = vld [vmem:[%s645 + $0x14f] sm:$0xff]
      %v668 = vld [vmem:[%s645 + $0x167] sm:$0xff]
      %v669 = vld [vmem:[%s645 + $0x16f] sm:$0xff]
      %v670 = vld [vmem:[%s645 + $0x187] sm:$0xff]
      %v671 = vld [vmem:[%s645 + $0x18f] sm:$0xff]
      %v672 = vld [vmem:[%s645 + $0x1a7] sm:$0xff]
      %v673 = vld [vmem:[%s645 + $0x1af] sm:$0xff]
      %v674 = vld [vmem:[%s645 + $0x1c7] sm:$0xff]
      %v675 = vld [vmem:[%s645 + $0x1cf] sm:$0xff]
      %v676 = vld [vmem:[%s645 + $0x1e7] sm:$0xff]
      %v677 = vld [vmem:[%s645 + $0x1ef] sm:$0xff]
      %v678 = vld [vmem:[%s645 + $0x8] sm:$0xff]
      %v679 = vld [vmem:[%s645 + $0x10] sm:$0xff]
      %v680 = vld [vmem:[%s645 + $0x28] sm:$0xff]
      %v681 = vld [vmem:[%s645 + $0x30] sm:$0xff]
      %v682 = vld [vmem:[%s645 + $0x48] sm:$0xff]
      %v683 = vld [vmem:[%s645 + $0x50] sm:$0xff]
      %v684 = vld [vmem:[%s645 + $0x68] sm:$0xff]
      %v685 = vld [vmem:[%s645 + $0x70] sm:$0xff]
      %v686 = vld [vmem:[%s645 + $0x88] sm:$0xff]
      %v687 = vld [vmem:[%s645 + $0x90] sm:$0xff]
      %v688 = vld [vmem:[%s645 + $0xa8] sm:$0xff]
      %v689 = vld [vmem:[%s645 + $0xb0] sm:$0xff]
      %v690 = vld [vmem:[%s645 + $0xc8] sm:$0xff]
      %v691 = vld [vmem:[%s645 + $0xd0] sm:$0xff]
      %v692 = vld [vmem:[%s645 + $0xe8] sm:$0xff]
      %v693 = vld [vmem:[%s645 + $0xf0] sm:$0xff]
      %v694 = vld [vmem:[%s645 + $0x108] sm:$0xff]
      %v695 = vld [vmem:[%s645 + $0x110] sm:$0xff]
      %v696 = vld [vmem:[%s645 + $0x128] sm:$0xff]
      %v697 = vld [vmem:[%s645 + $0x130] sm:$0xff]
      %v698 = vld [vmem:[%s645 + $0x148] sm:$0xff]
      %v699 = vld [vmem:[%s645 + $0x150] sm:$0xff]
      %v700 = vld [vmem:[%s645 + $0x168] sm:$0xff]
      %v701 = vld [vmem:[%s645 + $0x170] sm:$0xff]
      %v702 = vld [vmem:[%s645 + $0x188] sm:$0xff]
      %v703 = vld [vmem:[%s645 + $0x190] sm:$0xff]
      %v704 = vld [vmem:[%s645 + $0x1a8] sm:$0xff]
      %v705 = vld [vmem:[%s645 + $0x1b0] sm:$0xff]
      %v706 = vld [vmem:[%s645 + $0x1c8] sm:$0xff]
      %v707 = vld [vmem:[%s645 + $0x1d0] sm:$0xff]
      %v708 = vld [vmem:[%s645 + $0x1e8] sm:$0xff]
      %v709 = vld [vmem:[%s645 + $0x1f0] sm:$0xff]
      %v710 = vld [vmem:[%s645 + $0x9] sm:$0xff]
      %v711 = vld [vmem:[%s645 + $0x11] sm:$0xff]
      %v712 = vld [vmem:[%s645 + $0x29] sm:$0xff]
      %v713 = vld [vmem:[%s645 + $0x31] sm:$0xff]
      %v714 = vld [vmem:[%s645 + $0x49] sm:$0xff]
      %v715 = vld [vmem:[%s645 + $0x51] sm:$0xff]
      %v716 = vld [vmem:[%s645 + $0x69] sm:$0xff]
      %v717 = vld [vmem:[%s645 + $0x71] sm:$0xff]
      %v718 = vld [vmem:[%s645 + $0x89] sm:$0xff]
      %v719 = vld [vmem:[%s645 + $0x91] sm:$0xff]
      %v720 = vld [vmem:[%s645 + $0xa9] sm:$0xff]
      %v721 = vld [vmem:[%s645 + $0xb1] sm:$0xff]
      %v722 = vld [vmem:[%s645 + $0xc9] sm:$0xff]
      %v723 = vld [vmem:[%s645 + $0xd1] sm:$0xff]
      %v724 = vld [vmem:[%s645 + $0xe9] sm:$0xff]
      %v725 = vld [vmem:[%s645 + $0xf1] sm:$0xff]
      %v726 = vld [vmem:[%s645 + $0x109] sm:$0xff]
      %v727 = vld [vmem:[%s645 + $0x111] sm:$0xff]
      %v728 = vld [vmem:[%s645 + $0x129] sm:$0xff]
      %v729 = vld [vmem:[%s645 + $0x131] sm:$0xff]
      %v730 = vld [vmem:[%s645 + $0x149] sm:$0xff]
      %v731 = vld [vmem:[%s645 + $0x151] sm:$0xff]
      %v732 = vld [vmem:[%s645 + $0x169] sm:$0xff]
      %v733 = vld [vmem:[%s645 + $0x171] sm:$0xff]
      %v734 = vld [vmem:[%s645 + $0x189] sm:$0xff]
      %v735 = vld [vmem:[%s645 + $0x191] sm:$0xff]
      %v736 = vld [vmem:[%s645 + $0x1a9] sm:$0xff]
      %v737 = vld [vmem:[%s645 + $0x1b1] sm:$0xff]
      %v738 = vld [vmem:[%s645 + $0x1c9] sm:$0xff]
      %v739 = vld [vmem:[%s645 + $0x1d1] sm:$0xff]
      %v740 = vld [vmem:[%s645 + $0x1e9] sm:$0xff]
      %v741 = vld [vmem:[%s645 + $0x1f1] sm:$0xff]
      %774 = vrot.lane.b32.xlu0 %v485, 8
      %v775 = vpop.permute.xlu0 %774
      %776 = vrot.lane.b32.xlu0 %v486, 8
      %v777 = vpop.permute.xlu0 %776
      %778 = vrot.lane.b32.xlu0 %v487, 8
      %v779 = vpop.permute.xlu0 %778
      %780 = vrot.lane.b32.xlu0 %v488, 8
      %v781 = vpop.permute.xlu0 %780
      %782 = vrot.lane.b32.xlu0 %v489, 8
      %v783 = vpop.permute.xlu0 %782
      %784 = vrot.lane.b32.xlu0 %v490, 8
      %v785 = vpop.permute.xlu0 %784
      %786 = vrot.lane.b32.xlu0 %v491, 8
      %v787 = vpop.permute.xlu0 %786
      %788 = vrot.lane.b32.xlu0 %v492, 8
      %v789 = vpop.permute.xlu0 %788
      %790 = vrot.lane.b32.xlu0 %v493, 8
      %v791 = vpop.permute.xlu0 %790
      %792 = vrot.lane.b32.xlu0 %v494, 8
      %v793 = vpop.permute.xlu0 %792
      %794 = vrot.lane.b32.xlu0 %v495, 8
      %v795 = vpop.permute.xlu0 %794
      %796 = vrot.lane.b32.xlu0 %v496, 8
      %v797 = vpop.permute.xlu0 %796
      %798 = vrot.lane.b32.xlu0 %v497, 8
      %v799 = vpop.permute.xlu0 %798
      %800 = vrot.lane.b32.xlu0 %v498, 8
      %v801 = vpop.permute.xlu0 %800
      %802 = vrot.lane.b32.xlu0 %v499, 8
      %v803 = vpop.permute.xlu0 %802
      %804 = vrot.lane.b32.xlu0 %v500, 8
      %v805 = vpop.permute.xlu0 %804
      %806 = vrot.lane.b32.xlu0 %v501, 8
      %v807 = vpop.permute.xlu0 %806
      %808 = vrot.lane.b32.xlu0 %v502, 8
      %v809 = vpop.permute.xlu0 %808
      %810 = vrot.lane.b32.xlu0 %v503, 8
      %v811 = vpop.permute.xlu0 %810
      %812 = vrot.lane.b32.xlu0 %v504, 8
      %v813 = vpop.permute.xlu0 %812
      %814 = vrot.lane.b32.xlu0 %v505, 8
      %v815 = vpop.permute.xlu0 %814
      %816 = vrot.lane.b32.xlu0 %v506, 8
      %v817 = vpop.permute.xlu0 %816
      %818 = vrot.lane.b32.xlu0 %v507, 8
      %v819 = vpop.permute.xlu0 %818
      %820 = vrot.lane.b32.xlu0 %v508, 8
      %v821 = vpop.permute.xlu0 %820
      %822 = vrot.lane.b32.xlu0 %v509, 8
      %v823 = vpop.permute.xlu0 %822
      %824 = vrot.lane.b32.xlu0 %v510, 8
      %v825 = vpop.permute.xlu0 %824
      %826 = vrot.lane.b32.xlu0 %v511, 8
      %v827 = vpop.permute.xlu0 %826
      %828 = vrot.lane.b32.xlu0 %v512, 8
      %v829 = vpop.permute.xlu0 %828
      %830 = vrot.lane.b32.xlu0 %v513, 8
      %v831 = vpop.permute.xlu0 %830
      %832 = vrot.lane.b32.xlu0 %v514, 8
      %v833 = vpop.permute.xlu0 %832
      %834 = vrot.lane.b32.xlu0 %v515, 8
      %v835 = vpop.permute.xlu0 %834
      %836 = vrot.lane.b32.xlu0 %v516, 8
      %v837 = vpop.permute.xlu0 %836
      %902 = vrot.lane.b32.xlu0 %v517, 16
      %v903 = vpop.permute.xlu0 %902
      %904 = vrot.lane.b32.xlu0 %v518, 16
      %v905 = vpop.permute.xlu0 %904
      %906 = vrot.lane.b32.xlu0 %v519, 16
      %v907 = vpop.permute.xlu0 %906
      %908 = vrot.lane.b32.xlu0 %v520, 16
      %v909 = vpop.permute.xlu0 %908
      %910 = vrot.lane.b32.xlu0 %v521, 16
      %v911 = vpop.permute.xlu0 %910
      %912 = vrot.lane.b32.xlu0 %v522, 16
      %v913 = vpop.permute.xlu0 %912
      %914 = vrot.lane.b32.xlu0 %v523, 16
      %v915 = vpop.permute.xlu0 %914
      %916 = vrot.lane.b32.xlu0 %v524, 16
      %v917 = vpop.permute.xlu0 %916
      %918 = vrot.lane.b32.xlu0 %v525, 16
      %v919 = vpop.permute.xlu0 %918
      %920 = vrot.lane.b32.xlu0 %v526, 16
      %v921 = vpop.permute.xlu0 %920
      %922 = vrot.lane.b32.xlu0 %v527, 16
      %v923 = vpop.permute.xlu0 %922
      %924 = vrot.lane.b32.xlu0 %v528, 16
      %v925 = vpop.permute.xlu0 %924
      %926 = vrot.lane.b32.xlu0 %v529, 16
      %v927 = vpop.permute.xlu0 %926
      %928 = vrot.lane.b32.xlu0 %v530, 16
      %v929 = vpop.permute.xlu0 %928
      %930 = vrot.lane.b32.xlu0 %v531, 16
      %v931 = vpop.permute.xlu0 %930
      %932 = vrot.lane.b32.xlu0 %v532, 16
      %v933 = vpop.permute.xlu0 %932
      %934 = vrot.lane.b32.xlu0 %v533, 16
      %v935 = vpop.permute.xlu0 %934
      %936 = vrot.lane.b32.xlu0 %v534, 16
      %v937 = vpop.permute.xlu0 %936
      %938 = vrot.lane.b32.xlu0 %v535, 16
      %v939 = vpop.permute.xlu0 %938
      %940 = vrot.lane.b32.xlu0 %v536, 16
      %v941 = vpop.permute.xlu0 %940
      %942 = vrot.lane.b32.xlu0 %v537, 16
      %v943 = vpop.permute.xlu0 %942
      %944 = vrot.lane.b32.xlu0 %v538, 16
      %v945 = vpop.permute.xlu0 %944
      %946 = vrot.lane.b32.xlu0 %v539, 16
      %v947 = vpop.permute.xlu0 %946
      %948 = vrot.lane.b32.xlu0 %v540, 16
      %v949 = vpop.permute.xlu0 %948
      %950 = vrot.lane.b32.xlu0 %v541, 16
      %v951 = vpop.permute.xlu0 %950
      %952 = vrot.lane.b32.xlu0 %v542, 16
      %v953 = vpop.permute.xlu0 %952
      %954 = vrot.lane.b32.xlu0 %v543, 16
      %v955 = vpop.permute.xlu0 %954
      %956 = vrot.lane.b32.xlu0 %v544, 16
      %v957 = vpop.permute.xlu0 %956
      %958 = vrot.lane.b32.xlu0 %v545, 16
      %v959 = vpop.permute.xlu0 %958
      %960 = vrot.lane.b32.xlu0 %v546, 16
      %v961 = vpop.permute.xlu0 %960
      %962 = vrot.lane.b32.xlu0 %v547, 16
      %v963 = vpop.permute.xlu0 %962
      %964 = vrot.lane.b32.xlu0 %v548, 16
      %v965 = vpop.permute.xlu0 %964
      %1030 = vrot.lane.b32.xlu0 %v549, 24
      %v1031 = vpop.permute.xlu0 %1030
      %1032 = vrot.lane.b32.xlu0 %v550, 24
      %v1033 = vpop.permute.xlu0 %1032
      %1034 = vrot.lane.b32.xlu0 %v551, 24
      %v1035 = vpop.permute.xlu0 %1034
      %1036 = vrot.lane.b32.xlu0 %v552, 24
      %v1037 = vpop.permute.xlu0 %1036
      %1038 = vrot.lane.b32.xlu0 %v553, 24
      %v1039 = vpop.permute.xlu0 %1038
      %1040 = vrot.lane.b32.xlu0 %v554, 24
      %v1041 = vpop.permute.xlu0 %1040
      %1042 = vrot.lane.b32.xlu0 %v555, 24
      %v1043 = vpop.permute.xlu0 %1042
      %1044 = vrot.lane.b32.xlu0 %v556, 24
      %v1045 = vpop.permute.xlu0 %1044
      %1046 = vrot.lane.b32.xlu0 %v557, 24
      %v1047 = vpop.permute.xlu0 %1046
      %1048 = vrot.lane.b32.xlu0 %v558, 24
      %v1049 = vpop.permute.xlu0 %1048
      %1050 = vrot.lane.b32.xlu0 %v559, 24
      %v1051 = vpop.permute.xlu0 %1050
      %1052 = vrot.lane.b32.xlu0 %v560, 24
      %v1053 = vpop.permute.xlu0 %1052
      %1054 = vrot.lane.b32.xlu0 %v561, 24
      %v1055 = vpop.permute.xlu0 %1054
      %1056 = vrot.lane.b32.xlu0 %v562, 24
      %v1057 = vpop.permute.xlu0 %1056
      %1058 = vrot.lane.b32.xlu0 %v563, 24
      %v1059 = vpop.permute.xlu0 %1058
      %1060 = vrot.lane.b32.xlu0 %v564, 24
      %v1061 = vpop.permute.xlu0 %1060
      %1062 = vrot.lane.b32.xlu0 %v565, 24
      %v1063 = vpop.permute.xlu0 %1062
      %1064 = vrot.lane.b32.xlu0 %v566, 24
      %v1065 = vpop.permute.xlu0 %1064
      %1066 = vrot.lane.b32.xlu0 %v567, 24
      %v1067 = vpop.permute.xlu0 %1066
      %1068 = vrot.lane.b32.xlu0 %v568, 24
      %v1069 = vpop.permute.xlu0 %1068
      %1070 = vrot.lane.b32.xlu0 %v569, 24
      %v1071 = vpop.permute.xlu0 %1070
      %1072 = vrot.lane.b32.xlu0 %v570, 24
      %v1073 = vpop.permute.xlu0 %1072
      %1074 = vrot.lane.b32.xlu0 %v571, 24
      %v1075 = vpop.permute.xlu0 %1074
      %1076 = vrot.lane.b32.xlu0 %v572, 24
      %v1077 = vpop.permute.xlu0 %1076
      %1078 = vrot.lane.b32.xlu0 %v573, 24
      %v1079 = vpop.permute.xlu0 %1078
      %1080 = vrot.lane.b32.xlu0 %v574, 24
      %v1081 = vpop.permute.xlu0 %1080
      %1082 = vrot.lane.b32.xlu0 %v575, 24
      %v1083 = vpop.permute.xlu0 %1082
      %1084 = vrot.lane.b32.xlu0 %v576, 24
      %v1085 = vpop.permute.xlu0 %1084
      %1086 = vrot.lane.b32.xlu0 %v577, 24
      %v1087 = vpop.permute.xlu0 %1086
      %1088 = vrot.lane.b32.xlu0 %v578, 24
      %v1089 = vpop.permute.xlu0 %1088
      %1090 = vrot.lane.b32.xlu0 %v579, 24
      %v1091 = vpop.permute.xlu0 %1090
      %1092 = vrot.lane.b32.xlu0 %v580, 24
      %v1093 = vpop.permute.xlu0 %1092
      %1158 = vrot.lane.b32.xlu0 %v581, 32
      %v1159 = vpop.permute.xlu0 %1158
      %1160 = vrot.lane.b32.xlu0 %v582, 32
      %v1161 = vpop.permute.xlu0 %1160
      %1162 = vrot.lane.b32.xlu0 %v583, 32
      %v1163 = vpop.permute.xlu0 %1162
      %1164 = vrot.lane.b32.xlu0 %v584, 32
      %v1165 = vpop.permute.xlu0 %1164
      %1166 = vrot.lane.b32.xlu0 %v585, 32
      %v1167 = vpop.permute.xlu0 %1166
      %1168 = vrot.lane.b32.xlu0 %v586, 32
      %v1169 = vpop.permute.xlu0 %1168
      %1170 = vrot.lane.b32.xlu0 %v587, 32
      %v1171 = vpop.permute.xlu0 %1170
      %1172 = vrot.lane.b32.xlu0 %v588, 32
      %v1173 = vpop.permute.xlu0 %1172
      %1174 = vrot.lane.b32.xlu0 %v589, 32
      %v1175 = vpop.permute.xlu0 %1174
      %1176 = vrot.lane.b32.xlu0 %v590, 32
      %v1177 = vpop.permute.xlu0 %1176
      %1178 = vrot.lane.b32.xlu0 %v591, 32
      %v1179 = vpop.permute.xlu0 %1178
      %1180 = vrot.lane.b32.xlu0 %v592, 32
      %v1181 = vpop.permute.xlu0 %1180
      %1182 = vrot.lane.b32.xlu0 %v593, 32
      %v1183 = vpop.permute.xlu0 %1182
      %1184 = vrot.lane.b32.xlu0 %v594, 32
      %v1185 = vpop.permute.xlu0 %1184
      %1186 = vrot.lane.b32.xlu0 %v595, 32
      %v1187 = vpop.permute.xlu0 %1186
      %1188 = vrot.lane.b32.xlu0 %v596, 32
      %v1189 = vpop.permute.xlu0 %1188
      %1190 = vrot.lane.b32.xlu0 %v597, 32
      %v1191 = vpop.permute.xlu0 %1190
      %1192 = vrot.lane.b32.xlu0 %v598, 32
      %v1193 = vpop.permute.xlu0 %1192
      %1194 = vrot.lane.b32.xlu0 %v599, 32
      %v1195 = vpop.permute.xlu0 %1194
      %1196 = vrot.lane.b32.xlu0 %v600, 32
      %v1197 = vpop.permute.xlu0 %1196
      %1198 = vrot.lane.b32.xlu0 %v601, 32
      %v1199 = vpop.permute.xlu0 %1198
      %1200 = vrot.lane.b32.xlu0 %v602, 32
      %v1201 = vpop.permute.xlu0 %1200
      %1202 = vrot.lane.b32.xlu0 %v603, 32
      %v1203 = vpop.permute.xlu0 %1202
      %1204 = vrot.lane.b32.xlu0 %v604, 32
      %v1205 = vpop.permute.xlu0 %1204
      %1206 = vrot.lane.b32.xlu0 %v605, 32
      %v1207 = vpop.permute.xlu0 %1206
      %1208 = vrot.lane.b32.xlu0 %v606, 32
      %v1209 = vpop.permute.xlu0 %1208
      %1210 = vrot.lane.b32.xlu0 %v607, 32
      %v1211 = vpop.permute.xlu0 %1210
      %1212 = vrot.lane.b32.xlu0 %v608, 32
      %v1213 = vpop.permute.xlu0 %1212
      %1214 = vrot.lane.b32.xlu0 %v609, 32
      %v1215 = vpop.permute.xlu0 %1214
      %1216 = vrot.lane.b32.xlu0 %v610, 32
      %v1217 = vpop.permute.xlu0 %1216
      %1218 = vrot.lane.b32.xlu0 %v611, 32
      %v1219 = vpop.permute.xlu0 %1218
      %1220 = vrot.lane.b32.xlu0 %v612, 32
      %v1221 = vpop.permute.xlu0 %1220
      %1286 = vrot.lane.b32.xlu0 %v613, 40
      %v1287 = vpop.permute.xlu0 %1286
      %1288 = vrot.lane.b32.xlu0 %v614, 40
      %v1289 = vpop.permute.xlu0 %1288
      %1290 = vrot.lane.b32.xlu0 %v615, 40
      %v1291 = vpop.permute.xlu0 %1290
      %1292 = vrot.lane.b32.xlu0 %v616, 40
      %v1293 = vpop.permute.xlu0 %1292
      %1294 = vrot.lane.b32.xlu0 %v617, 40
      %v1295 = vpop.permute.xlu0 %1294
      %1296 = vrot.lane.b32.xlu0 %v618, 40
      %v1297 = vpop.permute.xlu0 %1296
      %1298 = vrot.lane.b32.xlu0 %v619, 40
      %v1299 = vpop.permute.xlu0 %1298
      %1300 = vrot.lane.b32.xlu0 %v620, 40
      %v1301 = vpop.permute.xlu0 %1300
      %1302 = vrot.lane.b32.xlu0 %v621, 40
      %v1303 = vpop.permute.xlu0 %1302
      %1304 = vrot.lane.b32.xlu0 %v622, 40
      %v1305 = vpop.permute.xlu0 %1304
      %1306 = vrot.lane.b32.xlu0 %v623, 40
      %v1307 = vpop.permute.xlu0 %1306
      %1308 = vrot.lane.b32.xlu0 %v624, 40
      %v1309 = vpop.permute.xlu0 %1308
      %1310 = vrot.lane.b32.xlu0 %v625, 40
      %v1311 = vpop.permute.xlu0 %1310
      %1312 = vrot.lane.b32.xlu0 %v626, 40
      %v1313 = vpop.permute.xlu0 %1312
      %1314 = vrot.lane.b32.xlu0 %v627, 40
      %v1315 = vpop.permute.xlu0 %1314
      %1316 = vrot.lane.b32.xlu0 %v628, 40
      %v1317 = vpop.permute.xlu0 %1316
      %1318 = vrot.lane.b32.xlu0 %v629, 40
      %v1319 = vpop.permute.xlu0 %1318
      %1320 = vrot.lane.b32.xlu0 %v630, 40
      %v1321 = vpop.permute.xlu0 %1320
      %1322 = vrot.lane.b32.xlu0 %v631, 40
      %v1323 = vpop.permute.xlu0 %1322
      %1324 = vrot.lane.b32.xlu0 %v632, 40
      %v1325 = vpop.permute.xlu0 %1324
      %1326 = vrot.lane.b32.xlu0 %v633, 40
      %v1327 = vpop.permute.xlu0 %1326
      %1328 = vrot.lane.b32.xlu0 %v634, 40
      %v1329 = vpop.permute.xlu0 %1328
      %1330 = vrot.lane.b32.xlu0 %v635, 40
      %v1331 = vpop.permute.xlu0 %1330
      %1332 = vrot.lane.b32.xlu0 %v636, 40
      %v1333 = vpop.permute.xlu0 %1332
      %1334 = vrot.lane.b32.xlu0 %v637, 40
      %v1335 = vpop.permute.xlu0 %1334
      %1336 = vrot.lane.b32.xlu0 %v638, 40
      %v1337 = vpop.permute.xlu0 %1336
      %1338 = vrot.lane.b32.xlu0 %v639, 40
      %v1339 = vpop.permute.xlu0 %1338
      %1340 = vrot.lane.b32.xlu0 %v640, 40
      %v1341 = vpop.permute.xlu0 %1340
      %1342 = vrot.lane.b32.xlu0 %v641, 40
      %v1343 = vpop.permute.xlu0 %1342
      %1344 = vrot.lane.b32.xlu0 %v642, 40
      %v1345 = vpop.permute.xlu0 %1344
      %1346 = vrot.lane.b32.xlu0 %v643, 40
      %v1347 = vpop.permute.xlu0 %1346
      %1348 = vrot.lane.b32.xlu0 %v644, 40
      %v1349 = vpop.permute.xlu0 %1348
      %1414 = vrot.lane.b32.xlu0 %v646, 48
      %v1415 = vpop.permute.xlu0 %1414
      %1416 = vrot.lane.b32.xlu0 %v647, 48
      %v1417 = vpop.permute.xlu0 %1416
      %1418 = vrot.lane.b32.xlu0 %v648, 48
      %v1419 = vpop.permute.xlu0 %1418
      %1420 = vrot.lane.b32.xlu0 %v649, 48
      %v1421 = vpop.permute.xlu0 %1420
      %1422 = vrot.lane.b32.xlu0 %v650, 48
      %v1423 = vpop.permute.xlu0 %1422
      %1424 = vrot.lane.b32.xlu0 %v651, 48
      %v1425 = vpop.permute.xlu0 %1424
      %1426 = vrot.lane.b32.xlu0 %v652, 48
      %v1427 = vpop.permute.xlu0 %1426
      %1428 = vrot.lane.b32.xlu0 %v653, 48
      %v1429 = vpop.permute.xlu0 %1428
      %1430 = vrot.lane.b32.xlu0 %v654, 48
      %v1431 = vpop.permute.xlu0 %1430
      %1432 = vrot.lane.b32.xlu0 %v655, 48
      %v1433 = vpop.permute.xlu0 %1432
      %1434 = vrot.lane.b32.xlu0 %v656, 48
      %v1435 = vpop.permute.xlu0 %1434
      %1436 = vrot.lane.b32.xlu0 %v657, 48
      %v1437 = vpop.permute.xlu0 %1436
      %1438 = vrot.lane.b32.xlu0 %v658, 48
      %v1439 = vpop.permute.xlu0 %1438
      %1440 = vrot.lane.b32.xlu0 %v659, 48
      %v1441 = vpop.permute.xlu0 %1440
      %1442 = vrot.lane.b32.xlu0 %v660, 48
      %v1443 = vpop.permute.xlu0 %1442
      %1444 = vrot.lane.b32.xlu0 %v661, 48
      %v1445 = vpop.permute.xlu0 %1444
      %1446 = vrot.lane.b32.xlu0 %v662, 48
      %v1447 = vpop.permute.xlu0 %1446
      %1448 = vrot.lane.b32.xlu0 %v663, 48
      %v1449 = vpop.permute.xlu0 %1448
      %1450 = vrot.lane.b32.xlu0 %v664, 48
      %v1451 = vpop.permute.xlu0 %1450
      %1452 = vrot.lane.b32.xlu0 %v665, 48
      %v1453 = vpop.permute.xlu0 %1452
      %1454 = vrot.lane.b32.xlu0 %v666, 48
      %v1455 = vpop.permute.xlu0 %1454
      %1456 = vrot.lane.b32.xlu0 %v667, 48
      %v1457 = vpop.permute.xlu0 %1456
      %1458 = vrot.lane.b32.xlu0 %v668, 48
      %v1459 = vpop.permute.xlu0 %1458
      %1460 = vrot.lane.b32.xlu0 %v669, 48
      %v1461 = vpop.permute.xlu0 %1460
      %1462 = vrot.lane.b32.xlu0 %v670, 48
      %v1463 = vpop.permute.xlu0 %1462
      %1464 = vrot.lane.b32.xlu0 %v671, 48
      %v1465 = vpop.permute.xlu0 %1464
      %1466 = vrot.lane.b32.xlu0 %v672, 48
      %v1467 = vpop.permute.xlu0 %1466
      %1468 = vrot.lane.b32.xlu0 %v673, 48
      %v1469 = vpop.permute.xlu0 %1468
      %1470 = vrot.lane.b32.xlu0 %v674, 48
      %v1471 = vpop.permute.xlu0 %1470
      %1472 = vrot.lane.b32.xlu0 %v675, 48
      %v1473 = vpop.permute.xlu0 %1472
      %1474 = vrot.lane.b32.xlu0 %v676, 48
      %v1475 = vpop.permute.xlu0 %1474
      %1476 = vrot.lane.b32.xlu0 %v677, 48
      %v1477 = vpop.permute.xlu0 %1476
      %1542 = vrot.lane.b32.xlu0 %v678, 56
      %v1543 = vpop.permute.xlu0 %1542
      %1544 = vrot.lane.b32.xlu0 %v679, 56
      %v1545 = vpop.permute.xlu0 %1544
      %1546 = vrot.lane.b32.xlu0 %v680, 56
      %v1547 = vpop.permute.xlu0 %1546
      %1548 = vrot.lane.b32.xlu0 %v681, 56
      %v1549 = vpop.permute.xlu0 %1548
      %1550 = vrot.lane.b32.xlu0 %v682, 56
      %v1551 = vpop.permute.xlu0 %1550
      %1552 = vrot.lane.b32.xlu0 %v683, 56
      %v1553 = vpop.permute.xlu0 %1552
      %1554 = vrot.lane.b32.xlu0 %v684, 56
      %v1555 = vpop.permute.xlu0 %1554
      %1556 = vrot.lane.b32.xlu0 %v685, 56
      %v1557 = vpop.permute.xlu0 %1556
      %1558 = vrot.lane.b32.xlu0 %v686, 56
      %v1559 = vpop.permute.xlu0 %1558
      %1560 = vrot.lane.b32.xlu0 %v687, 56
      %v1561 = vpop.permute.xlu0 %1560
      %1562 = vrot.lane.b32.xlu0 %v688, 56
      %v1563 = vpop.permute.xlu0 %1562
      %1564 = vrot.lane.b32.xlu0 %v689, 56
      %v1565 = vpop.permute.xlu0 %1564
      %1566 = vrot.lane.b32.xlu0 %v690, 56
      %v1567 = vpop.permute.xlu0 %1566
      %1568 = vrot.lane.b32.xlu0 %v691, 56
      %v1569 = vpop.permute.xlu0 %1568
      %1570 = vrot.lane.b32.xlu0 %v692, 56
      %v1571 = vpop.permute.xlu0 %1570
      %1572 = vrot.lane.b32.xlu0 %v693, 56
      %v1573 = vpop.permute.xlu0 %1572
      %1574 = vrot.lane.b32.xlu0 %v694, 56
      %v1575 = vpop.permute.xlu0 %1574
      %1576 = vrot.lane.b32.xlu0 %v695, 56
      %v1577 = vpop.permute.xlu0 %1576
      %1578 = vrot.lane.b32.xlu0 %v696, 56
      %v1579 = vpop.permute.xlu0 %1578
      %1580 = vrot.lane.b32.xlu0 %v697, 56
      %v1581 = vpop.permute.xlu0 %1580
      %1582 = vrot.lane.b32.xlu0 %v698, 56
      %v1583 = vpop.permute.xlu0 %1582
      %1584 = vrot.lane.b32.xlu0 %v699, 56
      %v1585 = vpop.permute.xlu0 %1584
      %1586 = vrot.lane.b32.xlu0 %v700, 56
      %v1587 = vpop.permute.xlu0 %1586
      %1588 = vrot.lane.b32.xlu0 %v701, 56
      %v1589 = vpop.permute.xlu0 %1588
      %1590 = vrot.lane.b32.xlu0 %v702, 56
      %v1591 = vpop.permute.xlu0 %1590
      %1592 = vrot.lane.b32.xlu0 %v703, 56
      %v1593 = vpop.permute.xlu0 %1592
      %1594 = vrot.lane.b32.xlu0 %v704, 56
      %v1595 = vpop.permute.xlu0 %1594
      %1596 = vrot.lane.b32.xlu0 %v705, 56
      %v1597 = vpop.permute.xlu0 %1596
      %1598 = vrot.lane.b32.xlu0 %v706, 56
      %v1599 = vpop.permute.xlu0 %1598
      %1600 = vrot.lane.b32.xlu0 %v707, 56
      %v1601 = vpop.permute.xlu0 %1600
      %1602 = vrot.lane.b32.xlu0 %v708, 56
      %v1603 = vpop.permute.xlu0 %1602
      %1604 = vrot.lane.b32.xlu0 %v709, 56
      %v1605 = vpop.permute.xlu0 %1604
      %1670 = vrot.lane.b32.xlu0 %v710, 64
      %v1671 = vpop.permute.xlu0 %1670
      %1672 = vrot.lane.b32.xlu0 %v711, 64
      %v1673 = vpop.permute.xlu0 %1672
      %1674 = vrot.lane.b32.xlu0 %v712, 64
      %v1675 = vpop.permute.xlu0 %1674
      %1676 = vrot.lane.b32.xlu0 %v713, 64
      %v1677 = vpop.permute.xlu0 %1676
      %1678 = vrot.lane.b32.xlu0 %v714, 64
      %v1679 = vpop.permute.xlu0 %1678
      %1680 = vrot.lane.b32.xlu0 %v715, 64
      %v1681 = vpop.permute.xlu0 %1680
      %1682 = vrot.lane.b32.xlu0 %v716, 64
      %v1683 = vpop.permute.xlu0 %1682
      %1684 = vrot.lane.b32.xlu0 %v717, 64
      %v1685 = vpop.permute.xlu0 %1684
      %1686 = vrot.lane.b32.xlu0 %v718, 64
      %v1687 = vpop.permute.xlu0 %1686
      %1688 = vrot.lane.b32.xlu0 %v719, 64
      %v1689 = vpop.permute.xlu0 %1688
      %1690 = vrot.lane.b32.xlu0 %v720, 64
      %v1691 = vpop.permute.xlu0 %1690
      %1692 = vrot.lane.b32.xlu0 %v721, 64
      %v1693 = vpop.permute.xlu0 %1692
      %1694 = vrot.lane.b32.xlu0 %v722, 64
      %v1695 = vpop.permute.xlu0 %1694
      %1696 = vrot.lane.b32.xlu0 %v723, 64
      %v1697 = vpop.permute.xlu0 %1696
      %1698 = vrot.lane.b32.xlu0 %v724, 64
      %v1699 = vpop.permute.xlu0 %1698
      %1700 = vrot.lane.b32.xlu0 %v725, 64
      %v1701 = vpop.permute.xlu0 %1700
      %1702 = vrot.lane.b32.xlu0 %v726, 64
      %v1703 = vpop.permute.xlu0 %1702
      %1704 = vrot.lane.b32.xlu0 %v727, 64
      %v1705 = vpop.permute.xlu0 %1704
      %1706 = vrot.lane.b32.xlu0 %v728, 64
      %v1707 = vpop.permute.xlu0 %1706
      %1708 = vrot.lane.b32.xlu0 %v729, 64
      %v1709 = vpop.permute.xlu0 %1708
      %1710 = vrot.lane.b32.xlu0 %v730, 64
      %v1711 = vpop.permute.xlu0 %1710
      %1712 = vrot.lane.b32.xlu0 %v731, 64
      %v1713 = vpop.permute.xlu0 %1712
      %1714 = vrot.lane.b32.xlu0 %v732, 64
      %v1715 = vpop.permute.xlu0 %1714
      %1716 = vrot.lane.b32.xlu0 %v733, 64
      %v1717 = vpop.permute.xlu0 %1716
      %1718 = vrot.lane.b32.xlu0 %v734, 64
      %v1719 = vpop.permute.xlu0 %1718
      %1720 = vrot.lane.b32.xlu0 %v735, 64
      %v1721 = vpop.permute.xlu0 %1720
      %1722 = vrot.lane.b32.xlu0 %v736, 64
      %v1723 = vpop.permute.xlu0 %1722
      %1724 = vrot.lane.b32.xlu0 %v737, 64
      %v1725 = vpop.permute.xlu0 %1724
      %1726 = vrot.lane.b32.xlu0 %v738, 64
      %v1727 = vpop.permute.xlu0 %1726
      %1728 = vrot.lane.b32.xlu0 %v739, 64
      %v1729 = vpop.permute.xlu0 %1728
      %1730 = vrot.lane.b32.xlu0 %v740, 64
      %v1731 = vpop.permute.xlu0 %1730
      %1732 = vrot.lane.b32.xlu0 %v741, 64
      %v1733 = vpop.permute.xlu0 %1732
      %v1766 = vsel %vm378, %v453, %v775
      %v1767 = vsel %vm378, %v454, %v777
      %v1768 = vsel %vm378, %v455, %v779
      %v1769 = vsel %vm378, %v456, %v781
      %v1770 = vsel %vm378, %v457, %v783
      %v1771 = vsel %vm378, %v458, %v785
      %v1772 = vsel %vm378, %v459, %v787
      %v1773 = vsel %vm378, %v460, %v789
      %v1774 = vsel %vm378, %v461, %v791
      %v1775 = vsel %vm378, %v462, %v793
      %v1776 = vsel %vm378, %v463, %v795
      %v1777 = vsel %vm378, %v464, %v797
      %v1778 = vsel %vm378, %v465, %v799
      %v1779 = vsel %vm378, %v466, %v801
      %v1780 = vsel %vm378, %v467, %v803
      %v1781 = vsel %vm378, %v468, %v805
      %v1782 = vsel %vm378, %v469, %v807
      %v1783 = vsel %vm378, %v470, %v809
      %v1784 = vsel %vm378, %v471, %v811
      %v1785 = vsel %vm378, %v472, %v813
      %v1786 = vsel %vm378, %v473, %v815
      %v1787 = vsel %vm378, %v474, %v817
      %v1788 = vsel %vm378, %v475, %v819
      %v1789 = vsel %vm378, %v476, %v821
      %v1790 = vsel %vm378, %v477, %v823
      %v1791 = vsel %vm378, %v478, %v825
      %v1792 = vsel %vm378, %v479, %v827
      %v1793 = vsel %vm378, %v480, %v829
      %v1794 = vsel %vm378, %v481, %v831
      %v1795 = vsel %vm378, %v482, %v833
      %v1796 = vsel %vm378, %v483, %v835
      %v1797 = vsel %vm378, %v484, %v837
      %vm1798 = vcmask 130048
      %v1799 = vsel %vm1798, %v1766, %v903
      %v1800 = vsel %vm1798, %v1767, %v905
      %v1801 = vsel %vm1798, %v1768, %v907
      %v1802 = vsel %vm1798, %v1769, %v909
      %v1803 = vsel %vm1798, %v1770, %v911
      %v1804 = vsel %vm1798, %v1771, %v913
      %v1805 = vsel %vm1798, %v1772, %v915
      %v1806 = vsel %vm1798, %v1773, %v917
      %v1807 = vsel %vm1798, %v1774, %v919
      %v1808 = vsel %vm1798, %v1775, %v921
      %v1809 = vsel %vm1798, %v1776, %v923
      %v1810 = vsel %vm1798, %v1777, %v925
      %v1811 = vsel %vm1798, %v1778, %v927
      %v1812 = vsel %vm1798, %v1779, %v929
      %v1813 = vsel %vm1798, %v1780, %v931
      %v1814 = vsel %vm1798, %v1781, %v933
      %v1815 = vsel %vm1798, %v1782, %v935
      %v1816 = vsel %vm1798, %v1783, %v937
      %v1817 = vsel %vm1798, %v1784, %v939
      %v1818 = vsel %vm1798, %v1785, %v941
      %v1819 = vsel %vm1798, %v1786, %v943
      %v1820 = vsel %vm1798, %v1787, %v945
      %v1821 = vsel %vm1798, %v1788, %v947
      %v1822 = vsel %vm1798, %v1789, %v949
      %v1823 = vsel %vm1798, %v1790, %v951
      %v1824 = vsel %vm1798, %v1791, %v953
      %v1825 = vsel %vm1798, %v1792, %v955
      %v1826 = vsel %vm1798, %v1793, %v957
      %v1827 = vsel %vm1798, %v1794, %v959
      %v1828 = vsel %vm1798, %v1795, %v961
      %v1829 = vsel %vm1798, %v1796, %v963
      %v1830 = vsel %vm1798, %v1797, %v965
      %vm1831 = vcmask 195584
      %v1832 = vsel %vm1831, %v1799, %v1031
      %v1833 = vsel %vm1831, %v1800, %v1033
      %v1834 = vsel %vm1831, %v1801, %v1035
      %v1835 = vsel %vm1831, %v1802, %v1037
      %v1836 = vsel %vm1831, %v1803, %v1039
      %v1837 = vsel %vm1831, %v1804, %v1041
      %v1838 = vsel %vm1831, %v1805, %v1043
      %v1839 = vsel %vm1831, %v1806, %v1045
      %v1840 = vsel %vm1831, %v1807, %v1047
      %v1841 = vsel %vm1831, %v1808, %v1049
      %v1842 = vsel %vm1831, %v1809, %v1051
      %v1843 = vsel %vm1831, %v1810, %v1053
      %v1844 = vsel %vm1831, %v1811, %v1055
      %v1845 = vsel %vm1831, %v1812, %v1057
      %v1846 = vsel %vm1831, %v1813, %v1059
      %v1847 = vsel %vm1831, %v1814, %v1061
      %v1848 = vsel %vm1831, %v1815, %v1063
      %v1849 = vsel %vm1831, %v1816, %v1065
      %v1850 = vsel %vm1831, %v1817, %v1067
      %v1851 = vsel %vm1831, %v1818, %v1069
      %v1852 = vsel %vm1831, %v1819, %v1071
      %v1853 = vsel %vm1831, %v1820, %v1073
      %v1854 = vsel %vm1831, %v1821, %v1075
      %v1855 = vsel %vm1831, %v1822, %v1077
      %v1856 = vsel %vm1831, %v1823, %v1079
      %v1857 = vsel %vm1831, %v1824, %v1081
      %v1858 = vsel %vm1831, %v1825, %v1083
      %v1859 = vsel %vm1831, %v1826, %v1085
      %v1860 = vsel %vm1831, %v1827, %v1087
      %v1861 = vsel %vm1831, %v1828, %v1089
      %v1862 = vsel %vm1831, %v1829, %v1091
      %v1863 = vsel %vm1831, %v1830, %v1093
      %vm1864 = vcmask 261120
      %v1865 = vsel %vm1864, %v1832, %v1159
      %v1866 = vsel %vm1864, %v1833, %v1161
      %v1867 = vsel %vm1864, %v1834, %v1163
      %v1868 = vsel %vm1864, %v1835, %v1165
      %v1869 = vsel %vm1864, %v1836, %v1167
      %v1870 = vsel %vm1864, %v1837, %v1169
      %v1871 = vsel %vm1864, %v1838, %v1171
      %v1872 = vsel %vm1864, %v1839, %v1173
      %v1873 = vsel %vm1864, %v1840, %v1175
      %v1874 = vsel %vm1864, %v1841, %v1177
      %v1875 = vsel %vm1864, %v1842, %v1179
      %v1876 = vsel %vm1864, %v1843, %v1181
      %v1877 = vsel %vm1864, %v1844, %v1183
      %v1878 = vsel %vm1864, %v1845, %v1185
      %v1879 = vsel %vm1864, %v1846, %v1187
      %v1880 = vsel %vm1864, %v1847, %v1189
      %v1881 = vsel %vm1864, %v1848, %v1191
      %v1882 = vsel %vm1864, %v1849, %v1193
      %v1883 = vsel %vm1864, %v1850, %v1195
      %v1884 = vsel %vm1864, %v1851, %v1197
      %v1885 = vsel %vm1864, %v1852, %v1199
      %v1886 = vsel %vm1864, %v1853, %v1201
      %v1887 = vsel %vm1864, %v1854, %v1203
      %v1888 = vsel %vm1864, %v1855, %v1205
      %v1889 = vsel %vm1864, %v1856, %v1207
      %v1890 = vsel %vm1864, %v1857, %v1209
      %v1891 = vsel %vm1864, %v1858, %v1211
      %v1892 = vsel %vm1864, %v1859, %v1213
      %v1893 = vsel %vm1864, %v1860, %v1215
      %v1894 = vsel %vm1864, %v1861, %v1217
      %v1895 = vsel %vm1864, %v1862, %v1219
      %v1896 = vsel %vm1864, %v1863, %v1221
      %vm1897 = vcmask 326656
      %v1898 = vsel %vm1897, %v1865, %v1287
      %v1899 = vsel %vm1897, %v1866, %v1289
      %v1900 = vsel %vm1897, %v1867, %v1291
      %v1901 = vsel %vm1897, %v1868, %v1293
      %v1902 = vsel %vm1897, %v1869, %v1295
      %v1903 = vsel %vm1897, %v1870, %v1297
      %v1904 = vsel %vm1897, %v1871, %v1299
      %v1905 = vsel %vm1897, %v1872, %v1301
      %v1906 = vsel %vm1897, %v1873, %v1303
      %v1907 = vsel %vm1897, %v1874, %v1305
      %v1908 = vsel %vm1897, %v1875, %v1307
      %v1909 = vsel %vm1897, %v1876, %v1309
      %v1910 = vsel %vm1897, %v1877, %v1311
      %v1911 = vsel %vm1897, %v1878, %v1313
      %v1912 = vsel %vm1897, %v1879, %v1315
      %v1913 = vsel %vm1897, %v1880, %v1317
      %v1914 = vsel %vm1897, %v1881, %v1319
      %v1915 = vsel %vm1897, %v1882, %v1321
      %v1916 = vsel %vm1897, %v1883, %v1323
      %v1917 = vsel %vm1897, %v1884, %v1325
      %v1918 = vsel %vm1897, %v1885, %v1327
      %v1919 = vsel %vm1897, %v1886, %v1329
      %v1920 = vsel %vm1897, %v1887, %v1331
      %v1921 = vsel %vm1897, %v1888, %v1333
      %v1922 = vsel %vm1897, %v1889, %v1335
      %v1923 = vsel %vm1897, %v1890, %v1337
      %v1924 = vsel %vm1897, %v1891, %v1339
      %v1925 = vsel %vm1897, %v1892, %v1341
      %v1926 = vsel %vm1897, %v1893, %v1343
      %v1927 = vsel %vm1897, %v1894, %v1345
      %v1928 = vsel %vm1897, %v1895, %v1347
      %v1929 = vsel %vm1897, %v1896, %v1349
      %vm1930 = vcmask 392192
      %v1931 = vsel %vm1930, %v1898, %v1415
      %v1932 = vsel %vm1930, %v1899, %v1417
      %v1933 = vsel %vm1930, %v1900, %v1419
      %v1934 = vsel %vm1930, %v1901, %v1421
      %v1935 = vsel %vm1930, %v1902, %v1423
      %v1936 = vsel %vm1930, %v1903, %v1425
      %v1937 = vsel %vm1930, %v1904, %v1427
      %v1938 = vsel %vm1930, %v1905, %v1429
      %v1939 = vsel %vm1930, %v1906, %v1431
      %v1940 = vsel %vm1930, %v1907, %v1433
      %v1941 = vsel %vm1930, %v1908, %v1435
      %v1942 = vsel %vm1930, %v1909, %v1437
      %v1943 = vsel %vm1930, %v1910, %v1439
      %v1944 = vsel %vm1930, %v1911, %v1441
      %v1945 = vsel %vm1930, %v1912, %v1443
      %v1946 = vsel %vm1930, %v1913, %v1445
      %v1947 = vsel %vm1930, %v1914, %v1447
      %v1948 = vsel %vm1930, %v1915, %v1449
      %v1949 = vsel %vm1930, %v1916, %v1451
      %v1950 = vsel %vm1930, %v1917, %v1453
      %v1951 = vsel %vm1930, %v1918, %v1455
      %v1952 = vsel %vm1930, %v1919, %v1457
      %v1953 = vsel %vm1930, %v1920, %v1459
      %v1954 = vsel %vm1930, %v1921, %v1461
      %v1955 = vsel %vm1930, %v1922, %v1463
      %v1956 = vsel %vm1930, %v1923, %v1465
      %v1957 = vsel %vm1930, %v1924, %v1467
      %v1958 = vsel %vm1930, %v1925, %v1469
      %v1959 = vsel %vm1930, %v1926, %v1471
      %v1960 = vsel %vm1930, %v1927, %v1473
      %v1961 = vsel %vm1930, %v1928, %v1475
      %v1962 = vsel %vm1930, %v1929, %v1477
      %vm1963 = vcmask 457728
      %v1964 = vsel %vm1963, %v1931, %v1543
      %v1965 = vsel %vm1963, %v1932, %v1545
      %v1966 = vsel %vm1963, %v1933, %v1547
      %v1967 = vsel %vm1963, %v1934, %v1549
      %v1968 = vsel %vm1963, %v1935, %v1551
      %v1969 = vsel %vm1963, %v1936, %v1553
      %v1970 = vsel %vm1963, %v1937, %v1555
      %v1971 = vsel %vm1963, %v1938, %v1557
      %v1972 = vsel %vm1963, %v1939, %v1559
      %v1973 = vsel %vm1963, %v1940, %v1561
      %v1974 = vsel %vm1963, %v1941, %v1563
      %v1975 = vsel %vm1963, %v1942, %v1565
      %v1976 = vsel %vm1963, %v1943, %v1567
      %v1977 = vsel %vm1963, %v1944, %v1569
      %v1978 = vsel %vm1963, %v1945, %v1571
      %v1979 = vsel %vm1963, %v1946, %v1573
      %v1980 = vsel %vm1963, %v1947, %v1575
      %v1981 = vsel %vm1963, %v1948, %v1577
      %v1982 = vsel %vm1963, %v1949, %v1579
      %v1983 = vsel %vm1963, %v1950, %v1581
      %v1984 = vsel %vm1963, %v1951, %v1583
      %v1985 = vsel %vm1963, %v1952, %v1585
      %v1986 = vsel %vm1963, %v1953, %v1587
      %v1987 = vsel %vm1963, %v1954, %v1589
      %v1988 = vsel %vm1963, %v1955, %v1591
      %v1989 = vsel %vm1963, %v1956, %v1593
      %v1990 = vsel %vm1963, %v1957, %v1595
      %v1991 = vsel %vm1963, %v1958, %v1597
      %v1992 = vsel %vm1963, %v1959, %v1599
      %v1993 = vsel %vm1963, %v1960, %v1601
      %v1994 = vsel %vm1963, %v1961, %v1603
      %v1995 = vsel %vm1963, %v1962, %v1605
      %vm1996 = vcmask 523264
      %v1997 = vsel %vm1996, %v1964, %v1671
      %v1998 = vsel %vm1996, %v1965, %v1673
      %v1999 = vsel %vm1996, %v1966, %v1675
      %v2000 = vsel %vm1996, %v1967, %v1677
      %v2001 = vsel %vm1996, %v1968, %v1679
      %v2002 = vsel %vm1996, %v1969, %v1681
      %v2003 = vsel %vm1996, %v1970, %v1683
      %v2004 = vsel %vm1996, %v1971, %v1685
      %v2005 = vsel %vm1996, %v1972, %v1687
      %v2006 = vsel %vm1996, %v1973, %v1689
      %v2007 = vsel %vm1996, %v1974, %v1691
      %v2008 = vsel %vm1996, %v1975, %v1693
      %v2009 = vsel %vm1996, %v1976, %v1695
      %v2010 = vsel %vm1996, %v1977, %v1697
      %v2011 = vsel %vm1996, %v1978, %v1699
      %v2012 = vsel %vm1996, %v1979, %v1701
      %v2013 = vsel %vm1996, %v1980, %v1703
      %v2014 = vsel %vm1996, %v1981, %v1705
      %v2015 = vsel %vm1996, %v1982, %v1707
      %v2016 = vsel %vm1996, %v1983, %v1709
      %v2017 = vsel %vm1996, %v1984, %v1711
      %v2018 = vsel %vm1996, %v1985, %v1713
      %v2019 = vsel %vm1996, %v1986, %v1715
      %v2020 = vsel %vm1996, %v1987, %v1717
      %v2021 = vsel %vm1996, %v1988, %v1719
      %v2022 = vsel %vm1996, %v1989, %v1721
      %v2023 = vsel %vm1996, %v1990, %v1723
      %v2024 = vsel %vm1996, %v1991, %v1725
      %v2025 = vsel %vm1996, %v1992, %v1727
      %v2026 = vsel %vm1996, %v1993, %v1729
      %v2027 = vsel %vm1996, %v1994, %v1731
      %v2028 = vsel %vm1996, %v1995, %v1733
      %v2029 = vld [vmem:[%s3] sm:$0xff]
      %v2030 = vld [vmem:[%s3 + $0x8] sm:$0xff]
      %v2031 = vld [vmem:[%s3 + $0x10] sm:$0xff]
      %v2032 = vld [vmem:[%s3 + $0x18] sm:$0xff]
      %v2033 = vld [vmem:[%s3 + $0x20] sm:$0xff]
      %v2034 = vld [vmem:[%s3 + $0x28] sm:$0xff]
      %v2035 = vld [vmem:[%s3 + $0x30] sm:$0xff]
      %v2036 = vld [vmem:[%s3 + $0x38] sm:$0xff]
      %v2037 = vld [vmem:[%s3 + $0x40] sm:$0xff]
      %vm2038 = vcmask 588800
      %v2040 = vsel %vm2038, %v1997, 0
      %v2043 = vsel %vm2038, %v1998, 0
      %v2046 = vsel %vm2038, %v1999, 0
      %v2049 = vsel %vm2038, %v2000, 0
      %v2052 = vsel %vm2038, %v2001, 0
      %v2055 = vsel %vm2038, %v2002, 0
      %v2058 = vsel %vm2038, %v2003, 0
      %v2061 = vsel %vm2038, %v2004, 0
      %v2064 = vsel %vm2038, %v2005, 0
      %v2067 = vsel %vm2038, %v2006, 0
      %v2070 = vsel %vm2038, %v2007, 0
      %v2073 = vsel %vm2038, %v2008, 0
      %v2076 = vsel %vm2038, %v2009, 0
      %v2079 = vsel %vm2038, %v2010, 0
      %v2082 = vsel %vm2038, %v2011, 0
      %v2085 = vsel %vm2038, %v2012, 0
      %v2088 = vsel %vm2038, %v2013, 0
      %v2091 = vsel %vm2038, %v2014, 0
      %v2094 = vsel %vm2038, %v2015, 0
      %v2097 = vsel %vm2038, %v2016, 0
      %v2100 = vsel %vm2038, %v2017, 0
      %v2103 = vsel %vm2038, %v2018, 0
      %v2106 = vsel %vm2038, %v2019, 0
      %v2109 = vsel %vm2038, %v2020, 0
      %v2112 = vsel %vm2038, %v2021, 0
      %v2115 = vsel %vm2038, %v2022, 0
      %v2118 = vsel %vm2038, %v2023, 0
      %v2121 = vsel %vm2038, %v2024, 0
      %v2124 = vsel %vm2038, %v2025, 0
      %v2127 = vsel %vm2038, %v2026, 0
      %v2130 = vsel %vm2038, %v2027, 0
      %v2133 = vsel %vm2038, %v2028, 0
      %2135 = vmatprep.subr.mxu0 0.0
      %2136 = vmatpush1.msra.mxu0 %v2029
      %2137 = vmatprep.subr.mxu0 0.0
      %2138 = vmatpush1.msra.mxu0 %v2030
      %2139 = vmatprep.subr.mxu0 0.0
      %2140 = vmatpush1.msra.mxu0 %v2031
      %2141 = vmatprep.subr.mxu0 0.0
      %2142 = vmatpush1.msra.mxu0 %v2032
      %2143 = vmatprep.subr.mxu0 0.0
      %2144 = vmatpush1.msra.mxu0 %v2033
      %2145 = vmatprep.subr.mxu0 0.0
      %2146 = vmatpush1.msra.mxu0 %v2034
      %2147 = vmatprep.subr.mxu0 0.0
      %2148 = vmatpush1.msra.mxu0 %v2035
      %2149 = vmatprep.subr.mxu0 0.0
      %2150 = vmatpush1.msra.mxu0 %v2036
      %2151 = vmatprep.subr.mxu0 0.0
      %2152 = vmatpush1.msra.mxu0 %v2037
      %2153 = vmatprep.subr.mxu0 0.0
      %2154 = vmatpush1.msra.mxu0 0.0
      %2155 = vmatprep.subr.mxu0 0.0
      %2156 = vmatpush1.msra.mxu0 0.0
      %2157 = vmatprep.subr.mxu0 0.0
      %2158 = vmatpush1.msra.mxu0 0.0
      %2159 = vmatprep.subr.mxu0 0.0
      %2160 = vmatpush1.msra.mxu0 0.0
      %2161 = vmatprep.subr.mxu0 0.0
      %2162 = vmatpush1.msra.mxu0 0.0
      %2163 = vmatprep.subr.mxu0 0.0
      %2164 = vmatpush1.msra.mxu0 0.0
      %2165 = vmatprep.subr.mxu0 0.0
      %2166 = vmatpush1.msra.mxu0 0.0
      %2167 = vmatprep.subr.mxu0 0.0
      %2168 = vmatpush1.msra.mxu0 0.0
      %2169 = vmatprep.subr.mxu0 0.0
      %2170 = vmatpush1.msra.mxu0 0.0
      %2171 = vmatprep.subr.mxu0 0.0
      %2172 = vmatpush1.msra.mxu0 0.0
      %2173 = vmatprep.subr.mxu0 0.0
      %2174 = vmatpush1.msra.mxu0 0.0
      %2175 = vmatprep.subr.mxu0 0.0
      %2176 = vmatpush1.msra.mxu0 0.0
      %2177 = vmatprep.subr.mxu0 0.0
      %2178 = vmatpush1.msra.mxu0 0.0
      %2179 = vmatprep.subr.mxu0 0.0
      %2180 = vmatpush1.msra.mxu0 0.0
      %2181 = vmatprep.subr.mxu0 0.0
      %2182 = vmatpush1.msra.mxu0 0.0
      %2183 = vmatprep.subr.mxu0 0.0
      %2184 = vmatpush1.msra.mxu0 0.0
      %2185 = vmatprep.subr.mxu0 0.0
      %2186 = vmatpush1.msra.mxu0 0.0
      %2187 = vmatprep.subr.mxu0 0.0
      %2188 = vmatpush1.msra.mxu0 0.0
      %2189 = vmatprep.subr.mxu0 0.0
      %2190 = vmatpush1.msra.mxu0 0.0
      %2191 = vmatprep.subr.mxu0 0.0
      %2192 = vmatpush1.msra.mxu0 0.0
      %2193 = vmatprep.subr.mxu0 0.0
      %2194 = vmatpush1.msra.mxu0 0.0
      %2195 = vmatprep.subr.mxu0 0.0
      %2196 = vmatpush1.msra.mxu0 0.0
      %2197 = vmatprep.subr.mxu0 0.0
      %2198 = vmatpush1.msra.mxu0 0.0
      %2199 = vmatprep.mubr.f32.mxu0 0.0
      %2200 = vmatmul.mubr.f32.gmra.mrb[0].mxu0 %v2040
      %v2201 = vpop.f32.mrb[0].mxu0
      %v2202 = vadd.f32 0.0, %v2201
      %v2203 = vpop.f32.mrb[0].mxu0
      %2204 = vmatprep.mubr.f32.mxu0 0.0
      %2205 = vmatmul.mubr.f32.gmra.mrb[0].mxu0 %v2043
      %v2206 = vpop.f32.mrb[0].mxu0
      %v2207 = vadd.f32 0.0, %v2206
      %v2208 = vpop.f32.mrb[0].mxu0
      %2209 = vmatprep.mubr.f32.mxu0 0.0
      %2210 = vmatmul.mubr.f32.gmra.mrb[0].mxu0 %v2046
      %v2211 = vpop.f32.mrb[0].mxu0
      %v2212 = vadd.f32 0.0, %v2211
      %v2213 = vpop.f32.mrb[0].mxu0
      %2214 = vmatprep.mubr.f32.mxu0 0.0
      %2215 = vmatmul.mubr.f32.gmra.mrb[0].mxu0 %v2049
      %v2216 = vpop.f32.mrb[0].mxu0
      %v2217 = vadd.f32 0.0, %v2216
      %v2218 = vpop.f32.mrb[0].mxu0
      %2219 = vmatprep.mubr.f32.mxu0 0.0
      %2220 = vmatmul.mubr.f32.gmra.mrb[0].mxu0 %v2052
      %v2221 = vpop.f32.mrb[0].mxu0
      %v2222 = vadd.f32 0.0, %v2221
      %v2223 = vpop.f32.mrb[0].mxu0
      %2224 = vmatprep.mubr.f32.mxu0 0.0
      %2225 = vmatmul.mubr.f32.gmra.mrb[0].mxu0 %v2055
      %v2226 = vpop.f32.mrb[0].mxu0
      %v2227 = vadd.f32 0.0, %v2226
      %v2228 = vpop.f32.mrb[0].mxu0
      %2229 = vmatprep.mubr.f32.mxu0 0.0
      %2230 = vmatmul.mubr.f32.gmra.mrb[0].mxu0 %v2058
      %v2231 = vpop.f32.mrb[0].mxu0
      %v2232 = vadd.f32 0.0, %v2231
      %v2233 = vpop.f32.mrb[0].mxu0
      %2234 = vmatprep.mubr.f32.mxu0 0.0
      %2235 = vmatmul.mubr.f32.gmra.mrb[0].mxu0 %v2061
      %v2236 = vpop.f32.mrb[0].mxu0
      %v2237 = vadd.f32 0.0, %v2236
      %v2238 = vpop.f32.mrb[0].mxu0
      %2239 = vmatprep.mubr.f32.mxu0 0.0
      %2240 = vmatmul.mubr.f32.gmra.mrb[0].mxu0 %v2064
      %v2241 = vpop.f32.mrb[0].mxu0
      %v2242 = vadd.f32 0.0, %v2241
      %v2243 = vpop.f32.mrb[0].mxu0
      %2244 = vmatprep.mubr.f32.mxu0 0.0
      %2245 = vmatmul.mubr.f32.gmra.mrb[0].mxu0 %v2067
      %v2246 = vpop.f32.mrb[0].mxu0
      %v2247 = vadd.f32 0.0, %v2246
      %v2248 = vpop.f32.mrb[0].mxu0
      %2249 = vmatprep.mubr.f32.mxu0 0.0
      %2250 = vmatmul.mubr.f32.gmra.mrb[0].mxu0 %v2070
      %v2251 = vpop.f32.mrb[0].mxu0
      %v2252 = vadd.f32 0.0, %v2251
      %v2253 = vpop.f32.mrb[0].mxu0
      %2254 = vmatprep.mubr.f32.mxu0 0.0
      %2255 = vmatmul.mubr.f32.gmra.mrb[0].mxu0 %v2073
      %v2256 = vpop.f32.mrb[0].mxu0
      %v2257 = vadd.f32 0.0, %v2256
      %v2258 = vpop.f32.mrb[0].mxu0
      %2259 = vmatprep.mubr.f32.mxu0 0.0
      %2260 = vmatmul.mubr.f32.gmra.mrb[0].mxu0 %v2076
      %v2261 = vpop.f32.mrb[0].mxu0
      %v2262 = vadd.f32 0.0, %v2261
      %v2263 = vpop.f32.mrb[0].mxu0
      %2264 = vmatprep.mubr.f32.mxu0 0.0
      %2265 = vmatmul.mubr.f32.gmra.mrb[0].mxu0 %v2079
      %v2266 = vpop.f32.mrb[0].mxu0
      %v2267 = vadd.f32 0.0, %v2266
      %v2268 = vpop.f32.mrb[0].mxu0
      %2269 = vmatprep.mubr.f32.mxu0 0.0
      %2270 = vmatmul.mubr.f32.gmra.mrb[0].mxu0 %v2082
      %v2271 = vpop.f32.mrb[0].mxu0
      %v2272 = vadd.f32 0.0, %v2271
      %v2273 = vpop.f32.mrb[0].mxu0
      %2274 = vmatprep.mubr.f32.mxu0 0.0
      %2275 = vmatmul.mubr.f32.gmra.mrb[0].mxu0 %v2085
      %v2276 = vpop.f32.mrb[0].mxu0
      %v2277 = vadd.f32 0.0, %v2276
      %v2278 = vpop.f32.mrb[0].mxu0
      %2279 = vmatprep.mubr.f32.mxu0 0.0
      %2280 = vmatmul.mubr.f32.gmra.mrb[0].mxu0 %v2088
      %v2281 = vpop.f32.mrb[0].mxu0
      %v2282 = vadd.f32 0.0, %v2281
      %v2283 = vpop.f32.mrb[0].mxu0
      %2284 = vmatprep.mubr.f32.mxu0 0.0
      %2285 = vmatmul.mubr.f32.gmra.mrb[0].mxu0 %v2091
      %v2286 = vpop.f32.mrb[0].mxu0
      %v2287 = vadd.f32 0.0, %v2286
      %v2288 = vpop.f32.mrb[0].mxu0
      %2289 = vmatprep.mubr.f32.mxu0 0.0
      %2290 = vmatmul.mubr.f32.gmra.mrb[0].mxu0 %v2094
      %v2291 = vpop.f32.mrb[0].mxu0
      %v2292 = vadd.f32 0.0, %v2291
      %v2293 = vpop.f32.mrb[0].mxu0
      %2294 = vmatprep.mubr.f32.mxu0 0.0
      %2295 = vmatmul.mubr.f32.gmra.mrb[0].mxu0 %v2097
      %v2296 = vpop.f32.mrb[0].mxu0
      %v2297 = vadd.f32 0.0, %v2296
      %v2298 = vpop.f32.mrb[0].mxu0
      %2299 = vmatprep.mubr.f32.mxu0 0.0
      %2300 = vmatmul.mubr.f32.gmra.mrb[0].mxu0 %v2100
      %v2301 = vpop.f32.mrb[0].mxu0
      %v2302 = vadd.f32 0.0, %v2301
      %v2303 = vpop.f32.mrb[0].mxu0
      %2304 = vmatprep.mubr.f32.mxu0 0.0
      %2305 = vmatmul.mubr.f32.gmra.mrb[0].mxu0 %v2103
      %v2306 = vpop.f32.mrb[0].mxu0
      %v2307 = vadd.f32 0.0, %v2306
      %v2308 = vpop.f32.mrb[0].mxu0
      %2309 = vmatprep.mubr.f32.mxu0 0.0
      %2310 = vmatmul.mubr.f32.gmra.mrb[0].mxu0 %v2106
      %v2311 = vpop.f32.mrb[0].mxu0
      %v2312 = vadd.f32 0.0, %v2311
      %v2313 = vpop.f32.mrb[0].mxu0
      %2314 = vmatprep.mubr.f32.mxu0 0.0
      %2315 = vmatmul.mubr.f32.gmra.mrb[0].mxu0 %v2109
      %v2316 = vpop.f32.mrb[0].mxu0
      %v2317 = vadd.f32 0.0, %v2316
      %v2318 = vpop.f32.mrb[0].mxu0
      %2319 = vmatprep.mubr.f32.mxu0 0.0
      %2320 = vmatmul.mubr.f32.gmra.mrb[0].mxu0 %v2112
      %v2321 = vpop.f32.mrb[0].mxu0
      %v2322 = vadd.f32 0.0, %v2321
      %v2323 = vpop.f32.mrb[0].mxu0
      %2324 = vmatprep.mubr.f32.mxu0 0.0
      %2325 = vmatmul.mubr.f32.gmra.mrb[0].mxu0 %v2115
      %v2326 = vpop.f32.mrb[0].mxu0
      %v2327 = vadd.f32 0.0, %v2326
      %v2328 = vpop.f32.mrb[0].mxu0
      %2329 = vmatprep.mubr.f32.mxu0 0.0
      %2330 = vmatmul.mubr.f32.gmra.mrb[0].mxu0 %v2118
      %v2331 = vpop.f32.mrb[0].mxu0
      %v2332 = vadd.f32 0.0, %v2331
      %v2333 = vpop.f32.mrb[0].mxu0
      %2334 = vmatprep.mubr.f32.mxu0 0.0
      %2335 = vmatmul.mubr.f32.gmra.mrb[0].mxu0 %v2121
      %v2336 = vpop.f32.mrb[0].mxu0
      %v2337 = vadd.f32 0.0, %v2336
      %v2338 = vpop.f32.mrb[0].mxu0
      %2339 = vmatprep.mubr.f32.mxu0 0.0
      %2340 = vmatmul.mubr.f32.gmra.mrb[0].mxu0 %v2124
      %v2341 = vpop.f32.mrb[0].mxu0
      %v2342 = vadd.f32 0.0, %v2341
      %v2343 = vpop.f32.mrb[0].mxu0
      %2344 = vmatprep.mubr.f32.mxu0 0.0
      %2345 = vmatmul.mubr.f32.gmra.mrb[0].mxu0 %v2127
      %v2346 = vpop.f32.mrb[0].mxu0
      %v2347 = vadd.f32 0.0, %v2346
      %v2348 = vpop.f32.mrb[0].mxu0
      %2349 = vmatprep.mubr.f32.mxu0 0.0
      %2350 = vmatmul.mubr.f32.gmra.mrb[0].mxu0 %v2130
      %v2351 = vpop.f32.mrb[0].mxu0
      %v2352 = vadd.f32 0.0, %v2351
      %v2353 = vpop.f32.mrb[0].mxu0
      %2354 = vmatprep.mubr.f32.mxu0 0.0
      %2355 = vmatmul.mubr.f32.gmra.mrb[0].mxu0 %v2133
      %v2356 = vpop.f32.mrb[0].mxu0
      %v2357 = vadd.f32 0.0, %v2356
      %v2358 = vpop.f32.mrb[0].mxu0
      %2359 = vdwg.mxu0
      %2360 = vst.msk [vmem:[%s231] sm:$0xff] %vm378, %v2202
      %2361 = vst.msk [vmem:[%s231 + $0x8] sm:$0xff] %vm378, %v2207
      %2362 = vst.msk [vmem:[%s231 + $0x10] sm:$0xff] %vm378, %v2212
      %2363 = vst.msk [vmem:[%s231 + $0x18] sm:$0xff] %vm378, %v2217
      %2364 = vst.msk [vmem:[%s231 + $0x20] sm:$0xff] %vm378, %v2222
      %2365 = vst.msk [vmem:[%s231 + $0x28] sm:$0xff] %vm378, %v2227
      %2366 = vst.msk [vmem:[%s231 + $0x30] sm:$0xff] %vm378, %v2232
      %2367 = vst.msk [vmem:[%s231 + $0x38] sm:$0xff] %vm378, %v2237
      %2368 = vst.msk [vmem:[%s231 + $0x40] sm:$0xff] %vm378, %v2242
      %2369 = vst.msk [vmem:[%s231 + $0x48] sm:$0xff] %vm378, %v2247
      %2370 = vst.msk [vmem:[%s231 + $0x50] sm:$0xff] %vm378, %v2252
      %2371 = vst.msk [vmem:[%s231 + $0x58] sm:$0xff] %vm378, %v2257
      %2372 = vst.msk [vmem:[%s231 + $0x60] sm:$0xff] %vm378, %v2262
      %2373 = vst.msk [vmem:[%s231 + $0x68] sm:$0xff] %vm378, %v2267
      %2374 = vst.msk [vmem:[%s231 + $0x70] sm:$0xff] %vm378, %v2272
      %2375 = vst.msk [vmem:[%s231 + $0x78] sm:$0xff] %vm378, %v2277
      %2376 = vst.msk [vmem:[%s231 + $0x80] sm:$0xff] %vm378, %v2282
      %2377 = vst.msk [vmem:[%s231 + $0x88] sm:$0xff] %vm378, %v2287
      %2378 = vst.msk [vmem:[%s231 + $0x90] sm:$0xff] %vm378, %v2292
      %2379 = vst.msk [vmem:[%s231 + $0x98] sm:$0xff] %vm378, %v2297
      %2380 = vst.msk [vmem:[%s231 + $0xa0] sm:$0xff] %vm378, %v2302
      %2381 = vst.msk [vmem:[%s231 + $0xa8] sm:$0xff] %vm378, %v2307
      %2382 = vst.msk [vmem:[%s231 + $0xb0] sm:$0xff] %vm378, %v2312
      %2383 = vst.msk [vmem:[%s231 + $0xb8] sm:$0xff] %vm378, %v2317
      %2384 = vst.msk [vmem:[%s231 + $0xc0] sm:$0xff] %vm378, %v2322
      %2385 = vst.msk [vmem:[%s231 + $0xc8] sm:$0xff] %vm378, %v2327
      %2386 = vst.msk [vmem:[%s231 + $0xd0] sm:$0xff] %vm378, %v2332
      %2387 = vst.msk [vmem:[%s231 + $0xd8] sm:$0xff] %vm378, %v2337
      %2388 = vst.msk [vmem:[%s231 + $0xe0] sm:$0xff] %vm378, %v2342
      %2389 = vst.msk [vmem:[%s231 + $0xe8] sm:$0xff] %vm378, %v2347
      %2390 = vst.msk [vmem:[%s231 + $0xf0] sm:$0xff] %vm378, %v2352
      %2391 = vst.msk [vmem:[%s231 + $0xf8] sm:$0xff] %vm378, %v2357
      %2392 = vmatprep.subr.mxu0 0.0
      %2393 = vmatpush1.msra.mxu0 %v2202
      %2394 = vmatprep.subr.mxu0 0.0
      %2395 = vmatpush1.msra.mxu0 %v2207
      %2396 = vmatprep.subr.mxu0 0.0
      %2397 = vmatpush1.msra.mxu0 %v2212
      %2398 = vmatprep.subr.mxu0 0.0
      %2399 = vmatpush1.msra.mxu0 %v2217
      %2400 = vmatprep.subr.mxu0 0.0
      %2401 = vmatpush1.msra.mxu0 %v2222
      %2402 = vmatprep.subr.mxu0 0.0
      %2403 = vmatpush1.msra.mxu0 %v2227
      %2404 = vmatprep.subr.mxu0 0.0
      %2405 = vmatpush1.msra.mxu0 %v2232
      %2406 = vmatprep.subr.mxu0 0.0
      %2407 = vmatpush1.msra.mxu0 %v2237
      %2408 = vmatprep.subr.mxu0 0.0
      %2409 = vmatpush1.msra.mxu0 %v2242
      %2410 = vmatprep.subr.mxu0 0.0
      %2411 = vmatpush1.msra.mxu0 %v2247
      %2412 = vmatprep.subr.mxu0 0.0
      %2413 = vmatpush1.msra.mxu0 %v2252
      %2414 = vmatprep.subr.mxu0 0.0
      %2415 = vmatpush1.msra.mxu0 %v2257
      %2416 = vmatprep.subr.mxu0 0.0
      %2417 = vmatpush1.msra.mxu0 %v2262
      %2418 = vmatprep.subr.mxu0 0.0
      %2419 = vmatpush1.msra.mxu0 %v2267
      %2420 = vmatprep.subr.mxu0 0.0
      %2421 = vmatpush1.msra.mxu0 %v2272
      %2422 = vmatprep.subr.mxu0 0.0
      %2423 = vmatpush1.msra.mxu0 %v2277
      %2424 = vmatprep.subr.mxu0 0.0
      %2425 = vmatpush1.msra.mxu0 %v2282
      %2426 = vmatprep.subr.mxu0 0.0
      %2427 = vmatpush1.msra.mxu0 %v2287
      %2428 = vmatprep.subr.mxu0 0.0
      %2429 = vmatpush1.msra.mxu0 %v2292
      %2430 = vmatprep.subr.mxu0 0.0
      %2431 = vmatpush1.msra.mxu0 %v2297
      %2432 = vmatprep.subr.mxu0 0.0
      %2433 = vmatpush1.msra.mxu0 %v2302
      %2434 = vmatprep.subr.mxu0 0.0
      %2435 = vmatpush1.msra.mxu0 %v2307
      %2436 = vmatprep.subr.mxu0 0.0
      %2437 = vmatpush1.msra.mxu0 %v2312
      %2438 = vmatprep.subr.mxu0 0.0
      %2439 = vmatpush1.msra.mxu0 %v2317
      %2440 = vmatprep.subr.mxu0 0.0
      %2441 = vmatpush1.msra.mxu0 %v2322
      %2442 = vmatprep.subr.mxu0 0.0
      %2443 = vmatpush1.msra.mxu0 %v2327
      %2444 = vmatprep.subr.mxu0 0.0
      %2445 = vmatpush1.msra.mxu0 %v2332
      %2446 = vmatprep.subr.mxu0 0.0
      %2447 = vmatpush1.msra.mxu0 %v2337
      %2448 = vmatprep.subr.mxu0 0.0
      %2449 = vmatpush1.msra.mxu0 %v2342
      %2450 = vmatprep.subr.mxu0 0.0
      %2451 = vmatpush1.msra.mxu0 %v2347
      %2452 = vmatprep.subr.mxu0 0.0
      %2453 = vmatpush1.msra.mxu0 %v2352
      %2454 = vmatprep.subr.mxu0 0.0
      %2455 = vmatpush1.msra.mxu0 %v2357
      %2456 = vmatprep.mubr.f32.mxu0 1.0
      %2457 = vmatmul.mubr.f32.gmra.mrb[0].mxu0 1.0
      %v2458 = vpop.f32.mrb[0].mxu0
      %v2459 = vadd.f32 0.0, %v2458
      %v2460 = vpop.f32.mrb[0].mxu0
      %2461 = vdwg.mxu0
      %v2462 = vmul.f32 %v2459, 0.00390625
      %v2463 = vlaneseq
      %v2464 = vshrl.u32 %v2463, 7
      %v2465 = vsub.s32 0, %v2464
      %v2466 = vrot.slane %v2462, %v2465
      %v2467 = vsub.f32 %v2202, %v2466
      %v2468 = vsub.f32 %v2207, %v2466
      %v2469 = vsub.f32 %v2212, %v2466
      %v2470 = vsub.f32 %v2217, %v2466
      %v2471 = vsub.f32 %v2222, %v2466
      %v2472 = vsub.f32 %v2227, %v2466
      %v2473 = vsub.f32 %v2232, %v2466
      %v2474 = vsub.f32 %v2237, %v2466
      %v2475 = vsub.f32 %v2242, %v2466
      %v2476 = vsub.f32 %v2247, %v2466
      %v2477 = vsub.f32 %v2252, %v2466
      %v2478 = vsub.f32 %v2257, %v2466
      %v2479 = vsub.f32 %v2262, %v2466
      %v2480 = vsub.f32 %v2267, %v2466
      %v2481 = vsub.f32 %v2272, %v2466
      %v2482 = vsub.f32 %v2277, %v2466
      %v2483 = vsub.f32 %v2282, %v2466
      %v2484 = vsub.f32 %v2287, %v2466
      %v2485 = vsub.f32 %v2292, %v2466
      %v2486 = vsub.f32 %v2297, %v2466
      %v2487 = vsub.f32 %v2302, %v2466
      %v2488 = vsub.f32 %v2307, %v2466
      %v2489 = vsub.f32 %v2312, %v2466
      %v2490 = vsub.f32 %v2317, %v2466
      %v2491 = vsub.f32 %v2322, %v2466
      %v2492 = vsub.f32 %v2327, %v2466
      %v2493 = vsub.f32 %v2332, %v2466
      %v2494 = vsub.f32 %v2337, %v2466
      %v2495 = vsub.f32 %v2342, %v2466
      %v2496 = vsub.f32 %v2347, %v2466
      %v2497 = vsub.f32 %v2352, %v2466
      %v2498 = vsub.f32 %v2357, %v2466
      %v2499 = vmul.f32 %v2467, %v2467
      %v2500 = vmul.f32 %v2468, %v2468
      %v2501 = vmul.f32 %v2469, %v2469
      %v2502 = vmul.f32 %v2470, %v2470
      %v2503 = vmul.f32 %v2471, %v2471
      %v2504 = vmul.f32 %v2472, %v2472
      %v2505 = vmul.f32 %v2473, %v2473
      %v2506 = vmul.f32 %v2474, %v2474
      %v2507 = vmul.f32 %v2475, %v2475
      %v2508 = vmul.f32 %v2476, %v2476
      %v2509 = vmul.f32 %v2477, %v2477
      %v2510 = vmul.f32 %v2478, %v2478
      %v2511 = vmul.f32 %v2479, %v2479
      %v2512 = vmul.f32 %v2480, %v2480
      %v2513 = vmul.f32 %v2481, %v2481
      %v2514 = vmul.f32 %v2482, %v2482
      %v2515 = vmul.f32 %v2483, %v2483
      %v2516 = vmul.f32 %v2484, %v2484
      %v2517 = vmul.f32 %v2485, %v2485
      %v2518 = vmul.f32 %v2486, %v2486
      %v2519 = vmul.f32 %v2487, %v2487
      %v2520 = vmul.f32 %v2488, %v2488
      %v2521 = vmul.f32 %v2489, %v2489
      %v2522 = vmul.f32 %v2490, %v2490
      %v2523 = vmul.f32 %v2491, %v2491
      %v2524 = vmul.f32 %v2492, %v2492
      %v2525 = vmul.f32 %v2493, %v2493
      %v2526 = vmul.f32 %v2494, %v2494
      %v2527 = vmul.f32 %v2495, %v2495
      %v2528 = vmul.f32 %v2496, %v2496
      %v2529 = vmul.f32 %v2497, %v2497
      %v2530 = vmul.f32 %v2498, %v2498
      %2531 = vmatprep.subr.mxu0 0.0
      %2532 = vmatpush1.msra.mxu0 %v2499
      %2533 = vmatprep.subr.mxu0 0.0
      %2534 = vmatpush1.msra.mxu0 %v2500
      %2535 = vmatprep.subr.mxu0 0.0
      %2536 = vmatpush1.msra.mxu0 %v2501
      %2537 = vmatprep.subr.mxu0 0.0
      %2538 = vmatpush1.msra.mxu0 %v2502
      %2539 = vmatprep.subr.mxu0 0.0
      %2540 = vmatpush1.msra.mxu0 %v2503
      %2541 = vmatprep.subr.mxu0 0.0
      %2542 = vmatpush1.msra.mxu0 %v2504
      %2543 = vmatprep.subr.mxu0 0.0
      %2544 = vmatpush1.msra.mxu0 %v2505
      %2545 = vmatprep.subr.mxu0 0.0
      %2546 = vmatpush1.msra.mxu0 %v2506
      %2547 = vmatprep.subr.mxu0 0.0
      %2548 = vmatpush1.msra.mxu0 %v2507
      %2549 = vmatprep.subr.mxu0 0.0
      %2550 = vmatpush1.msra.mxu0 %v2508
      %2551 = vmatprep.subr.mxu0 0.0
      %2552 = vmatpush1.msra.mxu0 %v2509
      %2553 = vmatprep.subr.mxu0 0.0
      %2554 = vmatpush1.msra.mxu0 %v2510
      %2555 = vmatprep.subr.mxu0 0.0
      %2556 = vmatpush1.msra.mxu0 %v2511
      %2557 = vmatprep.subr.mxu0 0.0
      %2558 = vmatpush1.msra.mxu0 %v2512
      %2559 = vmatprep.subr.mxu0 0.0
      %2560 = vmatpush1.msra.mxu0 %v2513
      %2561 = vmatprep.subr.mxu0 0.0
      %2562 = vmatpush1.msra.mxu0 %v2514
      %2563 = vmatprep.subr.mxu0 0.0
      %2564 = vmatpush1.msra.mxu0 %v2515
      %2565 = vmatprep.subr.mxu0 0.0
      %2566 = vmatpush1.msra.mxu0 %v2516
      %2567 = vmatprep.subr.mxu0 0.0
      %2568 = vmatpush1.msra.mxu0 %v2517
      %2569 = vmatprep.subr.mxu0 0.0
      %2570 = vmatpush1.msra.mxu0 %v2518
      %2571 = vmatprep.subr.mxu0 0.0
      %2572 = vmatpush1.msra.mxu0 %v2519
      %2573 = vmatprep.subr.mxu0 0.0
      %2574 = vmatpush1.msra.mxu0 %v2520
      %2575 = vmatprep.subr.mxu0 0.0
      %2576 = vmatpush1.msra.mxu0 %v2521
      %2577 = vmatprep.subr.mxu0 0.0
      %2578 = vmatpush1.msra.mxu0 %v2522
      %2579 = vmatprep.subr.mxu0 0.0
      %2580 = vmatpush1.msra.mxu0 %v2523
      %2581 = vmatprep.subr.mxu0 0.0
      %2582 = vmatpush1.msra.mxu0 %v2524
      %2583 = vmatprep.subr.mxu0 0.0
      %2584 = vmatpush1.msra.mxu0 %v2525
      %2585 = vmatprep.subr.mxu0 0.0
      %2586 = vmatpush1.msra.mxu0 %v2526
      %2587 = vmatprep.subr.mxu0 0.0
      %2588 = vmatpush1.msra.mxu0 %v2527
      %2589 = vmatprep.subr.mxu0 0.0
      %2590 = vmatpush1.msra.mxu0 %v2528
      %2591 = vmatprep.subr.mxu0 0.0
      %2592 = vmatpush1.msra.mxu0 %v2529
      %2593 = vmatprep.subr.mxu0 0.0
      %2594 = vmatpush1.msra.mxu0 %v2530
      %2595 = vmatprep.mubr.f32.mxu0 1.0
      %2596 = vmatmul.mubr.f32.gmra.mrb[0].mxu0 1.0
      %v2597 = vpop.f32.mrb[0].mxu0
      %v2598 = vadd.f32 0.0, %v2597
      %v2599 = vpop.f32.mrb[0].mxu0
      %2600 = vdwg.mxu0
      %v2602 = vrot.slane %v2598, 7
      %vm2604 = vcmask 1040384
      %v2605 = vsel %vm2604, %v2459, %v2602
      %vm2606 = vcmask 58368
      %2607 = vst.msk [vmem:[%s235] sm:$0x3] %vm2606, %v2605
      %p2608 = scmp.lt.s32.totalorder %s17, 1
      %s2609 = scalar_select %p2608, %s17, 1
      %s2610 = smul.addr %s2609, 32
      %s2611 = smul.addr %s2610, 8
      %s2612 = scalar_lea.vmem %s4, %s2611
      %p2613 = scmp.lt.s32.totalorder %s17, 1
      %s2614 = scalar_select %p2613, %s17, 1
      %s2615 = smul.addr %s2614, 2
      %s2616 = scalar_lea.vmem %s5, %s2615
      // Predicated region
      $region37: #{_lambda_.4} parent=35 // pred_check
        %p2617 = pneg %p124
      $region38: #{_lambda_.4} parent=35 // pred_check_branch
        %2619 = sbr.rel (%p2617) target = $region40
      $region39: #{_lambda_.4} parent=35 // pred_region
        _
      $region40: #{_lambda_.4} parent=35 // pred_fallthru
        _
      // Predicated region
      $region41: #{_lambda_.4} parent=35 // pred_check
        %p2620 = pneg %p150
      $region42: #{_lambda_.4} parent=35 // pred_check_branch
        %2622 = sbr.rel (%p2620) target = $region44
      $region43: #{_lambda_.4} parent=35 // pred_region
        _
      $region44: #{_lambda_.4} parent=35 // pred_fallthru
        _
    $region36: #{_lambda_.4} parent=5 // pred_fallthru
      _
    %p2623 = scmp.le.s32.totalorder 2, %s12
    // Predicated region
    $region45: #{_lambda_.4} parent=5 // pred_check
      %p2624 = pneg %p2623
    $region46: #{_lambda_.4} parent=5 // pred_check_branch
      %2626 = sbr.rel (%p2624) target = $region48
    $region47: #{_lambda_.4} parent=5 // pred_region
      %s2627 = ssub.s32 %s12, 2
      // Predicated region
      $region49: #{_lambda_.4} parent=47 // pred_check
        %p2628 = pneg %p130
      $region50: #{_lambda_.4} parent=47 // pred_check_branch
        %2630 = sbr.rel (%p2628) target = $region52
      $region51: #{_lambda_.4} parent=47 // pred_region
        %p2631 = scmp.lt.s32.totalorder %s18, 1
        %s2632 = scalar_select %p2631, %s18, 1
        %s2633 = smul.addr %s2632, 32
        %s2634 = smul.addr %s2633, 8
        %s2635 = scalar_lea.vmem %s4, %s2634
      $region52: #{_lambda_.4} parent=47 // pred_fallthru
        _
      // Predicated region
      $region53: #{_lambda_.4} parent=47 // pred_check
        %p2636 = pneg %p156
      $region54: #{_lambda_.4} parent=47 // pred_check_branch
        %2638 = sbr.rel (%p2636) target = $region56
      $region55: #{_lambda_.4} parent=47 // pred_region
        %p2639 = scmp.lt.s32.totalorder %s18, 1
        %s2640 = scalar_select %p2639, %s18, 1
        %s2641 = smul.addr %s2640, 2
        %s2642 = scalar_lea.vmem %s5, %s2641
      $region56: #{_lambda_.4} parent=47 // pred_fallthru
        _
    $region48: #{_lambda_.4} parent=5 // pred_fallthru
      _
  $region6: #{_lambda_.4} parent=0 // loop_footer
    %s16 = sadd.s32 1, %s12
  $region7: #{_lambda_.4} parent=0 // loop_footer_branch
    %11 = sbr.rel target = $region3
  $region8: #{_lambda_.4} parent=0 // loop_exit
    _

</llo_original>
